<compile_context>
chip_gen: v7x
topology: tpu7x:2x2x1
jax: 0.10.0
libtpu: 0.0.40
codegen_flags: <defaults>
</compile_context>

<pallas_src>
import functools
import numpy as np
import jax
import jax.numpy as jnp
from jax.experimental import pallas as pl
from jax.experimental.pallas import tpu as pltpu

PAD = 128  # lane-dense padded width for all per-layer outputs


# ----------------------------------------------------------------------------
# Fused RelCNN-stack Pallas kernel (grid axis = which stack: graphc1 / graphc2)
# ----------------------------------------------------------------------------
def _graphconv_fused_kernel(num_layers, pad, x_ref, a1_ref, a2_ref, *refs):
    """One full RelCNN stack.

    refs layout: [WB_0, BR_0, ..., WB_{L-1}, BR_{L-1}, WF_last, BF, o_ref]
      WB_l = [W1_l | W2_l | Wroot_l | Wfinal_l]  (C_in_l, 4*pad), bf16
      BR_l = root bias, zero-padded to (1, pad), f32
      WF_last = final-Linear block for the last hidden features (pad, pad), bf16
      BF      = final-Linear bias, zero-padded to (1, pad), f32
    """
    o_ref = refs[-1]
    bf_ref = refs[-2]
    wf_ref = refs[-3]

    a1 = a1_ref[...]          # (N, N) f32 normalized adjacency, src->dst mean
    a2 = a2_ref[...]          # (N, N) f32 normalized adjacency, dst->src mean
    h = x_ref[...]            # (N, C_in) bf16
    y = None                  # running final-linear accumulator (N, pad) f32

    for l in range(num_layers):
        wb = refs[2 * l][...]        # (C_in_l, 4*pad) bf16
        br = refs[2 * l + 1][...]    # (1, pad) f32
        hc = jnp.dot(h, wb, preferred_element_type=jnp.float32)   # (N, 4*pad)
        agg = (jnp.dot(a1, hc[:, 0:pad], preferred_element_type=jnp.float32)
               + jnp.dot(a2, hc[:, pad:2 * pad],
                         preferred_element_type=jnp.float32)
               + hc[:, 2 * pad:3 * pad] + br)
        part = hc[:, 3 * pad:4 * pad]          # h_l @ Wfinal_l partial
        y = part if y is None else y + part
        h = jnp.maximum(agg, 0.0).astype(x_ref.dtype)   # relu; dropout=identity

    y = (y + jnp.dot(h, wf_ref[...], preferred_element_type=jnp.float32)
         + bf_ref[...])
    o_ref[...] = y.astype(o_ref.dtype)


def fused_graphconv(X, A1, A2, wb_list, br_list, WF, BF):
    """X: (2, N, C_in) bf16; A1/A2: (2, N, N) f32; weights stacked per-stack."""
    num_layers = len(wb_list)
    _, n, _ = X.shape
    pad = WF.shape[-1]

    def spec3(arr):
        return pl.BlockSpec((None,) + arr.shape[1:], lambda i: (i, 0, 0))

    in_arrays = [X, A1, A2]
    for l in range(num_layers):
        in_arrays += [wb_list[l], br_list[l]]
    in_arrays += [WF, BF]
    in_specs = [spec3(a) for a in in_arrays]

    return pl.pallas_call(
        functools.partial(_graphconv_fused_kernel, num_layers, pad),
        out_shape=jax.ShapeDtypeStruct((2, n, pad), jnp.float32),
        grid=(2,),
        in_specs=in_specs,
        out_specs=pl.BlockSpec((None, n, pad), lambda i: (i, 0, 0)),
        compiler_params=pltpu.CompilerParams(
            dimension_semantics=("parallel",)),
    )(*in_arrays)


# ----------------------------------------------------------------------------
# Glue (plain JAX, jitted together with the kernel): kNN graph + adjacencies
# ----------------------------------------------------------------------------
def build_mean_adjacencies(x, k):
    """Dense normalized adjacencies for PyG mean aggregation from a kNN graph.

    A1 (source_to_target): out1[t] = mean_{edges s->t} h[s]
    A2 (target_to_source): out2[s] = mean_{edges s->t} h[t]
    """
    # TODO(synk): Compute_edge_no_weight is not provided; assuming a standard
    # Euclidean k-nearest-neighbour graph (neighbour -> node, no self-loops).
    n = x.shape[0]
    xf = x.astype(jnp.float32)
    sq = jnp.sum(xf * xf, axis=-1)
    d = sq[:, None] + sq[None, :] - 2.0 * (xf @ xf.T)
    d = d + jnp.eye(n, dtype=d.dtype) * 1e12      # exclude self
    _, nbr = jax.lax.top_k(-d, k)                 # (N, k) sources per target
    counts = jax.nn.one_hot(nbr, n, dtype=jnp.float32).sum(axis=1)  # (N, N)
    a1 = counts / float(k)                        # every target has k sources
    deg_s = counts.sum(axis=0)                    # out-degree of each source
    a2 = counts.T / jnp.maximum(deg_s[:, None], 1.0)  # zero-degree rows -> 0
    return a1, a2


def graphconv_forward(global_feat, feat, packed1, packed2,
                      dim_out1, dim_out2, k, num_layers):
    """Graphconv.forward (eval path). `baseline` outputs are given directly."""
    # TODO(synk): the `baseline` CNN backbone / graph classifier is external;
    # its outputs (global_feat, feat) are inputs here, training branch omitted.
    a1g, a2g = build_mean_adjacencies(global_feat, k)
    a1f, a2f = build_mean_adjacencies(feat, k)

    X = jnp.stack([global_feat, feat]).astype(jnp.bfloat16)
    A1 = jnp.stack([a1g, a1f])
    A2 = jnp.stack([a2g, a2f])
    wb = [jnp.stack([packed1["WB"][l], packed2["WB"][l]])
          for l in range(num_layers)]
    br = [jnp.stack([packed1["BR"][l], packed2["BR"][l]])
          for l in range(num_layers)]
    WF = jnp.stack([packed1["WF"], packed2["WF"]])
    BF = jnp.stack([packed1["BF"], packed2["BF"]])

    out = fused_graphconv(X, A1, A2, wb, br, WF, BF)   # (2, N, PAD) f32
    out_global = out[0, :, :dim_out1]
    out_feat = out[1, :, :dim_out2]
    return out_feat, out_global


# ----------------------------------------------------------------------------
# Parameters: torch.nn.Linear-style init + host-side packing for the kernel
# ----------------------------------------------------------------------------
def init_linear(key, fan_in, fan_out, bias=True):
    bound = 1.0 / np.sqrt(fan_in)
    k1, k2 = jax.random.split(key)
    w = jax.random.uniform(k1, (fan_in, fan_out), jnp.float32, -bound, bound)
    if not bias:
        return w, None
    b = jax.random.uniform(k2, (1, fan_out), jnp.float32, -bound, bound)
    return w, b


def init_relcnn_params(key, in_channels, out_channels, num_layers):
    params = {"convs": []}
    c_in = in_channels
    for _ in range(num_layers):
        key, k1, k2, k3 = jax.random.split(key, 4)
        w1, _ = init_linear(k1, c_in, out_channels, bias=False)
        w2, _ = init_linear(k2, c_in, out_channels, bias=False)
        wr, br = init_linear(k3, c_in, out_channels, bias=True)
        params["convs"].append({"W1": w1, "W2": w2, "Wr": wr, "br": br})
        c_in = out_channels
    cat_dim = in_channels + num_layers * out_channels   # cat=True, lin=True
    key, kf = jax.random.split(key)
    params["final_W"], params["final_b"] = init_linear(kf, cat_dim, out_channels)
    return params


def pack_relcnn_params(params, c_in, c_out, num_layers, pad=PAD):
    """Concat per-layer W1|W2|Wroot|Wfinal_block, pad everything to 128 lanes."""
    def pad_to(w, rows, cols):
        return jnp.pad(w, ((0, rows - w.shape[0]), (0, cols - w.shape[1])))

    wf = params["final_W"]                 # (c_in + L*c_out, c_out)
    bf = params["final_b"]                 # (1, c_out)
    wf_blocks, start = [], 0
    for s in [c_in] + [c_out] * num_layers:
        wf_blocks.append(wf[start:start + s])
        start += s

    packed = {"WB": [], "BR": []}
    in_dim = c_in
    for l in range(num_layers):
        layer = params["convs"][l]
        rows = in_dim if l == 0 else pad   # layer>0 inputs are padded to 128
        blocks = [layer["W1"], layer["W2"], layer["Wr"], wf_blocks[l]]
        wb = jnp.concatenate([pad_to(b, rows, pad) for b in blocks], axis=1)
        packed["WB"].append(wb.astype(jnp.bfloat16))
        packed["BR"].append(pad_to(layer["br"], 1, pad))
        in_dim = c_out
    packed["WF"] = pad_to(wf_blocks[num_layers], pad, pad).astype(jnp.bfloat16)
    packed["BF"] = pad_to(bf, 1, pad)
    return packed


# ----------------------------------------------------------------------------
# Pure-JAX f32 reference (for correctness check of the fused kernel math)
# ----------------------------------------------------------------------------
def relcnn_reference(x, a1, a2, params):
    xs = [x]
    for layer in params["convs"]:
        h = xs[-1]
        out = (h @ layer["Wr"] + layer["br"]
               + a1 @ (h @ layer["W1"])
               + a2 @ (h @ layer["W2"]))
        xs.append(jax.nn.relu(out))
    xcat = jnp.concatenate(xs, axis=-1)
    return xcat @ params["final_W"] + params["final_b"]


# ----------------------------------------------------------------------------
if __name__ == "__main__":
    N_NODES = 16          # number of nodes (batch of image features)
    IN_DIM = 2048         # graphc1 / graphc2 hard-coded input dim
    DIM_OUT1 = 64         # cfg.SOLVER.graphconv1_dim_out
    DIM_OUT2 = 32         # cfg.SOLVER.graphconv2_dim_out
    NUM_LAYERS = 2        # cfg.SOLVER.num_layers
    EDGE_K = 4            # cfg.SOLVER.edge_k

    root = jax.random.PRNGKey(0)
    k_gf, k_ff, k_p1, k_p2 = jax.random.split(root, 4)

    global_feat = jax.random.normal(k_gf, (N_NODES, IN_DIM), jnp.float32)
    feat = jax.random.normal(k_ff, (N_NODES, IN_DIM), jnp.float32)

    params1 = init_relcnn_params(k_p1, IN_DIM, DIM_OUT1, NUM_LAYERS)
    params2 = init_relcnn_params(k_p2, IN_DIM, DIM_OUT2, NUM_LAYERS)
    packed1 = pack_relcnn_params(params1, IN_DIM, DIM_OUT1, NUM_LAYERS)
    packed2 = pack_relcnn_params(params2, IN_DIM, DIM_OUT2, NUM_LAYERS)

    fwd = jax.jit(functools.partial(
        graphconv_forward, dim_out1=DIM_OUT1, dim_out2=DIM_OUT2,
        k=EDGE_K, num_layers=NUM_LAYERS))

    out_feat, out_global = fwd(global_feat, feat, packed1, packed2)
    jax.block_until_ready((out_feat, out_global))

    # ---- correctness vs pure-JAX f32 reference (bf16 matmuls -> loose tol) --
    a1g, a2g = build_mean_adjacencies(global_feat, EDGE_K)
    a1f, a2f = build_mean_adjacencies(feat, EDGE_K)
    ref_global = relcnn_reference(global_feat, a1g, a2g, params1)
    ref_feat = relcnn_reference(feat, a1f, a2f, params2)

    assert out_feat.shape == (N_NODES, DIM_OUT2)
    assert out_global.shape == (N_NODES, DIM_OUT1)
    assert jnp.all(jnp.isfinite(out_feat)) and jnp.all(jnp.isfinite(out_global))

    scale_g = float(jnp.max(jnp.abs(ref_global))) + 1e-6
    scale_f = float(jnp.max(jnp.abs(ref_feat))) + 1e-6
    err_g = float(jnp.max(jnp.abs(out_global - ref_global))) / scale_g
    err_f = float(jnp.max(jnp.abs(out_feat - ref_feat))) / scale_f
    assert err_g < 0.08 and err_f < 0.08, (err_g, err_f)

    print("KERNEL_OK")
</pallas_src>

<mosaic_0001>
module attributes {stable_mosaic.version = 11 : i64} {
  func.func @_graphconv_fused_kernel(%arg0: i32, %arg1: memref<1x16x2048xbf16, #tpu.memory_space<vmem>>, %arg2: memref<1x16x16xf32, #tpu.memory_space<vmem>>, %arg3: memref<1x16x16xf32, #tpu.memory_space<vmem>>, %arg4: memref<1x2048x512xbf16, #tpu.memory_space<vmem>>, %arg5: memref<1x1x128xf32, #tpu.memory_space<vmem>>, %arg6: memref<1x128x512xbf16, #tpu.memory_space<vmem>>, %arg7: memref<1x1x128xf32, #tpu.memory_space<vmem>>, %arg8: memref<1x128x128xbf16, #tpu.memory_space<vmem>>, %arg9: memref<1x1x128xf32, #tpu.memory_space<vmem>>, %arg10: memref<1x16x128xf32, #tpu.memory_space<vmem>>) attributes {dimension_semantics = [#tpu.dimension_semantics<parallel>], iteration_bounds = array<i64: 2>, scalar_prefetch = 0 : i64, scratch_operands = 0 : i64, tpu.core_type = #tpu.core_type<tc>, window_params = [{transform_indices = @transform_0, window_bounds = array<i64: 1, 16, 2048>}, {transform_indices = @transform_1, window_bounds = array<i64: 1, 16, 16>}, {transform_indices = @transform_2, window_bounds = array<i64: 1, 16, 16>}, {transform_indices = @transform_3, window_bounds = array<i64: 1, 2048, 512>}, {transform_indices = @transform_4, window_bounds = array<i64: 1, 1, 128>}, {transform_indices = @transform_5, window_bounds = array<i64: 1, 128, 512>}, {transform_indices = @transform_6, window_bounds = array<i64: 1, 1, 128>}, {transform_indices = @transform_7, window_bounds = array<i64: 1, 128, 128>}, {transform_indices = @transform_8, window_bounds = array<i64: 1, 1, 128>}, {transform_indices = @transform_9, window_bounds = array<i64: 1, 16, 128>}]} {
    %c0 = arith.constant 0 : index
    %c0_0 = arith.constant 0 : index
    %c0_1 = arith.constant 0 : index
    %0 = vector.load %arg2[%c0, %c0_0, %c0_1] : memref<1x16x16xf32, #tpu.memory_space<vmem>>, vector<1x16x16xf32>
    %1 = vector.shape_cast %0 : vector<1x16x16xf32> to vector<16x16xf32>
    %c0_2 = arith.constant 0 : index
    %c0_3 = arith.constant 0 : index
    %c0_4 = arith.constant 0 : index
    %2 = vector.load %arg3[%c0_2, %c0_3, %c0_4] : memref<1x16x16xf32, #tpu.memory_space<vmem>>, vector<1x16x16xf32>
    %3 = vector.shape_cast %2 : vector<1x16x16xf32> to vector<16x16xf32>
    %c0_5 = arith.constant 0 : index
    %c0_6 = arith.constant 0 : index
    %c0_7 = arith.constant 0 : index
    %4 = vector.load %arg1[%c0_5, %c0_6, %c0_7] : memref<1x16x2048xbf16, #tpu.memory_space<vmem>>, vector<1x16x2048xbf16>
    %5 = vector.shape_cast %4 : vector<1x16x2048xbf16> to vector<16x2048xbf16>
    %c0_8 = arith.constant 0 : index
    %c0_9 = arith.constant 0 : index
    %c0_10 = arith.constant 0 : index
    %6 = vector.load %arg4[%c0_8, %c0_9, %c0_10] : memref<1x2048x512xbf16, #tpu.memory_space<vmem>>, vector<1x2048x512xbf16>
    %7 = vector.shape_cast %6 : vector<1x2048x512xbf16> to vector<2048x512xbf16>
    %c0_11 = arith.constant 0 : index
    %c0_12 = arith.constant 0 : index
    %c0_13 = arith.constant 0 : index
    %8 = vector.load %arg5[%c0_11, %c0_12, %c0_13] : memref<1x1x128xf32, #tpu.memory_space<vmem>>, vector<1x1x128xf32>
    %9 = vector.shape_cast %8 : vector<1x1x128xf32> to vector<1x128xf32>
    %cst = arith.constant dense<0.000000e+00> : vector<16x512xf32>
    %10 = tpu.matmul %5, %7, %cst {dimension_numbers = #tpu.dot_dimension_numbers<[1], [0], [0], [1], [0, 0, 1, 1], [], []>} : vector<16x2048xbf16>, vector<2048x512xbf16>, vector<16x512xf32> -> vector<16x512xf32>
    %11 = vector.extract_strided_slice %10 {offsets = [0, 0], sizes = [16, 128], strides = [1, 1]} : vector<16x512xf32> to vector<16x128xf32>
    %cst_14 = arith.constant dense<0.000000e+00> : vector<16x128xf32>
    %12 = tpu.matmul %1, %11, %cst_14 {dimension_numbers = #tpu.dot_dimension_numbers<[1], [0], [0], [1], [0, 0, 1, 1], [], []>} : vector<16x16xf32>, vector<16x128xf32>, vector<16x128xf32> -> vector<16x128xf32>
    %13 = vector.extract_strided_slice %10 {offsets = [0, 128], sizes = [16, 128], strides = [1, 1]} : vector<16x512xf32> to vector<16x128xf32>
    %cst_15 = arith.constant dense<0.000000e+00> : vector<16x128xf32>
    %14 = tpu.matmul %3, %13, %cst_15 {dimension_numbers = #tpu.dot_dimension_numbers<[1], [0], [0], [1], [0, 0, 1, 1], [], []>} : vector<16x16xf32>, vector<16x128xf32>, vector<16x128xf32> -> vector<16x128xf32>
    %15 = arith.addf %12, %14 : vector<16x128xf32>
    %16 = vector.extract_strided_slice %10 {offsets = [0, 256], sizes = [16, 128], strides = [1, 1]} : vector<16x512xf32> to vector<16x128xf32>
    %17 = arith.addf %15, %16 : vector<16x128xf32>
    %18 = vector.broadcast %9 : vector<1x128xf32> to vector<16x128xf32>
    %19 = arith.addf %17, %18 : vector<16x128xf32>
    %20 = vector.extract_strided_slice %10 {offsets = [0, 384], sizes = [16, 128], strides = [1, 1]} : vector<16x512xf32> to vector<16x128xf32>
    %cst_16 = arith.constant 0.000000e+00 : f32
    %21 = vector.broadcast %cst_16 : f32 to vector<16x128xf32>
    %22 = arith.maximumf %19, %21 : vector<16x128xf32>
    %23 = arith.truncf %22 : vector<16x128xf32> to vector<16x128xbf16>
    %c0_17 = arith.constant 0 : index
    %c0_18 = arith.constant 0 : index
    %c0_19 = arith.constant 0 : index
    %24 = vector.load %arg6[%c0_17, %c0_18, %c0_19] : memref<1x128x512xbf16, #tpu.memory_space<vmem>>, vector<1x128x512xbf16>
    %25 = vector.shape_cast %24 : vector<1x128x512xbf16> to vector<128x512xbf16>
    %c0_20 = arith.constant 0 : index
    %c0_21 = arith.constant 0 : index
    %c0_22 = arith.constant 0 : index
    %26 = vector.load %arg7[%c0_20, %c0_21, %c0_22] : memref<1x1x128xf32, #tpu.memory_space<vmem>>, vector<1x1x128xf32>
    %27 = vector.shape_cast %26 : vector<1x1x128xf32> to vector<1x128xf32>
    %cst_23 = arith.constant dense<0.000000e+00> : vector<16x512xf32>
    %28 = tpu.matmul %23, %25, %cst_23 {dimension_numbers = #tpu.dot_dimension_numbers<[1], [0], [0], [1], [0, 0, 1, 1], [], []>} : vector<16x128xbf16>, vector<128x512xbf16>, vector<16x512xf32> -> vector<16x512xf32>
    %29 = vector.extract_strided_slice %28 {offsets = [0, 0], sizes = [16, 128], strides = [1, 1]} : vector<16x512xf32> to vector<16x128xf32>
    %cst_24 = arith.constant dense<0.000000e+00> : vector<16x128xf32>
    %30 = tpu.matmul %1, %29, %cst_24 {dimension_numbers = #tpu.dot_dimension_numbers<[1], [0], [0], [1], [0, 0, 1, 1], [], []>} : vector<16x16xf32>, vector<16x128xf32>, vector<16x128xf32> -> vector<16x128xf32>
    %31 = vector.extract_strided_slice %28 {offsets = [0, 128], sizes = [16, 128], strides = [1, 1]} : vector<16x512xf32> to vector<16x128xf32>
    %cst_25 = arith.constant dense<0.000000e+00> : vector<16x128xf32>
    %32 = tpu.matmul %3, %31, %cst_25 {dimension_numbers = #tpu.dot_dimension_numbers<[1], [0], [0], [1], [0, 0, 1, 1], [], []>} : vector<16x16xf32>, vector<16x128xf32>, vector<16x128xf32> -> vector<16x128xf32>
    %33 = arith.addf %30, %32 : vector<16x128xf32>
    %34 = vector.extract_strided_slice %28 {offsets = [0, 256], sizes = [16, 128], strides = [1, 1]} : vector<16x512xf32> to vector<16x128xf32>
    %35 = arith.addf %33, %34 : vector<16x128xf32>
    %36 = vector.broadcast %27 : vector<1x128xf32> to vector<16x128xf32>
    %37 = arith.addf %35, %36 : vector<16x128xf32>
    %38 = vector.extract_strided_slice %28 {offsets = [0, 384], sizes = [16, 128], strides = [1, 1]} : vector<16x512xf32> to vector<16x128xf32>
    %39 = arith.addf %20, %38 : vector<16x128xf32>
    %cst_26 = arith.constant 0.000000e+00 : f32
    %40 = vector.broadcast %cst_26 : f32 to vector<16x128xf32>
    %41 = arith.maximumf %37, %40 : vector<16x128xf32>
    %42 = arith.truncf %41 : vector<16x128xf32> to vector<16x128xbf16>
    %c0_27 = arith.constant 0 : index
    %c0_28 = arith.constant 0 : index
    %c0_29 = arith.constant 0 : index
    %43 = vector.load %arg8[%c0_27, %c0_28, %c0_29] : memref<1x128x128xbf16, #tpu.memory_space<vmem>>, vector<1x128x128xbf16>
    %44 = vector.shape_cast %43 : vector<1x128x128xbf16> to vector<128x128xbf16>
    %cst_30 = arith.constant dense<0.000000e+00> : vector<16x128xf32>
    %45 = tpu.matmul %42, %44, %cst_30 {dimension_numbers = #tpu.dot_dimension_numbers<[1], [0], [0], [1], [0, 0, 1, 1], [], []>} : vector<16x128xbf16>, vector<128x128xbf16>, vector<16x128xf32> -> vector<16x128xf32>
    %46 = arith.addf %39, %45 : vector<16x128xf32>
    %c0_31 = arith.constant 0 : index
    %c0_32 = arith.constant 0 : index
    %c0_33 = arith.constant 0 : index
    %47 = vector.load %arg9[%c0_31, %c0_32, %c0_33] : memref<1x1x128xf32, #tpu.memory_space<vmem>>, vector<1x1x128xf32>
    %48 = vector.shape_cast %47 : vector<1x1x128xf32> to vector<1x128xf32>
    %49 = vector.broadcast %48 : vector<1x128xf32> to vector<16x128xf32>
    %50 = arith.addf %46, %49 : vector<16x128xf32>
    %c0_34 = arith.constant 0 : index
    %c0_35 = arith.constant 0 : index
    %c0_36 = arith.constant 0 : index
    %51 = vector.load %arg10[%c0_34, %c0_35, %c0_36] : memref<1x16x128xf32, #tpu.memory_space<vmem>>, vector<1x16x128xf32>
    %52 = vector.shape_cast %51 : vector<1x16x128xf32> to vector<16x128xf32>
    %53 = vector.shape_cast %50 : vector<16x128xf32> to vector<1x16x128xf32>
    tpu.vector_store %arg10[%c0_34, %c0_35, %c0_36], %53 {strides = array<i32>} : memref<1x16x128xf32, #tpu.memory_space<vmem>>, vector<1x16x128xf32>,
    return
  }
  func.func @transform_0(%arg0: i32) -> (i32, i32, i32) {
    %c0_i32 = arith.constant 0 : i32
    %c0_i32_0 = arith.constant 0 : i32
    %c0_i32_1 = arith.constant 0 : i32
    return %arg0, %c0_i32, %c0_i32_0 : i32, i32, i32
  }
  func.func @transform_1(%arg0: i32) -> (i32, i32, i32) {
    %c0_i32 = arith.constant 0 : i32
    %c0_i32_0 = arith.constant 0 : i32
    %c0_i32_1 = arith.constant 0 : i32
    return %arg0, %c0_i32, %c0_i32_0 : i32, i32, i32
  }
  func.func @transform_2(%arg0: i32) -> (i32, i32, i32) {
    %c0_i32 = arith.constant 0 : i32
    %c0_i32_0 = arith.constant 0 : i32
    %c0_i32_1 = arith.constant 0 : i32
    return %arg0, %c0_i32, %c0_i32_0 : i32, i32, i32
  }
  func.func @transform_3(%arg0: i32) -> (i32, i32, i32) {
    %c0_i32 = arith.constant 0 : i32
    %c0_i32_0 = arith.constant 0 : i32
    %c0_i32_1 = arith.constant 0 : i32
    return %arg0, %c0_i32, %c0_i32_0 : i32, i32, i32
  }
  func.func @transform_4(%arg0: i32) -> (i32, i32, i32) {
    %c0_i32 = arith.constant 0 : i32
    %c0_i32_0 = arith.constant 0 : i32
    %c0_i32_1 = arith.constant 0 : i32
    return %arg0, %c0_i32, %c0_i32_0 : i32, i32, i32
  }
  func.func @transform_5(%arg0: i32) -> (i32, i32, i32) {
    %c0_i32 = arith.constant 0 : i32
    %c0_i32_0 = arith.constant 0 : i32
    %c0_i32_1 = arith.constant 0 : i32
    return %arg0, %c0_i32, %c0_i32_0 : i32, i32, i32
  }
  func.func @transform_6(%arg0: i32) -> (i32, i32, i32) {
    %c0_i32 = arith.constant 0 : i32
    %c0_i32_0 = arith.constant 0 : i32
    %c0_i32_1 = arith.constant 0 : i32
    return %arg0, %c0_i32, %c0_i32_0 : i32, i32, i32
  }
  func.func @transform_7(%arg0: i32) -> (i32, i32, i32) {
    %c0_i32 = arith.constant 0 : i32
    %c0_i32_0 = arith.constant 0 : i32
    %c0_i32_1 = arith.constant 0 : i32
    return %arg0, %c0_i32, %c0_i32_0 : i32, i32, i32
  }
  func.func @transform_8(%arg0: i32) -> (i32, i32, i32) {
    %c0_i32 = arith.constant 0 : i32
    %c0_i32_0 = arith.constant 0 : i32
    %c0_i32_1 = arith.constant 0 : i32
    return %arg0, %c0_i32, %c0_i32_0 : i32, i32, i32
  }
  func.func @transform_9(%arg0: i32) -> (i32, i32, i32) {
    %c0_i32 = arith.constant 0 : i32
    %c0_i32_0 = arith.constant 0 : i32
    %c0_i32_1 = arith.constant 0 : i32
    return %arg0, %c0_i32, %c0_i32_0 : i32, i32, i32
  }
}

</mosaic_0001>

<llo_original>
// kernel: graphconv_forward.1
$region0: #{graphconv_forward.1}
  #allocation0 [shape = 'u32[]', space=smem, size = 0x4, offset = 0x4, fixed_abs, tag = 'smem constant byte address 0x4 - core index']
  #allocation1 [shape = 'u32[144,128]{1,0:T(1,128)}', space=vmem, size = 0x12000, scoped, tag = 'internal scratch']
  %s0 = inlined_call_operand.vmem [shape: bf16[2,16,2048], index: 0, kind: input, shape index: {}]
  %s1 = inlined_call_operand.vmem [shape: f32[2,16,16], index: 1, kind: input, shape index: {}]
  %s2 = inlined_call_operand.vmem [shape: f32[2,16,16], index: 2, kind: input, shape index: {}]
  %s3 = inlined_call_operand.vmem [shape: bf16[2,2048,512], index: 3, kind: input, shape index: {}]
  %s4 = inlined_call_operand.vmem [shape: f32[2,1,128], index: 4, kind: input, shape index: {}]
  %s5 = inlined_call_operand.vmem [shape: bf16[2,128,512], index: 5, kind: input, shape index: {}]
  %s6 = inlined_call_operand.vmem [shape: f32[2,1,128], index: 6, kind: input, shape index: {}]
  %s7 = inlined_call_operand.vmem [shape: bf16[2,128,128], index: 7, kind: input, shape index: {}]
  %s8 = inlined_call_operand.vmem [shape: f32[2,1,128], index: 8, kind: input, shape index: {}]
  %s9 = inlined_call_operand.vmem [shape: f32[2,16,128], index: 9, kind: output, shape index: {}]
  %s10 = sld [smem:[#allocation0]]
  $region69: #{graphconv_forward.1} parent=0
    _
  %s12 = ssub.s32 1, %s10
  %s13 = scalar_select 0, %s12, %s10
  loop: start=0, step=1, limit=4
  $region2: #{graphconv_forward.1} parent=0 // loop_pre_header
    _
  $region3: #{graphconv_forward.1} parent=0 // loop_header
    %s15 = sphi 0, %s19
    %p16 = scmp.ge.s32.totalorder %s15, 4
    %s25 = sphi 0, %s27
    %s28 = sphi 0, %s25
    %s29 = sphi 0, %s28
    %s45 = sphi 0, %s29
    %s51 = sphi 0, %s53
    %s54 = sphi 0, %s51
    %s55 = sphi 0, %s54
    %s71 = sphi 0, %s55
    %s77 = sphi 0, %s79
    %s80 = sphi 0, %s77
    %s81 = sphi 0, %s80
    %s97 = sphi 0, %s81
    %s103 = sphi 0, %s105
    %s106 = sphi 0, %s103
    %s107 = sphi 0, %s106
    %s123 = sphi 0, %s107
    %s129 = sphi 0, %s131
    %s132 = sphi 0, %s129
    %s133 = sphi 0, %s132
    %s149 = sphi 0, %s133
    %s155 = sphi 0, %s157
    %s158 = sphi 0, %s155
    %s159 = sphi 0, %s158
    %s175 = sphi 0, %s159
    %s181 = sphi 0, %s183
    %s184 = sphi 0, %s181
    %s185 = sphi 0, %s184
    %s201 = sphi 0, %s185
    %s207 = sphi 0, %s209
    %s210 = sphi 0, %s207
    %s211 = sphi 0, %s210
    %s227 = sphi 0, %s211
    %s233 = sphi 0, %s235
    %s236 = sphi 0, %s233
    %s237 = sphi 0, %s236
    %s253 = sphi 0, %s237
    %s259 = sphi 0, %s261
    %s262 = sphi 0, %s259
    %s263 = sphi 0, %s262
    %s279 = sphi 0, %s263
  $region4: #{graphconv_forward.1} parent=0 // loop_header_branch
    %18 = sbr.rel (%p16) target = $region8
  $region5: #{graphconv_forward.1} parent=0 // loop_body
    %s20 = ssub.s32 %s15, 1
    %s21 = ssub.s32 %s15, 2
    %s22 = sadd.s32 %s15, 1
    %s23 = ssub.s32 %s15, %s22
    %p24 = scmp.eq.s32.totalorder %s23, 0
    %s26 = sadd.s32 %s25, 1
    %s27 = scalar_select %p24, %s25, %s26
    %p30 = pneg %p24
    %p31 = scmp.eq.s32.totalorder %s15, 1
    %p32 = por %p30, %p31
    %p33 = scmp.ne.s32.totalorder %s25, %s28
    %p34 = scmp.eq.s32.totalorder %s15, 0
    %p35 = por %p33, %p34
    %p36 = scmp.ne.s32.totalorder %s25, %s28
    %p37 = scmp.eq.s32.totalorder %s20, 1
    %p38 = por %p36, %p37
    %p39 = scmp.ne.s32.totalorder %s28, %s29
    %p40 = scmp.eq.s32.totalorder %s20, 0
    %p41 = por %p39, %p40
    %p42 = scmp.ne.s32.totalorder %s28, %s29
    %p43 = scmp.eq.s32.totalorder %s21, 1
    %p44 = por %p42, %p43
    %p46 = scmp.ne.s32.totalorder %s29, %s45
    %p47 = scmp.eq.s32.totalorder %s21, 0
    %p48 = por %p46, %p47
    %s49 = ssub.s32 %s15, %s22
    %p50 = scmp.eq.s32.totalorder %s49, 0
    %s52 = sadd.s32 %s51, 1
    %s53 = scalar_select %p50, %s51, %s52
    %p56 = pneg %p50
    %p57 = scmp.eq.s32.totalorder %s15, 1
    %p58 = por %p56, %p57
    %p59 = scmp.ne.s32.totalorder %s51, %s54
    %p60 = scmp.eq.s32.totalorder %s15, 0
    %p61 = por %p59, %p60
    %p62 = scmp.ne.s32.totalorder %s51, %s54
    %p63 = scmp.eq.s32.totalorder %s20, 1
    %p64 = por %p62, %p63
    %p65 = scmp.ne.s32.totalorder %s54, %s55
    %p66 = scmp.eq.s32.totalorder %s20, 0
    %p67 = por %p65, %p66
    %p68 = scmp.ne.s32.totalorder %s54, %s55
    %p69 = scmp.eq.s32.totalorder %s21, 1
    %p70 = por %p68, %p69
    %p72 = scmp.ne.s32.totalorder %s55, %s71
    %p73 = scmp.eq.s32.totalorder %s21, 0
    %p74 = por %p72, %p73
    %s75 = ssub.s32 %s15, %s22
    %p76 = scmp.eq.s32.totalorder %s75, 0
    %s78 = sadd.s32 %s77, 1
    %s79 = scalar_select %p76, %s77, %s78
    %p82 = pneg %p76
    %p83 = scmp.eq.s32.totalorder %s15, 1
    %p84 = por %p82, %p83
    %p85 = scmp.ne.s32.totalorder %s77, %s80
    %p86 = scmp.eq.s32.totalorder %s15, 0
    %p87 = por %p85, %p86
    %p88 = scmp.ne.s32.totalorder %s77, %s80
    %p89 = scmp.eq.s32.totalorder %s20, 1
    %p90 = por %p88, %p89
    %p91 = scmp.ne.s32.totalorder %s80, %s81
    %p92 = scmp.eq.s32.totalorder %s20, 0
    %p93 = por %p91, %p92
    %p94 = scmp.ne.s32.totalorder %s80, %s81
    %p95 = scmp.eq.s32.totalorder %s21, 1
    %p96 = por %p94, %p95
    %p98 = scmp.ne.s32.totalorder %s81, %s97
    %p99 = scmp.eq.s32.totalorder %s21, 0
    %p100 = por %p98, %p99
    %s101 = ssub.s32 %s15, %s22
    %p102 = scmp.eq.s32.totalorder %s101, 0
    %s104 = sadd.s32 %s103, 1
    %s105 = scalar_select %p102, %s103, %s104
    %p108 = pneg %p102
    %p109 = scmp.eq.s32.totalorder %s15, 1
    %p110 = por %p108, %p109
    %p111 = scmp.ne.s32.totalorder %s103, %s106
    %p112 = scmp.eq.s32.totalorder %s15, 0
    %p113 = por %p111, %p112
    %p114 = scmp.ne.s32.totalorder %s103, %s106
    %p115 = scmp.eq.s32.totalorder %s20, 1
    %p116 = por %p114, %p115
    %p117 = scmp.ne.s32.totalorder %s106, %s107
    %p118 = scmp.eq.s32.totalorder %s20, 0
    %p119 = por %p117, %p118
    %p120 = scmp.ne.s32.totalorder %s106, %s107
    %p121 = scmp.eq.s32.totalorder %s21, 1
    %p122 = por %p120, %p121
    %p124 = scmp.ne.s32.totalorder %s107, %s123
    %p125 = scmp.eq.s32.totalorder %s21, 0
    %p126 = por %p124, %p125
    %s127 = ssub.s32 %s15, %s22
    %p128 = scmp.eq.s32.totalorder %s127, 0
    %s130 = sadd.s32 %s129, 1
    %s131 = scalar_select %p128, %s129, %s130
    %p134 = pneg %p128
    %p135 = scmp.eq.s32.totalorder %s15, 1
    %p136 = por %p134, %p135
    %p137 = scmp.ne.s32.totalorder %s129, %s132
    %p138 = scmp.eq.s32.totalorder %s15, 0
    %p139 = por %p137, %p138
    %p140 = scmp.ne.s32.totalorder %s129, %s132
    %p141 = scmp.eq.s32.totalorder %s20, 1
    %p142 = por %p140, %p141
    %p143 = scmp.ne.s32.totalorder %s132, %s133
    %p144 = scmp.eq.s32.totalorder %s20, 0
    %p145 = por %p143, %p144
    %p146 = scmp.ne.s32.totalorder %s132, %s133
    %p147 = scmp.eq.s32.totalorder %s21, 1
    %p148 = por %p146, %p147
    %p150 = scmp.ne.s32.totalorder %s133, %s149
    %p151 = scmp.eq.s32.totalorder %s21, 0
    %p152 = por %p150, %p151
    %s153 = ssub.s32 %s15, %s22
    %p154 = scmp.eq.s32.totalorder %s153, 0
    %s156 = sadd.s32 %s155, 1
    %s157 = scalar_select %p154, %s155, %s156
    %p160 = pneg %p154
    %p161 = scmp.eq.s32.totalorder %s15, 1
    %p162 = por %p160, %p161
    %p163 = scmp.ne.s32.totalorder %s155, %s158
    %p164 = scmp.eq.s32.totalorder %s15, 0
    %p165 = por %p163, %p164
    %p166 = scmp.ne.s32.totalorder %s155, %s158
    %p167 = scmp.eq.s32.totalorder %s20, 1
    %p168 = por %p166, %p167
    %p169 = scmp.ne.s32.totalorder %s158, %s159
    %p170 = scmp.eq.s32.totalorder %s20, 0
    %p171 = por %p169, %p170
    %p172 = scmp.ne.s32.totalorder %s158, %s159
    %p173 = scmp.eq.s32.totalorder %s21, 1
    %p174 = por %p172, %p173
    %p176 = scmp.ne.s32.totalorder %s159, %s175
    %p177 = scmp.eq.s32.totalorder %s21, 0
    %p178 = por %p176, %p177
    %s179 = ssub.s32 %s15, %s22
    %p180 = scmp.eq.s32.totalorder %s179, 0
    %s182 = sadd.s32 %s181, 1
    %s183 = scalar_select %p180, %s181, %s182
    %p186 = pneg %p180
    %p187 = scmp.eq.s32.totalorder %s15, 1
    %p188 = por %p186, %p187
    %p189 = scmp.ne.s32.totalorder %s181, %s184
    %p190 = scmp.eq.s32.totalorder %s15, 0
    %p191 = por %p189, %p190
    %p192 = scmp.ne.s32.totalorder %s181, %s184
    %p193 = scmp.eq.s32.totalorder %s20, 1
    %p194 = por %p192, %p193
    %p195 = scmp.ne.s32.totalorder %s184, %s185
    %p196 = scmp.eq.s32.totalorder %s20, 0
    %p197 = por %p195, %p196
    %p198 = scmp.ne.s32.totalorder %s184, %s185
    %p199 = scmp.eq.s32.totalorder %s21, 1
    %p200 = por %p198, %p199
    %p202 = scmp.ne.s32.totalorder %s185, %s201
    %p203 = scmp.eq.s32.totalorder %s21, 0
    %p204 = por %p202, %p203
    %s205 = ssub.s32 %s15, %s22
    %p206 = scmp.eq.s32.totalorder %s205, 0
    %s208 = sadd.s32 %s207, 1
    %s209 = scalar_select %p206, %s207, %s208
    %p212 = pneg %p206
    %p213 = scmp.eq.s32.totalorder %s15, 1
    %p214 = por %p212, %p213
    %p215 = scmp.ne.s32.totalorder %s207, %s210
    %p216 = scmp.eq.s32.totalorder %s15, 0
    %p217 = por %p215, %p216
    %p218 = scmp.ne.s32.totalorder %s207, %s210
    %p219 = scmp.eq.s32.totalorder %s20, 1
    %p220 = por %p218, %p219
    %p221 = scmp.ne.s32.totalorder %s210, %s211
    %p222 = scmp.eq.s32.totalorder %s20, 0
    %p223 = por %p221, %p222
    %p224 = scmp.ne.s32.totalorder %s210, %s211
    %p225 = scmp.eq.s32.totalorder %s21, 1
    %p226 = por %p224, %p225
    %p228 = scmp.ne.s32.totalorder %s211, %s227
    %p229 = scmp.eq.s32.totalorder %s21, 0
    %p230 = por %p228, %p229
    %s231 = ssub.s32 %s15, %s22
    %p232 = scmp.eq.s32.totalorder %s231, 0
    %s234 = sadd.s32 %s233, 1
    %s235 = scalar_select %p232, %s233, %s234
    %p238 = pneg %p232
    %p239 = scmp.eq.s32.totalorder %s15, 1
    %p240 = por %p238, %p239
    %p241 = scmp.ne.s32.totalorder %s233, %s236
    %p242 = scmp.eq.s32.totalorder %s15, 0
    %p243 = por %p241, %p242
    %p244 = scmp.ne.s32.totalorder %s233, %s236
    %p245 = scmp.eq.s32.totalorder %s20, 1
    %p246 = por %p244, %p245
    %p247 = scmp.ne.s32.totalorder %s236, %s237
    %p248 = scmp.eq.s32.totalorder %s20, 0
    %p249 = por %p247, %p248
    %p250 = scmp.ne.s32.totalorder %s236, %s237
    %p251 = scmp.eq.s32.totalorder %s21, 1
    %p252 = por %p250, %p251
    %p254 = scmp.ne.s32.totalorder %s237, %s253
    %p255 = scmp.eq.s32.totalorder %s21, 0
    %p256 = por %p254, %p255
    %s257 = ssub.s32 %s15, %s22
    %p258 = scmp.eq.s32.totalorder %s257, 0
    %s260 = sadd.s32 %s259, 1
    %s261 = scalar_select %p258, %s259, %s260
    %p264 = pneg %p258
    %p265 = scmp.eq.s32.totalorder %s15, 1
    %p266 = por %p264, %p265
    %p267 = scmp.ne.s32.totalorder %s259, %s262
    %p268 = scmp.eq.s32.totalorder %s15, 0
    %p269 = por %p267, %p268
    %p270 = scmp.ne.s32.totalorder %s259, %s262
    %p271 = scmp.eq.s32.totalorder %s20, 1
    %p272 = por %p270, %p271
    %p273 = scmp.ne.s32.totalorder %s262, %s263
    %p274 = scmp.eq.s32.totalorder %s20, 0
    %p275 = por %p273, %p274
    %p276 = scmp.ne.s32.totalorder %s262, %s263
    %p277 = scmp.eq.s32.totalorder %s21, 1
    %p278 = por %p276, %p277
    %p280 = scmp.ne.s32.totalorder %s263, %s279
    %p281 = scmp.eq.s32.totalorder %s21, 0
    %p282 = por %p280, %p281
    %p283 = scmp.le.s32.totalorder 1, %s15
    %p284 = scmp.lt.s32.totalorder %s15, 3
    %p285 = pnand %p283, %p284
    %p286 = pneg %p285
    // Predicated region
    $region9: #{graphconv_forward.1} parent=5 // pred_check
      _
    $region10: #{graphconv_forward.1} parent=5 // pred_check_branch
      %288 = sbr.rel (%p285) target = $region12
    $region11: #{graphconv_forward.1} parent=5 // pred_region
      %s289 = ssub.s32 %s15, 1
    $region12: #{graphconv_forward.1} parent=5 // pred_fallthru
      _
    %p290 = scmp.lt.s32.totalorder %s15, 2
    // Predicated region
    $region13: #{graphconv_forward.1} parent=5 // pred_check
      %p291 = pneg %p290
    $region14: #{graphconv_forward.1} parent=5 // pred_check_branch
      %293 = sbr.rel (%p291) target = $region16
    $region15: #{graphconv_forward.1} parent=5 // pred_region
      // Predicated region
      $region17: #{graphconv_forward.1} parent=15 // pred_check
        %p294 = pneg %p35
      $region18: #{graphconv_forward.1} parent=15 // pred_check_branch
        %296 = sbr.rel (%p294) target = $region20
      $region19: #{graphconv_forward.1} parent=15 // pred_region
        %p297 = scmp.lt.s32.totalorder %s15, 1
        %s298 = scalar_select %p297, %s15, 1
        %s299 = smul.addr %s298, 32
        %s300 = smul.addr %s299, 4
        %s301 = scalar_lea.vmem %s0, %s300
      $region20: #{graphconv_forward.1} parent=15 // pred_fallthru
        _
      // Predicated region
      $region21: #{graphconv_forward.1} parent=15 // pred_check
        %p302 = pneg %p61
      $region22: #{graphconv_forward.1} parent=15 // pred_check_branch
        %304 = sbr.rel (%p302) target = $region24
      $region23: #{graphconv_forward.1} parent=15 // pred_region
        %p305 = scmp.lt.s32.totalorder %s15, 1
        %s306 = scalar_select %p305, %s15, 1
        %s307 = smul.addr %s306, 2
        %s308 = smul.addr %s307, 8
        %s309 = scalar_lea.vmem %s1, %s308
      $region24: #{graphconv_forward.1} parent=15 // pred_fallthru
        _
      // Predicated region
      $region25: #{graphconv_forward.1} parent=15 // pred_check
        %p310 = pneg %p87
      $region26: #{graphconv_forward.1} parent=15 // pred_check_branch
        %312 = sbr.rel (%p310) target = $region28
      $region27: #{graphconv_forward.1} parent=15 // pred_region
        %p313 = scmp.lt.s32.totalorder %s15, 1
        %s314 = scalar_select %p313, %s15, 1
        %s315 = smul.addr %s314, 2
        %s316 = smul.addr %s315, 8
        %s317 = scalar_lea.vmem %s2, %s316
      $region28: #{graphconv_forward.1} parent=15 // pred_fallthru
        _
      // Predicated region
      $region29: #{graphconv_forward.1} parent=15 // pred_check
        %p318 = pneg %p113
      $region30: #{graphconv_forward.1} parent=15 // pred_check_branch
        %320 = sbr.rel (%p318) target = $region32
      $region31: #{graphconv_forward.1} parent=15 // pred_region
        %p321 = scmp.lt.s32.totalorder %s15, 1
        %s322 = scalar_select %p321, %s15, 1
        %s323 = smul.addr %s322, 1024
        %s324 = smul.addr %s323, 4
        %s325 = scalar_lea.vmem %s3, %s324
      $region32: #{graphconv_forward.1} parent=15 // pred_fallthru
        _
      // Predicated region
      $region33: #{graphconv_forward.1} parent=15 // pred_check
        %p326 = pneg %p139
      $region34: #{graphconv_forward.1} parent=15 // pred_check_branch
        %328 = sbr.rel (%p326) target = $region36
      $region35: #{graphconv_forward.1} parent=15 // pred_region
        %p329 = scmp.lt.s32.totalorder %s15, 1
        %s330 = scalar_select %p329, %s15, 1
        %s331 = scalar_lea.vmem %s4, %s330
      $region36: #{graphconv_forward.1} parent=15 // pred_fallthru
        _
      // Predicated region
      $region37: #{graphconv_forward.1} parent=15 // pred_check
        %p332 = pneg %p165
      $region38: #{graphconv_forward.1} parent=15 // pred_check_branch
        %334 = sbr.rel (%p332) target = $region40
      $region39: #{graphconv_forward.1} parent=15 // pred_region
        %p335 = scmp.lt.s32.totalorder %s15, 1
        %s336 = scalar_select %p335, %s15, 1
        %s337 = smul.addr %s336, 64
        %s338 = smul.addr %s337, 4
        %s339 = scalar_lea.vmem %s5, %s338
      $region40: #{graphconv_forward.1} parent=15 // pred_fallthru
        _
      // Predicated region
      $region41: #{graphconv_forward.1} parent=15 // pred_check
        %p340 = pneg %p191
      $region42: #{graphconv_forward.1} parent=15 // pred_check_branch
        %342 = sbr.rel (%p340) target = $region44
      $region43: #{graphconv_forward.1} parent=15 // pred_region
        %p343 = scmp.lt.s32.totalorder %s15, 1
        %s344 = scalar_select %p343, %s15, 1
        %s345 = scalar_lea.vmem %s6, %s344
      $region44: #{graphconv_forward.1} parent=15 // pred_fallthru
        _
      // Predicated region
      $region45: #{graphconv_forward.1} parent=15 // pred_check
        %p346 = pneg %p217
      $region46: #{graphconv_forward.1} parent=15 // pred_check_branch
        %348 = sbr.rel (%p346) target = $region48
      $region47: #{graphconv_forward.1} parent=15 // pred_region
        %p349 = scmp.lt.s32.totalorder %s15, 1
        %s350 = scalar_select %p349, %s15, 1
        %s351 = smul.addr %s350, 16
        %s352 = smul.addr %s351, 4
        %s353 = scalar_lea.vmem %s7, %s352
      $region48: #{graphconv_forward.1} parent=15 // pred_fallthru
        _
      // Predicated region
      $region49: #{graphconv_forward.1} parent=15 // pred_check
        %p354 = pneg %p243
      $region50: #{graphconv_forward.1} parent=15 // pred_check_branch
        %356 = sbr.rel (%p354) target = $region52
      $region51: #{graphconv_forward.1} parent=15 // pred_region
        %p357 = scmp.lt.s32.totalorder %s15, 1
        %s358 = scalar_select %p357, %s15, 1
        %s359 = scalar_lea.vmem %s8, %s358
      $region52: #{graphconv_forward.1} parent=15 // pred_fallthru
        _
    $region16: #{graphconv_forward.1} parent=5 // pred_fallthru
      _
    %p360 = scmp.le.s32.totalorder 1, %s15
    %p361 = scmp.lt.s32.totalorder %s15, 3
    %p362 = pnand %p360, %p361
    %p363 = pneg %p362
    // Predicated region
    $region53: #{graphconv_forward.1} parent=5 // pred_check
      _
    $region54: #{graphconv_forward.1} parent=5 // pred_check_branch
      %365 = sbr.rel (%p362) target = $region56
    $region55: #{graphconv_forward.1} parent=5 // pred_region
      %s366 = ssub.s32 %s15, 1
      %p367 = scmp.lt.s32.totalorder %s20, 1
      %s368 = scalar_select %p367, %s20, 1
      %s369 = smul.addr %s368, 32
      %s370 = smul.addr %s369, 4
      %s371 = scalar_lea.vmem %s0, %s370
      %p372 = pneg %p41
      %p373 = pneg %p38
      %p374 = scmp.lt.s32.totalorder %s20, 1
      %s375 = scalar_select %p374, %s20, 1
      %s376 = smul.addr %s375, 2
      %s377 = smul.addr %s376, 8
      %s378 = scalar_lea.vmem %s1, %s377
      %p379 = pneg %p67
      %p380 = pneg %p64
      %p381 = scmp.lt.s32.totalorder %s20, 1
      %s382 = scalar_select %p381, %s20, 1
      %s383 = smul.addr %s382, 2
      %s384 = smul.addr %s383, 8
      %s385 = scalar_lea.vmem %s2, %s384
      %p386 = pneg %p93
      %p387 = pneg %p90
      %p388 = scmp.lt.s32.totalorder %s20, 1
      %s389 = scalar_select %p388, %s20, 1
      %s390 = smul.addr %s389, 1024
      %s391 = smul.addr %s390, 4
      %s392 = scalar_lea.vmem %s3, %s391
      %p393 = pneg %p119
      %p394 = pneg %p116
      %p395 = scmp.lt.s32.totalorder %s20, 1
      %s396 = scalar_select %p395, %s20, 1
      %s397 = scalar_lea.vmem %s4, %s396
      %p398 = pneg %p145
      %p399 = pneg %p142
      %p400 = scmp.lt.s32.totalorder %s20, 1
      %s401 = scalar_select %p400, %s20, 1
      %s402 = smul.addr %s401, 64
      %s403 = smul.addr %s402, 4
      %s404 = scalar_lea.vmem %s5, %s403
      %p405 = pneg %p171
      %p406 = pneg %p168
      %p407 = scmp.lt.s32.totalorder %s20, 1
      %s408 = scalar_select %p407, %s20, 1
      %s409 = scalar_lea.vmem %s6, %s408
      %p410 = pneg %p197
      %p411 = pneg %p194
      %p412 = scmp.lt.s32.totalorder %s20, 1
      %s413 = scalar_select %p412, %s20, 1
      %s414 = smul.addr %s413, 16
      %s415 = smul.addr %s414, 4
      %s416 = scalar_lea.vmem %s7, %s415
      %p417 = pneg %p223
      %p418 = pneg %p220
      %p419 = scmp.lt.s32.totalorder %s20, 1
      %s420 = scalar_select %p419, %s20, 1
      %s421 = scalar_lea.vmem %s8, %s420
      %p422 = pneg %p249
      %p423 = pneg %p246
      %p424 = pneg %p275
      %p425 = pneg %p272
      %p426 = scmp.lt.s32.totalorder %s20, 1
      %s427 = scalar_select %p426, %s20, 1
      %s428 = smul.addr %s427, 2
      %s429 = smul.addr %s428, 8
      %s430 = scalar_lea.vmem %s9, %s429
      %p431 = scmp.lt.s32.totalorder %s20, 1
      %s432 = scalar_select %p431, %s20, 1
      %s433 = smul.addr %s432, 32
      %s434 = smul.addr %s433, 4
      %s435 = scalar_lea.vmem %s0, %s434
      %p436 = scmp.lt.s32.totalorder %s20, 1
      %s437 = scalar_select %p436, %s20, 1
      %s438 = smul.addr %s437, 2
      %s439 = smul.addr %s438, 8
      %s440 = scalar_lea.vmem %s1, %s439
      %p441 = scmp.lt.s32.totalorder %s20, 1
      %s442 = scalar_select %p441, %s20, 1
      %s443 = smul.addr %s442, 2
      %s444 = smul.addr %s443, 8
      %s445 = scalar_lea.vmem %s2, %s444
      %p446 = scmp.lt.s32.totalorder %s20, 1
      %s447 = scalar_select %p446, %s20, 1
      %s448 = smul.addr %s447, 1024
      %s449 = smul.addr %s448, 4
      %s450 = scalar_lea.vmem %s3, %s449
      %p451 = scmp.lt.s32.totalorder %s20, 1
      %s452 = scalar_select %p451, %s20, 1
      %s453 = scalar_lea.vmem %s4, %s452
      %p454 = scmp.lt.s32.totalorder %s20, 1
      %s455 = scalar_select %p454, %s20, 1
      %s456 = smul.addr %s455, 64
      %s457 = smul.addr %s456, 4
      %s458 = scalar_lea.vmem %s5, %s457
      %p459 = scmp.lt.s32.totalorder %s20, 1
      %s460 = scalar_select %p459, %s20, 1
      %s461 = scalar_lea.vmem %s6, %s460
      %p462 = scmp.lt.s32.totalorder %s20, 1
      %s463 = scalar_select %p462, %s20, 1
      %s464 = smul.addr %s463, 16
      %s465 = smul.addr %s464, 4
      %s466 = scalar_lea.vmem %s7, %s465
      %p467 = scmp.lt.s32.totalorder %s20, 1
      %s468 = scalar_select %p467, %s20, 1
      %s469 = scalar_lea.vmem %s8, %s468
      %p470 = scmp.lt.s32.totalorder %s20, 1
      %s471 = scalar_select %p470, %s20, 1
      %s472 = smul.addr %s471, 2
      %s473 = smul.addr %s472, 8
      %s474 = scalar_lea.vmem %s9, %s473
      %v476 = vld [vmem:[%s440] sm:$0xff]
      %v477 = vld [vmem:[%s440 + $0x8] sm:$0xff]
      %v478 = vld [vmem:[%s445] sm:$0xff]
      %v479 = vld [vmem:[%s445 + $0x8] sm:$0xff]
      %v480 = vld [vmem:[%s435] sm:$0xff]
      %v481 = vld [vmem:[%s435 + $0x8] sm:$0xff]
      %v482 = vld [vmem:[%s435 + $0x10] sm:$0xff]
      %v483 = vld [vmem:[%s435 + $0x18] sm:$0xff]
      %v484 = vld [vmem:[%s435 + $0x20] sm:$0xff]
      %v485 = vld [vmem:[%s435 + $0x28] sm:$0xff]
      %v486 = vld [vmem:[%s435 + $0x30] sm:$0xff]
      %v487 = vld [vmem:[%s435 + $0x38] sm:$0xff]
      %v488 = vld [vmem:[%s435 + $0x40] sm:$0xff]
      %v489 = vld [vmem:[%s435 + $0x48] sm:$0xff]
      %v490 = vld [vmem:[%s435 + $0x50] sm:$0xff]
      %v491 = vld [vmem:[%s435 + $0x58] sm:$0xff]
      %v492 = vld [vmem:[%s435 + $0x60] sm:$0xff]
      %v493 = vld [vmem:[%s435 + $0x68] sm:$0xff]
      %v494 = vld [vmem:[%s435 + $0x70] sm:$0xff]
      %v495 = vld [vmem:[%s435 + $0x78] sm:$0xff]
      %v496 = vld [vmem:[%s450] sm:$0xff]
      %v497 = vld [vmem:[%s450 + $0x8] sm:$0xff]
      %v498 = vld [vmem:[%s450 + $0x10] sm:$0xff]
      %v499 = vld [vmem:[%s450 + $0x18] sm:$0xff]
      %v500 = vld [vmem:[%s450 + $0x20] sm:$0xff]
      %v501 = vld [vmem:[%s450 + $0x28] sm:$0xff]
      %v502 = vld [vmem:[%s450 + $0x30] sm:$0xff]
      %v503 = vld [vmem:[%s450 + $0x38] sm:$0xff]
      %v504 = vld [vmem:[%s450 + $0x40] sm:$0xff]
      %v505 = vld [vmem:[%s450 + $0x48] sm:$0xff]
      %v506 = vld [vmem:[%s450 + $0x50] sm:$0xff]
      %v507 = vld [vmem:[%s450 + $0x58] sm:$0xff]
      %v508 = vld [vmem:[%s450 + $0x60] sm:$0xff]
      %v509 = vld [vmem:[%s450 + $0x68] sm:$0xff]
      %v510 = vld [vmem:[%s450 + $0x70] sm:$0xff]
      %v511 = vld [vmem:[%s450 + $0x78] sm:$0xff]
      %v512 = vld [vmem:[%s450 + $0x80] sm:$0xff]
      %v513 = vld [vmem:[%s450 + $0x88] sm:$0xff]
      %v514 = vld [vmem:[%s450 + $0x90] sm:$0xff]
      %v515 = vld [vmem:[%s450 + $0x98] sm:$0xff]
      %v516 = vld [vmem:[%s450 + $0xa0] sm:$0xff]
      %v517 = vld [vmem:[%s450 + $0xa8] sm:$0xff]
      %v518 = vld [vmem:[%s450 + $0xb0] sm:$0xff]
      %v519 = vld [vmem:[%s450 + $0xb8] sm:$0xff]
      %v520 = vld [vmem:[%s450 + $0xc0] sm:$0xff]
      %v521 = vld [vmem:[%s450 + $0xc8] sm:$0xff]
      %v522 = vld [vmem:[%s450 + $0xd0] sm:$0xff]
      %v523 = vld [vmem:[%s450 + $0xd8] sm:$0xff]
      %v524 = vld [vmem:[%s450 + $0xe0] sm:$0xff]
      %v525 = vld [vmem:[%s450 + $0xe8] sm:$0xff]
      %v526 = vld [vmem:[%s450 + $0xf0] sm:$0xff]
      %v527 = vld [vmem:[%s450 + $0xf8] sm:$0xff]
      %v528 = vld [vmem:[%s450 + $0x100] sm:$0xff]
      %v529 = vld [vmem:[%s450 + $0x108] sm:$0xff]
      %v530 = vld [vmem:[%s450 + $0x110] sm:$0xff]
      %v531 = vld [vmem:[%s450 + $0x118] sm:$0xff]
      %v532 = vld [vmem:[%s450 + $0x120] sm:$0xff]
      %v533 = vld [vmem:[%s450 + $0x128] sm:$0xff]
      %v534 = vld [vmem:[%s450 + $0x130] sm:$0xff]
      %v535 = vld [vmem:[%s450 + $0x138] sm:$0xff]
      %v536 = vld [vmem:[%s450 + $0x140] sm:$0xff]
      %v537 = vld [vmem:[%s450 + $0x148] sm:$0xff]
      %v538 = vld [vmem:[%s450 + $0x150] sm:$0xff]
      %v539 = vld [vmem:[%s450 + $0x158] sm:$0xff]
      %v540 = vld [vmem:[%s450 + $0x160] sm:$0xff]
      %v541 = vld [vmem:[%s450 + $0x168] sm:$0xff]
      %v542 = vld [vmem:[%s450 + $0x170] sm:$0xff]
      %v543 = vld [vmem:[%s450 + $0x178] sm:$0xff]
      %v544 = vld [vmem:[%s450 + $0x180] sm:$0xff]
      %v545 = vld [vmem:[%s450 + $0x188] sm:$0xff]
      %v546 = vld [vmem:[%s450 + $0x190] sm:$0xff]
      %v547 = vld [vmem:[%s450 + $0x198] sm:$0xff]
      %v548 = vld [vmem:[%s450 + $0x1a0] sm:$0xff]
      %v549 = vld [vmem:[%s450 + $0x1a8] sm:$0xff]
      %v550 = vld [vmem:[%s450 + $0x1b0] sm:$0xff]
      %v551 = vld [vmem:[%s450 + $0x1b8] sm:$0xff]
      %v552 = vld [vmem:[%s450 + $0x1c0] sm:$0xff]
      %v553 = vld [vmem:[%s450 + $0x1c8] sm:$0xff]
      %v554 = vld [vmem:[%s450 + $0x1d0] sm:$0xff]
      %v555 = vld [vmem:[%s450 + $0x1d8] sm:$0xff]
      %v556 = vld [vmem:[%s450 + $0x1e0] sm:$0xff]
      %v557 = vld [vmem:[%s450 + $0x1e8] sm:$0xff]
      %v558 = vld [vmem:[%s450 + $0x1f0] sm:$0xff]
      %v559 = vld [vmem:[%s450 + $0x1f8] sm:$0xff]
      %v560 = vld [vmem:[%s450 + $0x200] sm:$0xff]
      %v561 = vld [vmem:[%s450 + $0x208] sm:$0xff]
      %v562 = vld [vmem:[%s450 + $0x210] sm:$0xff]
      %v563 = vld [vmem:[%s450 + $0x218] sm:$0xff]
      %v564 = vld [vmem:[%s450 + $0x220] sm:$0xff]
      %v565 = vld [vmem:[%s450 + $0x228] sm:$0xff]
      %v566 = vld [vmem:[%s450 + $0x230] sm:$0xff]
      %v567 = vld [vmem:[%s450 + $0x238] sm:$0xff]
      %v568 = vld [vmem:[%s450 + $0x240] sm:$0xff]
      %v569 = vld [vmem:[%s450 + $0x248] sm:$0xff]
      %v570 = vld [vmem:[%s450 + $0x250] sm:$0xff]
      %v571 = vld [vmem:[%s450 + $0x258] sm:$0xff]
      %v572 = vld [vmem:[%s450 + $0x260] sm:$0xff]
      %v573 = vld [vmem:[%s450 + $0x268] sm:$0xff]
      %v574 = vld [vmem:[%s450 + $0x270] sm:$0xff]
      %v575 = vld [vmem:[%s450 + $0x278] sm:$0xff]
      %v576 = vld [vmem:[%s450 + $0x280] sm:$0xff]
      %v577 = vld [vmem:[%s450 + $0x288] sm:$0xff]
      %v578 = vld [vmem:[%s450 + $0x290] sm:$0xff]
      %v579 = vld [vmem:[%s450 + $0x298] sm:$0xff]
      %v580 = vld [vmem:[%s450 + $0x2a0] sm:$0xff]
      %v581 = vld [vmem:[%s450 + $0x2a8] sm:$0xff]
      %v582 = vld [vmem:[%s450 + $0x2b0] sm:$0xff]
      %v583 = vld [vmem:[%s450 + $0x2b8] sm:$0xff]
      %v584 = vld [vmem:[%s450 + $0x2c0] sm:$0xff]
      %v585 = vld [vmem:[%s450 + $0x2c8] sm:$0xff]
      %v586 = vld [vmem:[%s450 + $0x2d0] sm:$0xff]
      %v587 = vld [vmem:[%s450 + $0x2d8] sm:$0xff]
      %v588 = vld [vmem:[%s450 + $0x2e0] sm:$0xff]
      %v589 = vld [vmem:[%s450 + $0x2e8] sm:$0xff]
      %v590 = vld [vmem:[%s450 + $0x2f0] sm:$0xff]
      %v591 = vld [vmem:[%s450 + $0x2f8] sm:$0xff]
      %v592 = vld [vmem:[%s450 + $0x300] sm:$0xff]
      %v593 = vld [vmem:[%s450 + $0x308] sm:$0xff]
      %v594 = vld [vmem:[%s450 + $0x310] sm:$0xff]
      %v595 = vld [vmem:[%s450 + $0x318] sm:$0xff]
      %v596 = vld [vmem:[%s450 + $0x320] sm:$0xff]
      %v597 = vld [vmem:[%s450 + $0x328] sm:$0xff]
      %v598 = vld [vmem:[%s450 + $0x330] sm:$0xff]
      %v599 = vld [vmem:[%s450 + $0x338] sm:$0xff]
      %v600 = vld [vmem:[%s450 + $0x340] sm:$0xff]
      %v601 = vld [vmem:[%s450 + $0x348] sm:$0xff]
      %v602 = vld [vmem:[%s450 + $0x350] sm:$0xff]
      %v603 = vld [vmem:[%s450 + $0x358] sm:$0xff]
      %v604 = vld [vmem:[%s450 + $0x360] sm:$0xff]
      %v605 = vld [vmem:[%s450 + $0x368] sm:$0xff]
      %v606 = vld [vmem:[%s450 + $0x370] sm:$0xff]
      %v607 = vld [vmem:[%s450 + $0x378] sm:$0xff]
      %v608 = vld [vmem:[%s450 + $0x380] sm:$0xff]
      %v609 = vld [vmem:[%s450 + $0x388] sm:$0xff]
      %v610 = vld [vmem:[%s450 + $0x390] sm:$0xff]
      %v611 = vld [vmem:[%s450 + $0x398] sm:$0xff]
      %v612 = vld [vmem:[%s450 + $0x3a0] sm:$0xff]
      %v613 = vld [vmem:[%s450 + $0x3a8] sm:$0xff]
      %v614 = vld [vmem:[%s450 + $0x3b0] sm:$0xff]
      %v615 = vld [vmem:[%s450 + $0x3b8] sm:$0xff]
      %v616 = vld [vmem:[%s450 + $0x3c0] sm:$0xff]
      %v617 = vld [vmem:[%s450 + $0x3c8] sm:$0xff]
      %v618 = vld [vmem:[%s450 + $0x3d0] sm:$0xff]
      %v619 = vld [vmem:[%s450 + $0x3d8] sm:$0xff]
      %v620 = vld [vmem:[%s450 + $0x3e0] sm:$0xff]
      %v621 = vld [vmem:[%s450 + $0x3e8] sm:$0xff]
      %v622 = vld [vmem:[%s450 + $0x3f0] sm:$0xff]
      %v623 = vld [vmem:[%s450 + $0x3f8] sm:$0xff]
      %v624 = vld [vmem:[%s450 + $0x400] sm:$0xff]
      %v625 = vld [vmem:[%s450 + $0x408] sm:$0xff]
      %v626 = vld [vmem:[%s450 + $0x410] sm:$0xff]
      %v627 = vld [vmem:[%s450 + $0x418] sm:$0xff]
      %v628 = vld [vmem:[%s450 + $0x420] sm:$0xff]
      %v629 = vld [vmem:[%s450 + $0x428] sm:$0xff]
      %v630 = vld [vmem:[%s450 + $0x430] sm:$0xff]
      %v631 = vld [vmem:[%s450 + $0x438] sm:$0xff]
      %v632 = vld [vmem:[%s450 + $0x440] sm:$0xff]
      %v633 = vld [vmem:[%s450 + $0x448] sm:$0xff]
      %v634 = vld [vmem:[%s450 + $0x450] sm:$0xff]
      %v635 = vld [vmem:[%s450 + $0x458] sm:$0xff]
      %v636 = vld [vmem:[%s450 + $0x460] sm:$0xff]
      %v637 = vld [vmem:[%s450 + $0x468] sm:$0xff]
      %v638 = vld [vmem:[%s450 + $0x470] sm:$0xff]
      %v639 = vld [vmem:[%s450 + $0x478] sm:$0xff]
      %v640 = vld [vmem:[%s450 + $0x480] sm:$0xff]
      %v641 = vld [vmem:[%s450 + $0x488] sm:$0xff]
      %v642 = vld [vmem:[%s450 + $0x490] sm:$0xff]
      %v643 = vld [vmem:[%s450 + $0x498] sm:$0xff]
      %v644 = vld [vmem:[%s450 + $0x4a0] sm:$0xff]
      %v645 = vld [vmem:[%s450 + $0x4a8] sm:$0xff]
      %v646 = vld [vmem:[%s450 + $0x4b0] sm:$0xff]
      %v647 = vld [vmem:[%s450 + $0x4b8] sm:$0xff]
      %v648 = vld [vmem:[%s450 + $0x4c0] sm:$0xff]
      %v649 = vld [vmem:[%s450 + $0x4c8] sm:$0xff]
      %v650 = vld [vmem:[%s450 + $0x4d0] sm:$0xff]
      %v651 = vld [vmem:[%s450 + $0x4d8] sm:$0xff]
      %v652 = vld [vmem:[%s450 + $0x4e0] sm:$0xff]
      %v653 = vld [vmem:[%s450 + $0x4e8] sm:$0xff]
      %v654 = vld [vmem:[%s450 + $0x4f0] sm:$0xff]
      %v655 = vld [vmem:[%s450 + $0x4f8] sm:$0xff]
      %v656 = vld [vmem:[%s450 + $0x500] sm:$0xff]
      %v657 = vld [vmem:[%s450 + $0x508] sm:$0xff]
      %v658 = vld [vmem:[%s450 + $0x510] sm:$0xff]
      %v659 = vld [vmem:[%s450 + $0x518] sm:$0xff]
      %v660 = vld [vmem:[%s450 + $0x520] sm:$0xff]
      %v661 = vld [vmem:[%s450 + $0x528] sm:$0xff]
      %v662 = vld [vmem:[%s450 + $0x530] sm:$0xff]
      %v663 = vld [vmem:[%s450 + $0x538] sm:$0xff]
      %v664 = vld [vmem:[%s450 + $0x540] sm:$0xff]
      %v665 = vld [vmem:[%s450 + $0x548] sm:$0xff]
      %v666 = vld [vmem:[%s450 + $0x550] sm:$0xff]
      %v667 = vld [vmem:[%s450 + $0x558] sm:$0xff]
      %v668 = vld [vmem:[%s450 + $0x560] sm:$0xff]
      %v669 = vld [vmem:[%s450 + $0x568] sm:$0xff]
      %v670 = vld [vmem:[%s450 + $0x570] sm:$0xff]
      %v671 = vld [vmem:[%s450 + $0x578] sm:$0xff]
      %v672 = vld [vmem:[%s450 + $0x580] sm:$0xff]
      %v673 = vld [vmem:[%s450 + $0x588] sm:$0xff]
      %v674 = vld [vmem:[%s450 + $0x590] sm:$0xff]
      %v675 = vld [vmem:[%s450 + $0x598] sm:$0xff]
      %v676 = vld [vmem:[%s450 + $0x5a0] sm:$0xff]
      %v677 = vld [vmem:[%s450 + $0x5a8] sm:$0xff]
      %v678 = vld [vmem:[%s450 + $0x5b0] sm:$0xff]
      %v679 = vld [vmem:[%s450 + $0x5b8] sm:$0xff]
      %v680 = vld [vmem:[%s450 + $0x5c0] sm:$0xff]
      %v681 = vld [vmem:[%s450 + $0x5c8] sm:$0xff]
      %v682 = vld [vmem:[%s450 + $0x5d0] sm:$0xff]
      %v683 = vld [vmem:[%s450 + $0x5d8] sm:$0xff]
      %v684 = vld [vmem:[%s450 + $0x5e0] sm:$0xff]
      %v685 = vld [vmem:[%s450 + $0x5e8] sm:$0xff]
      %v686 = vld [vmem:[%s450 + $0x5f0] sm:$0xff]
      %v687 = vld [vmem:[%s450 + $0x5f8] sm:$0xff]
      %v688 = vld [vmem:[%s450 + $0x600] sm:$0xff]
      %v689 = vld [vmem:[%s450 + $0x608] sm:$0xff]
      %v690 = vld [vmem:[%s450 + $0x610] sm:$0xff]
      %v691 = vld [vmem:[%s450 + $0x618] sm:$0xff]
      %v692 = vld [vmem:[%s450 + $0x620] sm:$0xff]
      %v693 = vld [vmem:[%s450 + $0x628] sm:$0xff]
      %v694 = vld [vmem:[%s450 + $0x630] sm:$0xff]
      %v695 = vld [vmem:[%s450 + $0x638] sm:$0xff]
      %v696 = vld [vmem:[%s450 + $0x640] sm:$0xff]
      %v697 = vld [vmem:[%s450 + $0x648] sm:$0xff]
      %v698 = vld [vmem:[%s450 + $0x650] sm:$0xff]
      %v699 = vld [vmem:[%s450 + $0x658] sm:$0xff]
      %v700 = vld [vmem:[%s450 + $0x660] sm:$0xff]
      %v701 = vld [vmem:[%s450 + $0x668] sm:$0xff]
      %v702 = vld [vmem:[%s450 + $0x670] sm:$0xff]
      %v703 = vld [vmem:[%s450 + $0x678] sm:$0xff]
      %v704 = vld [vmem:[%s450 + $0x680] sm:$0xff]
      %v705 = vld [vmem:[%s450 + $0x688] sm:$0xff]
      %v706 = vld [vmem:[%s450 + $0x690] sm:$0xff]
      %v707 = vld [vmem:[%s450 + $0x698] sm:$0xff]
      %v708 = vld [vmem:[%s450 + $0x6a0] sm:$0xff]
      %v709 = vld [vmem:[%s450 + $0x6a8] sm:$0xff]
      %v710 = vld [vmem:[%s450 + $0x6b0] sm:$0xff]
      %v711 = vld [vmem:[%s450 + $0x6b8] sm:$0xff]
      %v712 = vld [vmem:[%s450 + $0x6c0] sm:$0xff]
      %v713 = vld [vmem:[%s450 + $0x6c8] sm:$0xff]
      %v714 = vld [vmem:[%s450 + $0x6d0] sm:$0xff]
      %v715 = vld [vmem:[%s450 + $0x6d8] sm:$0xff]
      %v716 = vld [vmem:[%s450 + $0x6e0] sm:$0xff]
      %v717 = vld [vmem:[%s450 + $0x6e8] sm:$0xff]
      %v718 = vld [vmem:[%s450 + $0x6f0] sm:$0xff]
      %v719 = vld [vmem:[%s450 + $0x6f8] sm:$0xff]
      %v720 = vld [vmem:[%s450 + $0x700] sm:$0xff]
      %v721 = vld [vmem:[%s450 + $0x708] sm:$0xff]
      %v722 = vld [vmem:[%s450 + $0x710] sm:$0xff]
      %v723 = vld [vmem:[%s450 + $0x718] sm:$0xff]
      %v724 = vld [vmem:[%s450 + $0x720] sm:$0xff]
      %v725 = vld [vmem:[%s450 + $0x728] sm:$0xff]
      %v726 = vld [vmem:[%s450 + $0x730] sm:$0xff]
      %v727 = vld [vmem:[%s450 + $0x738] sm:$0xff]
      %v728 = vld [vmem:[%s450 + $0x740] sm:$0xff]
      %v729 = vld [vmem:[%s450 + $0x748] sm:$0xff]
      %v730 = vld [vmem:[%s450 + $0x750] sm:$0xff]
      %v731 = vld [vmem:[%s450 + $0x758] sm:$0xff]
      %v732 = vld [vmem:[%s450 + $0x760] sm:$0xff]
      %v733 = vld [vmem:[%s450 + $0x768] sm:$0xff]
      %v734 = vld [vmem:[%s450 + $0x770] sm:$0xff]
      %v735 = vld [vmem:[%s450 + $0x778] sm:$0xff]
      %v736 = vld [vmem:[%s450 + $0x780] sm:$0xff]
      %v737 = vld [vmem:[%s450 + $0x788] sm:$0xff]
      %v738 = vld [vmem:[%s450 + $0x790] sm:$0xff]
      %v739 = vld [vmem:[%s450 + $0x798] sm:$0xff]
      %v740 = vld [vmem:[%s450 + $0x7a0] sm:$0xff]
      %v741 = vld [vmem:[%s450 + $0x7a8] sm:$0xff]
      %v742 = vld [vmem:[%s450 + $0x7b0] sm:$0xff]
      %v743 = vld [vmem:[%s450 + $0x7b8] sm:$0xff]
      %v744 = vld [vmem:[%s450 + $0x7c0] sm:$0xff]
      %v745 = vld [vmem:[%s450 + $0x7c8] sm:$0xff]
      %v746 = vld [vmem:[%s450 + $0x7d0] sm:$0xff]
      %v747 = vld [vmem:[%s450 + $0x7d8] sm:$0xff]
      %v748 = vld [vmem:[%s450 + $0x7e0] sm:$0xff]
      %v749 = vld [vmem:[%s450 + $0x7e8] sm:$0xff]
      %v750 = vld [vmem:[%s450 + $0x7f0] sm:$0xff]
      %v751 = vld [vmem:[%s450 + $0x7f8] sm:$0xff]
      %v752 = vld [vmem:[%s450 + $0x800] sm:$0xff]
      %v753 = vld [vmem:[%s450 + $0x808] sm:$0xff]
      %v754 = vld [vmem:[%s450 + $0x810] sm:$0xff]
      %v755 = vld [vmem:[%s450 + $0x818] sm:$0xff]
      %v756 = vld [vmem:[%s450 + $0x820] sm:$0xff]
      %v757 = vld [vmem:[%s450 + $0x828] sm:$0xff]
      %v758 = vld [vmem:[%s450 + $0x830] sm:$0xff]
      %v759 = vld [vmem:[%s450 + $0x838] sm:$0xff]
      %v760 = vld [vmem:[%s450 + $0x840] sm:$0xff]
      %v761 = vld [vmem:[%s450 + $0x848] sm:$0xff]
      %v762 = vld [vmem:[%s450 + $0x850] sm:$0xff]
      %v763 = vld [vmem:[%s450 + $0x858] sm:$0xff]
      %v764 = vld [vmem:[%s450 + $0x860] sm:$0xff]
      %v765 = vld [vmem:[%s450 + $0x868] sm:$0xff]
      %v766 = vld [vmem:[%s450 + $0x870] sm:$0xff]
      %v767 = vld [vmem:[%s450 + $0x878] sm:$0xff]
      %v768 = vld [vmem:[%s450 + $0x880] sm:$0xff]
      %v769 = vld [vmem:[%s450 + $0x888] sm:$0xff]
      %v770 = vld [vmem:[%s450 + $0x890] sm:$0xff]
      %v771 = vld [vmem:[%s450 + $0x898] sm:$0xff]
      %v772 = vld [vmem:[%s450 + $0x8a0] sm:$0xff]
      %v773 = vld [vmem:[%s450 + $0x8a8] sm:$0xff]
      %v774 = vld [vmem:[%s450 + $0x8b0] sm:$0xff]
      %v775 = vld [vmem:[%s450 + $0x8b8] sm:$0xff]
      %v776 = vld [vmem:[%s450 + $0x8c0] sm:$0xff]
      %v777 = vld [vmem:[%s450 + $0x8c8] sm:$0xff]
      %v778 = vld [vmem:[%s450 + $0x8d0] sm:$0xff]
      %v779 = vld [vmem:[%s450 + $0x8d8] sm:$0xff]
      %v780 = vld [vmem:[%s450 + $0x8e0] sm:$0xff]
      %v781 = vld [vmem:[%s450 + $0x8e8] sm:$0xff]
      %v782 = vld [vmem:[%s450 + $0x8f0] sm:$0xff]
      %v783 = vld [vmem:[%s450 + $0x8f8] sm:$0xff]
      %v784 = vld [vmem:[%s450 + $0x900] sm:$0xff]
      %v785 = vld [vmem:[%s450 + $0x908] sm:$0xff]
      %v786 = vld [vmem:[%s450 + $0x910] sm:$0xff]
      %v787 = vld [vmem:[%s450 + $0x918] sm:$0xff]
      %v788 = vld [vmem:[%s450 + $0x920] sm:$0xff]
      %v789 = vld [vmem:[%s450 + $0x928] sm:$0xff]
      %v790 = vld [vmem:[%s450 + $0x930] sm:$0xff]
      %v791 = vld [vmem:[%s450 + $0x938] sm:$0xff]
      %v792 = vld [vmem:[%s450 + $0x940] sm:$0xff]
      %v793 = vld [vmem:[%s450 + $0x948] sm:$0xff]
      %v794 = vld [vmem:[%s450 + $0x950] sm:$0xff]
      %v795 = vld [vmem:[%s450 + $0x958] sm:$0xff]
      %v796 = vld [vmem:[%s450 + $0x960] sm:$0xff]
      %v797 = vld [vmem:[%s450 + $0x968] sm:$0xff]
      %v798 = vld [vmem:[%s450 + $0x970] sm:$0xff]
      %v799 = vld [vmem:[%s450 + $0x978] sm:$0xff]
      %v800 = vld [vmem:[%s450 + $0x980] sm:$0xff]
      %v801 = vld [vmem:[%s450 + $0x988] sm:$0xff]
      %v802 = vld [vmem:[%s450 + $0x990] sm:$0xff]
      %v803 = vld [vmem:[%s450 + $0x998] sm:$0xff]
      %v804 = vld [vmem:[%s450 + $0x9a0] sm:$0xff]
      %v805 = vld [vmem:[%s450 + $0x9a8] sm:$0xff]
      %v806 = vld [vmem:[%s450 + $0x9b0] sm:$0xff]
      %v807 = vld [vmem:[%s450 + $0x9b8] sm:$0xff]
      %v808 = vld [vmem:[%s450 + $0x9c0] sm:$0xff]
      %v809 = vld [vmem:[%s450 + $0x9c8] sm:$0xff]
      %v810 = vld [vmem:[%s450 + $0x9d0] sm:$0xff]
      %v811 = vld [vmem:[%s450 + $0x9d8] sm:$0xff]
      %v812 = vld [vmem:[%s450 + $0x9e0] sm:$0xff]
      %v813 = vld [vmem:[%s450 + $0x9e8] sm:$0xff]
      %v814 = vld [vmem:[%s450 + $0x9f0] sm:$0xff]
      %v815 = vld [vmem:[%s450 + $0x9f8] sm:$0xff]
      %v816 = vld [vmem:[%s450 + $0xa00] sm:$0xff]
      %v817 = vld [vmem:[%s450 + $0xa08] sm:$0xff]
      %v818 = vld [vmem:[%s450 + $0xa10] sm:$0xff]
      %v819 = vld [vmem:[%s450 + $0xa18] sm:$0xff]
      %v820 = vld [vmem:[%s450 + $0xa20] sm:$0xff]
      %v821 = vld [vmem:[%s450 + $0xa28] sm:$0xff]
      %v822 = vld [vmem:[%s450 + $0xa30] sm:$0xff]
      %v823 = vld [vmem:[%s450 + $0xa38] sm:$0xff]
      %v824 = vld [vmem:[%s450 + $0xa40] sm:$0xff]
      %v825 = vld [vmem:[%s450 + $0xa48] sm:$0xff]
      %v826 = vld [vmem:[%s450 + $0xa50] sm:$0xff]
      %v827 = vld [vmem:[%s450 + $0xa58] sm:$0xff]
      %v828 = vld [vmem:[%s450 + $0xa60] sm:$0xff]
      %v829 = vld [vmem:[%s450 + $0xa68] sm:$0xff]
      %v830 = vld [vmem:[%s450 + $0xa70] sm:$0xff]
      %v831 = vld [vmem:[%s450 + $0xa78] sm:$0xff]
      %v832 = vld [vmem:[%s450 + $0xa80] sm:$0xff]
      %v833 = vld [vmem:[%s450 + $0xa88] sm:$0xff]
      %v834 = vld [vmem:[%s450 + $0xa90] sm:$0xff]
      %v835 = vld [vmem:[%s450 + $0xa98] sm:$0xff]
      %v836 = vld [vmem:[%s450 + $0xaa0] sm:$0xff]
      %v837 = vld [vmem:[%s450 + $0xaa8] sm:$0xff]
      %v838 = vld [vmem:[%s450 + $0xab0] sm:$0xff]
      %v839 = vld [vmem:[%s450 + $0xab8] sm:$0xff]
      %v840 = vld [vmem:[%s450 + $0xac0] sm:$0xff]
      %v841 = vld [vmem:[%s450 + $0xac8] sm:$0xff]
      %v842 = vld [vmem:[%s450 + $0xad0] sm:$0xff]
      %v843 = vld [vmem:[%s450 + $0xad8] sm:$0xff]
      %v844 = vld [vmem:[%s450 + $0xae0] sm:$0xff]
      %v845 = vld [vmem:[%s450 + $0xae8] sm:$0xff]
      %v846 = vld [vmem:[%s450 + $0xaf0] sm:$0xff]
      %v847 = vld [vmem:[%s450 + $0xaf8] sm:$0xff]
      %v848 = vld [vmem:[%s450 + $0xb00] sm:$0xff]
      %v849 = vld [vmem:[%s450 + $0xb08] sm:$0xff]
      %v850 = vld [vmem:[%s450 + $0xb10] sm:$0xff]
      %v851 = vld [vmem:[%s450 + $0xb18] sm:$0xff]
      %v852 = vld [vmem:[%s450 + $0xb20] sm:$0xff]
      %v853 = vld [vmem:[%s450 + $0xb28] sm:$0xff]
      %v854 = vld [vmem:[%s450 + $0xb30] sm:$0xff]
      %v855 = vld [vmem:[%s450 + $0xb38] sm:$0xff]
      %v856 = vld [vmem:[%s450 + $0xb40] sm:$0xff]
      %v857 = vld [vmem:[%s450 + $0xb48] sm:$0xff]
      %v858 = vld [vmem:[%s450 + $0xb50] sm:$0xff]
      %v859 = vld [vmem:[%s450 + $0xb58] sm:$0xff]
      %v860 = vld [vmem:[%s450 + $0xb60] sm:$0xff]
      %v861 = vld [vmem:[%s450 + $0xb68] sm:$0xff]
      %v862 = vld [vmem:[%s450 + $0xb70] sm:$0xff]
      %v863 = vld [vmem:[%s450 + $0xb78] sm:$0xff]
      %v864 = vld [vmem:[%s450 + $0xb80] sm:$0xff]
      %v865 = vld [vmem:[%s450 + $0xb88] sm:$0xff]
      %v866 = vld [vmem:[%s450 + $0xb90] sm:$0xff]
      %v867 = vld [vmem:[%s450 + $0xb98] sm:$0xff]
      %v868 = vld [vmem:[%s450 + $0xba0] sm:$0xff]
      %v869 = vld [vmem:[%s450 + $0xba8] sm:$0xff]
      %v870 = vld [vmem:[%s450 + $0xbb0] sm:$0xff]
      %v871 = vld [vmem:[%s450 + $0xbb8] sm:$0xff]
      %v872 = vld [vmem:[%s450 + $0xbc0] sm:$0xff]
      %v873 = vld [vmem:[%s450 + $0xbc8] sm:$0xff]
      %v874 = vld [vmem:[%s450 + $0xbd0] sm:$0xff]
      %v875 = vld [vmem:[%s450 + $0xbd8] sm:$0xff]
      %v876 = vld [vmem:[%s450 + $0xbe0] sm:$0xff]
      %v877 = vld [vmem:[%s450 + $0xbe8] sm:$0xff]
      %v878 = vld [vmem:[%s450 + $0xbf0] sm:$0xff]
      %v879 = vld [vmem:[%s450 + $0xbf8] sm:$0xff]
      %v880 = vld [vmem:[%s450 + $0xc00] sm:$0xff]
      %v881 = vld [vmem:[%s450 + $0xc08] sm:$0xff]
      %v882 = vld [vmem:[%s450 + $0xc10] sm:$0xff]
      %v883 = vld [vmem:[%s450 + $0xc18] sm:$0xff]
      %v884 = vld [vmem:[%s450 + $0xc20] sm:$0xff]
      %v885 = vld [vmem:[%s450 + $0xc28] sm:$0xff]
      %v886 = vld [vmem:[%s450 + $0xc30] sm:$0xff]
      %v887 = vld [vmem:[%s450 + $0xc38] sm:$0xff]
      %v888 = vld [vmem:[%s450 + $0xc40] sm:$0xff]
      %v889 = vld [vmem:[%s450 + $0xc48] sm:$0xff]
      %v890 = vld [vmem:[%s450 + $0xc50] sm:$0xff]
      %v891 = vld [vmem:[%s450 + $0xc58] sm:$0xff]
      %v892 = vld [vmem:[%s450 + $0xc60] sm:$0xff]
      %v893 = vld [vmem:[%s450 + $0xc68] sm:$0xff]
      %v894 = vld [vmem:[%s450 + $0xc70] sm:$0xff]
      %v895 = vld [vmem:[%s450 + $0xc78] sm:$0xff]
      %v896 = vld [vmem:[%s450 + $0xc80] sm:$0xff]
      %v897 = vld [vmem:[%s450 + $0xc88] sm:$0xff]
      %v898 = vld [vmem:[%s450 + $0xc90] sm:$0xff]
      %v899 = vld [vmem:[%s450 + $0xc98] sm:$0xff]
      %v900 = vld [vmem:[%s450 + $0xca0] sm:$0xff]
      %v901 = vld [vmem:[%s450 + $0xca8] sm:$0xff]
      %v902 = vld [vmem:[%s450 + $0xcb0] sm:$0xff]
      %v903 = vld [vmem:[%s450 + $0xcb8] sm:$0xff]
      %v904 = vld [vmem:[%s450 + $0xcc0] sm:$0xff]
      %v905 = vld [vmem:[%s450 + $0xcc8] sm:$0xff]
      %v906 = vld [vmem:[%s450 + $0xcd0] sm:$0xff]
      %v907 = vld [vmem:[%s450 + $0xcd8] sm:$0xff]
      %v908 = vld [vmem:[%s450 + $0xce0] sm:$0xff]
      %v909 = vld [vmem:[%s450 + $0xce8] sm:$0xff]
      %v910 = vld [vmem:[%s450 + $0xcf0] sm:$0xff]
      %v911 = vld [vmem:[%s450 + $0xcf8] sm:$0xff]
      %v912 = vld [vmem:[%s450 + $0xd00] sm:$0xff]
      %v913 = vld [vmem:[%s450 + $0xd08] sm:$0xff]
      %v914 = vld [vmem:[%s450 + $0xd10] sm:$0xff]
      %v915 = vld [vmem:[%s450 + $0xd18] sm:$0xff]
      %v916 = vld [vmem:[%s450 + $0xd20] sm:$0xff]
      %v917 = vld [vmem:[%s450 + $0xd28] sm:$0xff]
      %v918 = vld [vmem:[%s450 + $0xd30] sm:$0xff]
      %v919 = vld [vmem:[%s450 + $0xd38] sm:$0xff]
      %v920 = vld [vmem:[%s450 + $0xd40] sm:$0xff]
      %v921 = vld [vmem:[%s450 + $0xd48] sm:$0xff]
      %v922 = vld [vmem:[%s450 + $0xd50] sm:$0xff]
      %v923 = vld [vmem:[%s450 + $0xd58] sm:$0xff]
      %v924 = vld [vmem:[%s450 + $0xd60] sm:$0xff]
      %v925 = vld [vmem:[%s450 + $0xd68] sm:$0xff]
      %v926 = vld [vmem:[%s450 + $0xd70] sm:$0xff]
      %v927 = vld [vmem:[%s450 + $0xd78] sm:$0xff]
      %v928 = vld [vmem:[%s450 + $0xd80] sm:$0xff]
      %v929 = vld [vmem:[%s450 + $0xd88] sm:$0xff]
      %v930 = vld [vmem:[%s450 + $0xd90] sm:$0xff]
      %v931 = vld [vmem:[%s450 + $0xd98] sm:$0xff]
      %v932 = vld [vmem:[%s450 + $0xda0] sm:$0xff]
      %v933 = vld [vmem:[%s450 + $0xda8] sm:$0xff]
      %v934 = vld [vmem:[%s450 + $0xdb0] sm:$0xff]
      %v935 = vld [vmem:[%s450 + $0xdb8] sm:$0xff]
      %v936 = vld [vmem:[%s450 + $0xdc0] sm:$0xff]
      %v937 = vld [vmem:[%s450 + $0xdc8] sm:$0xff]
      %v938 = vld [vmem:[%s450 + $0xdd0] sm:$0xff]
      %v939 = vld [vmem:[%s450 + $0xdd8] sm:$0xff]
      %v940 = vld [vmem:[%s450 + $0xde0] sm:$0xff]
      %v941 = vld [vmem:[%s450 + $0xde8] sm:$0xff]
      %v942 = vld [vmem:[%s450 + $0xdf0] sm:$0xff]
      %v943 = vld [vmem:[%s450 + $0xdf8] sm:$0xff]
      %v944 = vld [vmem:[%s450 + $0xe00] sm:$0xff]
      %v945 = vld [vmem:[%s450 + $0xe08] sm:$0xff]
      %v946 = vld [vmem:[%s450 + $0xe10] sm:$0xff]
      %v947 = vld [vmem:[%s450 + $0xe18] sm:$0xff]
      %v948 = vld [vmem:[%s450 + $0xe20] sm:$0xff]
      %v949 = vld [vmem:[%s450 + $0xe28] sm:$0xff]
      %v950 = vld [vmem:[%s450 + $0xe30] sm:$0xff]
      %v951 = vld [vmem:[%s450 + $0xe38] sm:$0xff]
      %v952 = vld [vmem:[%s450 + $0xe40] sm:$0xff]
      %v953 = vld [vmem:[%s450 + $0xe48] sm:$0xff]
      %v954 = vld [vmem:[%s450 + $0xe50] sm:$0xff]
      %v955 = vld [vmem:[%s450 + $0xe58] sm:$0xff]
      %v956 = vld [vmem:[%s450 + $0xe60] sm:$0xff]
      %v957 = vld [vmem:[%s450 + $0xe68] sm:$0xff]
      %v958 = vld [vmem:[%s450 + $0xe70] sm:$0xff]
      %v959 = vld [vmem:[%s450 + $0xe78] sm:$0xff]
      %v960 = vld [vmem:[%s450 + $0xe80] sm:$0xff]
      %v961 = vld [vmem:[%s450 + $0xe88] sm:$0xff]
      %v962 = vld [vmem:[%s450 + $0xe90] sm:$0xff]
      %v963 = vld [vmem:[%s450 + $0xe98] sm:$0xff]
      %v964 = vld [vmem:[%s450 + $0xea0] sm:$0xff]
      %v965 = vld [vmem:[%s450 + $0xea8] sm:$0xff]
      %v966 = vld [vmem:[%s450 + $0xeb0] sm:$0xff]
      %v967 = vld [vmem:[%s450 + $0xeb8] sm:$0xff]
      %v968 = vld [vmem:[%s450 + $0xec0] sm:$0xff]
      %v969 = vld [vmem:[%s450 + $0xec8] sm:$0xff]
      %v970 = vld [vmem:[%s450 + $0xed0] sm:$0xff]
      %v971 = vld [vmem:[%s450 + $0xed8] sm:$0xff]
      %v972 = vld [vmem:[%s450 + $0xee0] sm:$0xff]
      %v973 = vld [vmem:[%s450 + $0xee8] sm:$0xff]
      %v974 = vld [vmem:[%s450 + $0xef0] sm:$0xff]
      %v975 = vld [vmem:[%s450 + $0xef8] sm:$0xff]
      %v976 = vld [vmem:[%s450 + $0xf00] sm:$0xff]
      %v977 = vld [vmem:[%s450 + $0xf08] sm:$0xff]
      %v978 = vld [vmem:[%s450 + $0xf10] sm:$0xff]
      %v979 = vld [vmem:[%s450 + $0xf18] sm:$0xff]
      %v980 = vld [vmem:[%s450 + $0xf20] sm:$0xff]
      %v981 = vld [vmem:[%s450 + $0xf28] sm:$0xff]
      %v982 = vld [vmem:[%s450 + $0xf30] sm:$0xff]
      %v983 = vld [vmem:[%s450 + $0xf38] sm:$0xff]
      %v984 = vld [vmem:[%s450 + $0xf40] sm:$0xff]
      %v985 = vld [vmem:[%s450 + $0xf48] sm:$0xff]
      %v986 = vld [vmem:[%s450 + $0xf50] sm:$0xff]
      %v987 = vld [vmem:[%s450 + $0xf58] sm:$0xff]
      %v988 = vld [vmem:[%s450 + $0xf60] sm:$0xff]
      %v989 = vld [vmem:[%s450 + $0xf68] sm:$0xff]
      %v990 = vld [vmem:[%s450 + $0xf70] sm:$0xff]
      %v991 = vld [vmem:[%s450 + $0xf78] sm:$0xff]
      %v992 = vld [vmem:[%s450 + $0xf80] sm:$0xff]
      %v993 = vld [vmem:[%s450 + $0xf88] sm:$0xff]
      %v994 = vld [vmem:[%s450 + $0xf90] sm:$0xff]
      %v995 = vld [vmem:[%s450 + $0xf98] sm:$0xff]
      %v996 = vld [vmem:[%s450 + $0xfa0] sm:$0xff]
      %v997 = vld [vmem:[%s450 + $0xfa8] sm:$0xff]
      %v998 = vld [vmem:[%s450 + $0xfb0] sm:$0xff]
      %v999 = vld [vmem:[%s450 + $0xfb8] sm:$0xff]
      %v1000 = vld [vmem:[%s450 + $0xfc0] sm:$0xff]
      %v1001 = vld [vmem:[%s450 + $0xfc8] sm:$0xff]
      %v1002 = vld [vmem:[%s450 + $0xfd0] sm:$0xff]
      %v1003 = vld [vmem:[%s450 + $0xfd8] sm:$0xff]
      %v1004 = vld [vmem:[%s450 + $0xfe0] sm:$0xff]
      %v1005 = vld [vmem:[%s450 + $0xfe8] sm:$0xff]
      %v1006 = vld [vmem:[%s450 + $0xff0] sm:$0xff]
      %v1007 = vld [vmem:[%s450 + $0xff8] sm:$0xff]
      %v1008 = vld [vmem:[%s453] sm:$0x1]
      %v1025 = vunpack.c.l.b16 %v480
      %v1026 = vunpack.c.h.b16 %v480
      %v1027 = vunpack.c.l.b16 %v481
      %v1028 = vunpack.c.h.b16 %v481
      %v1029 = vunpack.c.l.b16 %v482
      %v1030 = vunpack.c.h.b16 %v482
      %v1031 = vunpack.c.l.b16 %v483
      %v1032 = vunpack.c.h.b16 %v483
      %v1033 = vunpack.c.l.b16 %v484
      %v1034 = vunpack.c.h.b16 %v484
      %v1035 = vunpack.c.l.b16 %v485
      %v1036 = vunpack.c.h.b16 %v485
      %v1037 = vunpack.c.l.b16 %v486
      %v1038 = vunpack.c.h.b16 %v486
      %v1039 = vunpack.c.l.b16 %v487
      %v1040 = vunpack.c.h.b16 %v487
      %v1041 = vunpack.c.l.b16 %v488
      %v1042 = vunpack.c.h.b16 %v488
      %v1043 = vunpack.c.l.b16 %v489
      %v1044 = vunpack.c.h.b16 %v489
      %v1045 = vunpack.c.l.b16 %v490
      %v1046 = vunpack.c.h.b16 %v490
      %v1047 = vunpack.c.l.b16 %v491
      %v1048 = vunpack.c.h.b16 %v491
      %v1049 = vunpack.c.l.b16 %v492
      %v1050 = vunpack.c.h.b16 %v492
      %v1051 = vunpack.c.l.b16 %v493
      %v1052 = vunpack.c.h.b16 %v493
      %v1053 = vunpack.c.l.b16 %v494
      %v1054 = vunpack.c.h.b16 %v494
      %v1055 = vunpack.c.l.b16 %v495
      %v1056 = vunpack.c.h.b16 %v495
      %v1057 = vpack.c.b16 %v1041, %v1025
      %v1058 = vpack.c.b16 %v1042, %v1026
      %v1059 = vpack.c.b16 %v1043, %v1027
      %v1060 = vpack.c.b16 %v1044, %v1028
      %v1061 = vpack.c.b16 %v1045, %v1029
      %v1062 = vpack.c.b16 %v1046, %v1030
      %v1063 = vpack.c.b16 %v1047, %v1031
      %v1064 = vpack.c.b16 %v1048, %v1032
      %v1065 = vpack.c.b16 %v1049, %v1033
      %v1066 = vpack.c.b16 %v1050, %v1034
      %v1067 = vpack.c.b16 %v1051, %v1035
      %v1068 = vpack.c.b16 %v1052, %v1036
      %v1069 = vpack.c.b16 %v1053, %v1037
      %v1070 = vpack.c.b16 %v1054, %v1038
      %v1071 = vpack.c.b16 %v1055, %v1039
      %v1072 = vpack.c.b16 %v1056, %v1040
      %v1601 = vunpack.c.l.b16 %v496
      %v1602 = vunpack.c.h.b16 %v496
      %v1603 = vunpack.c.l.b16 %v497
      %v1604 = vunpack.c.h.b16 %v497
      %v1605 = vunpack.c.l.b16 %v498
      %v1606 = vunpack.c.h.b16 %v498
      %v1607 = vunpack.c.l.b16 %v499
      %v1608 = vunpack.c.h.b16 %v499
      %v1609 = vunpack.c.l.b16 %v500
      %v1610 = vunpack.c.h.b16 %v500
      %v1611 = vunpack.c.l.b16 %v501
      %v1612 = vunpack.c.h.b16 %v501
      %v1613 = vunpack.c.l.b16 %v502
      %v1614 = vunpack.c.h.b16 %v502
      %v1615 = vunpack.c.l.b16 %v503
      %v1616 = vunpack.c.h.b16 %v503
      %v1617 = vunpack.c.l.b16 %v504
      %v1618 = vunpack.c.h.b16 %v504
      %v1619 = vunpack.c.l.b16 %v505
      %v1620 = vunpack.c.h.b16 %v505
      %v1621 = vunpack.c.l.b16 %v506
      %v1622 = vunpack.c.h.b16 %v506
      %v1623 = vunpack.c.l.b16 %v507
      %v1624 = vunpack.c.h.b16 %v507
      %v1625 = vunpack.c.l.b16 %v508
      %v1626 = vunpack.c.h.b16 %v508
      %v1627 = vunpack.c.l.b16 %v509
      %v1628 = vunpack.c.h.b16 %v509
      %v1629 = vunpack.c.l.b16 %v510
      %v1630 = vunpack.c.h.b16 %v510
      %v1631 = vunpack.c.l.b16 %v511
      %v1632 = vunpack.c.h.b16 %v511
      %v1633 = vunpack.c.l.b16 %v512
      %v1634 = vunpack.c.h.b16 %v512
      %v1635 = vunpack.c.l.b16 %v513
      %v1636 = vunpack.c.h.b16 %v513
      %v1637 = vunpack.c.l.b16 %v514
      %v1638 = vunpack.c.h.b16 %v514
      %v1639 = vunpack.c.l.b16 %v515
      %v1640 = vunpack.c.h.b16 %v515
      %v1641 = vunpack.c.l.b16 %v516
      %v1642 = vunpack.c.h.b16 %v516
      %v1643 = vunpack.c.l.b16 %v517
      %v1644 = vunpack.c.h.b16 %v517
      %v1645 = vunpack.c.l.b16 %v518
      %v1646 = vunpack.c.h.b16 %v518
      %v1647 = vunpack.c.l.b16 %v519
      %v1648 = vunpack.c.h.b16 %v519
      %v1649 = vunpack.c.l.b16 %v520
      %v1650 = vunpack.c.h.b16 %v520
      %v1651 = vunpack.c.l.b16 %v521
      %v1652 = vunpack.c.h.b16 %v521
      %v1653 = vunpack.c.l.b16 %v522
      %v1654 = vunpack.c.h.b16 %v522
      %v1655 = vunpack.c.l.b16 %v523
      %v1656 = vunpack.c.h.b16 %v523
      %v1657 = vunpack.c.l.b16 %v524
      %v1658 = vunpack.c.h.b16 %v524
      %v1659 = vunpack.c.l.b16 %v525
      %v1660 = vunpack.c.h.b16 %v525
      %v1661 = vunpack.c.l.b16 %v526
      %v1662 = vunpack.c.h.b16 %v526
      %v1663 = vunpack.c.l.b16 %v527
      %v1664 = vunpack.c.h.b16 %v527
      %v1665 = vunpack.c.l.b16 %v528
      %v1666 = vunpack.c.h.b16 %v528
      %v1667 = vunpack.c.l.b16 %v529
      %v1668 = vunpack.c.h.b16 %v529
      %v1669 = vunpack.c.l.b16 %v530
      %v1670 = vunpack.c.h.b16 %v530
      %v1671 = vunpack.c.l.b16 %v531
      %v1672 = vunpack.c.h.b16 %v531
      %v1673 = vunpack.c.l.b16 %v532
      %v1674 = vunpack.c.h.b16 %v532
      %v1675 = vunpack.c.l.b16 %v533
      %v1676 = vunpack.c.h.b16 %v533
      %v1677 = vunpack.c.l.b16 %v534
      %v1678 = vunpack.c.h.b16 %v534
      %v1679 = vunpack.c.l.b16 %v535
      %v1680 = vunpack.c.h.b16 %v535
      %v1681 = vunpack.c.l.b16 %v536
      %v1682 = vunpack.c.h.b16 %v536
      %v1683 = vunpack.c.l.b16 %v537
      %v1684 = vunpack.c.h.b16 %v537
      %v1685 = vunpack.c.l.b16 %v538
      %v1686 = vunpack.c.h.b16 %v538
      %v1687 = vunpack.c.l.b16 %v539
      %v1688 = vunpack.c.h.b16 %v539
      %v1689 = vunpack.c.l.b16 %v540
      %v1690 = vunpack.c.h.b16 %v540
      %v1691 = vunpack.c.l.b16 %v541
      %v1692 = vunpack.c.h.b16 %v541
      %v1693 = vunpack.c.l.b16 %v542
      %v1694 = vunpack.c.h.b16 %v542
      %v1695 = vunpack.c.l.b16 %v543
      %v1696 = vunpack.c.h.b16 %v543
      %v1697 = vunpack.c.l.b16 %v544
      %v1698 = vunpack.c.h.b16 %v544
      %v1699 = vunpack.c.l.b16 %v545
      %v1700 = vunpack.c.h.b16 %v545
      %v1701 = vunpack.c.l.b16 %v546
      %v1702 = vunpack.c.h.b16 %v546
      %v1703 = vunpack.c.l.b16 %v547
      %v1704 = vunpack.c.h.b16 %v547
      %v1705 = vunpack.c.l.b16 %v548
      %v1706 = vunpack.c.h.b16 %v548
      %v1707 = vunpack.c.l.b16 %v549
      %v1708 = vunpack.c.h.b16 %v549
      %v1709 = vunpack.c.l.b16 %v550
      %v1710 = vunpack.c.h.b16 %v550
      %v1711 = vunpack.c.l.b16 %v551
      %v1712 = vunpack.c.h.b16 %v551
      %v1713 = vunpack.c.l.b16 %v552
      %v1714 = vunpack.c.h.b16 %v552
      %v1715 = vunpack.c.l.b16 %v553
      %v1716 = vunpack.c.h.b16 %v553
      %v1717 = vunpack.c.l.b16 %v554
      %v1718 = vunpack.c.h.b16 %v554
      %v1719 = vunpack.c.l.b16 %v555
      %v1720 = vunpack.c.h.b16 %v555
      %v1721 = vunpack.c.l.b16 %v556
      %v1722 = vunpack.c.h.b16 %v556
      %v1723 = vunpack.c.l.b16 %v557
      %v1724 = vunpack.c.h.b16 %v557
      %v1725 = vunpack.c.l.b16 %v558
      %v1726 = vunpack.c.h.b16 %v558
      %v1727 = vunpack.c.l.b16 %v559
      %v1728 = vunpack.c.h.b16 %v559
      %v1729 = vunpack.c.l.b16 %v560
      %v1730 = vunpack.c.h.b16 %v560
      %v1731 = vunpack.c.l.b16 %v561
      %v1732 = vunpack.c.h.b16 %v561
      %v1733 = vunpack.c.l.b16 %v562
      %v1734 = vunpack.c.h.b16 %v562
      %v1735 = vunpack.c.l.b16 %v563
      %v1736 = vunpack.c.h.b16 %v563
      %v1737 = vunpack.c.l.b16 %v564
      %v1738 = vunpack.c.h.b16 %v564
      %v1739 = vunpack.c.l.b16 %v565
      %v1740 = vunpack.c.h.b16 %v565
      %v1741 = vunpack.c.l.b16 %v566
      %v1742 = vunpack.c.h.b16 %v566
      %v1743 = vunpack.c.l.b16 %v567
      %v1744 = vunpack.c.h.b16 %v567
      %v1745 = vunpack.c.l.b16 %v568
      %v1746 = vunpack.c.h.b16 %v568
      %v1747 = vunpack.c.l.b16 %v569
      %v1748 = vunpack.c.h.b16 %v569
      %v1749 = vunpack.c.l.b16 %v570
      %v1750 = vunpack.c.h.b16 %v570
      %v1751 = vunpack.c.l.b16 %v571
      %v1752 = vunpack.c.h.b16 %v571
      %v1753 = vunpack.c.l.b16 %v572
      %v1754 = vunpack.c.h.b16 %v572
      %v1755 = vunpack.c.l.b16 %v573
      %v1756 = vunpack.c.h.b16 %v573
      %v1757 = vunpack.c.l.b16 %v574
      %v1758 = vunpack.c.h.b16 %v574
      %v1759 = vunpack.c.l.b16 %v575
      %v1760 = vunpack.c.h.b16 %v575
      %v1761 = vunpack.c.l.b16 %v576
      %v1762 = vunpack.c.h.b16 %v576
      %v1763 = vunpack.c.l.b16 %v577
      %v1764 = vunpack.c.h.b16 %v577
      %v1765 = vunpack.c.l.b16 %v578
      %v1766 = vunpack.c.h.b16 %v578
      %v1767 = vunpack.c.l.b16 %v579
      %v1768 = vunpack.c.h.b16 %v579
      %v1769 = vunpack.c.l.b16 %v580
      %v1770 = vunpack.c.h.b16 %v580
      %v1771 = vunpack.c.l.b16 %v581
      %v1772 = vunpack.c.h.b16 %v581
      %v1773 = vunpack.c.l.b16 %v582
      %v1774 = vunpack.c.h.b16 %v582
      %v1775 = vunpack.c.l.b16 %v583
      %v1776 = vunpack.c.h.b16 %v583
      %v1777 = vunpack.c.l.b16 %v584
      %v1778 = vunpack.c.h.b16 %v584
      %v1779 = vunpack.c.l.b16 %v585
      %v1780 = vunpack.c.h.b16 %v585
      %v1781 = vunpack.c.l.b16 %v586
      %v1782 = vunpack.c.h.b16 %v586
      %v1783 = vunpack.c.l.b16 %v587
      %v1784 = vunpack.c.h.b16 %v587
      %v1785 = vunpack.c.l.b16 %v588
      %v1786 = vunpack.c.h.b16 %v588
      %v1787 = vunpack.c.l.b16 %v589
      %v1788 = vunpack.c.h.b16 %v589
      %v1789 = vunpack.c.l.b16 %v590
      %v1790 = vunpack.c.h.b16 %v590
      %v1791 = vunpack.c.l.b16 %v591
      %v1792 = vunpack.c.h.b16 %v591
      %v1793 = vunpack.c.l.b16 %v592
      %v1794 = vunpack.c.h.b16 %v592
      %v1795 = vunpack.c.l.b16 %v593
      %v1796 = vunpack.c.h.b16 %v593
      %v1797 = vunpack.c.l.b16 %v594
      %v1798 = vunpack.c.h.b16 %v594
      %v1799 = vunpack.c.l.b16 %v595
      %v1800 = vunpack.c.h.b16 %v595
      %v1801 = vunpack.c.l.b16 %v596
      %v1802 = vunpack.c.h.b16 %v596
      %v1803 = vunpack.c.l.b16 %v597
      %v1804 = vunpack.c.h.b16 %v597
      %v1805 = vunpack.c.l.b16 %v598
      %v1806 = vunpack.c.h.b16 %v598
      %v1807 = vunpack.c.l.b16 %v599
      %v1808 = vunpack.c.h.b16 %v599
      %v1809 = vunpack.c.l.b16 %v600
      %v1810 = vunpack.c.h.b16 %v600
      %v1811 = vunpack.c.l.b16 %v601
      %v1812 = vunpack.c.h.b16 %v601
      %v1813 = vunpack.c.l.b16 %v602
      %v1814 = vunpack.c.h.b16 %v602
      %v1815 = vunpack.c.l.b16 %v603
      %v1816 = vunpack.c.h.b16 %v603
      %v1817 = vunpack.c.l.b16 %v604
      %v1818 = vunpack.c.h.b16 %v604
      %v1819 = vunpack.c.l.b16 %v605
      %v1820 = vunpack.c.h.b16 %v605
      %v1821 = vunpack.c.l.b16 %v606
      %v1822 = vunpack.c.h.b16 %v606
      %v1823 = vunpack.c.l.b16 %v607
      %v1824 = vunpack.c.h.b16 %v607
      %v1825 = vunpack.c.l.b16 %v608
      %v1826 = vunpack.c.h.b16 %v608
      %v1827 = vunpack.c.l.b16 %v609
      %v1828 = vunpack.c.h.b16 %v609
      %v1829 = vunpack.c.l.b16 %v610
      %v1830 = vunpack.c.h.b16 %v610
      %v1831 = vunpack.c.l.b16 %v611
      %v1832 = vunpack.c.h.b16 %v611
      %v1833 = vunpack.c.l.b16 %v612
      %v1834 = vunpack.c.h.b16 %v612
      %v1835 = vunpack.c.l.b16 %v613
      %v1836 = vunpack.c.h.b16 %v613
      %v1837 = vunpack.c.l.b16 %v614
      %v1838 = vunpack.c.h.b16 %v614
      %v1839 = vunpack.c.l.b16 %v615
      %v1840 = vunpack.c.h.b16 %v615
      %v1841 = vunpack.c.l.b16 %v616
      %v1842 = vunpack.c.h.b16 %v616
      %v1843 = vunpack.c.l.b16 %v617
      %v1844 = vunpack.c.h.b16 %v617
      %v1845 = vunpack.c.l.b16 %v618
      %v1846 = vunpack.c.h.b16 %v618
      %v1847 = vunpack.c.l.b16 %v619
      %v1848 = vunpack.c.h.b16 %v619
      %v1849 = vunpack.c.l.b16 %v620
      %v1850 = vunpack.c.h.b16 %v620
      %v1851 = vunpack.c.l.b16 %v621
      %v1852 = vunpack.c.h.b16 %v621
      %v1853 = vunpack.c.l.b16 %v622
      %v1854 = vunpack.c.h.b16 %v622
      %v1855 = vunpack.c.l.b16 %v623
      %v1856 = vunpack.c.h.b16 %v623
      %v1857 = vunpack.c.l.b16 %v624
      %v1858 = vunpack.c.h.b16 %v624
      %v1859 = vunpack.c.l.b16 %v625
      %v1860 = vunpack.c.h.b16 %v625
      %v1861 = vunpack.c.l.b16 %v626
      %v1862 = vunpack.c.h.b16 %v626
      %v1863 = vunpack.c.l.b16 %v627
      %v1864 = vunpack.c.h.b16 %v627
      %v1865 = vunpack.c.l.b16 %v628
      %v1866 = vunpack.c.h.b16 %v628
      %v1867 = vunpack.c.l.b16 %v629
      %v1868 = vunpack.c.h.b16 %v629
      %v1869 = vunpack.c.l.b16 %v630
      %v1870 = vunpack.c.h.b16 %v630
      %v1871 = vunpack.c.l.b16 %v631
      %v1872 = vunpack.c.h.b16 %v631
      %v1873 = vunpack.c.l.b16 %v632
      %v1874 = vunpack.c.h.b16 %v632
      %v1875 = vunpack.c.l.b16 %v633
      %v1876 = vunpack.c.h.b16 %v633
      %v1877 = vunpack.c.l.b16 %v634
      %v1878 = vunpack.c.h.b16 %v634
      %v1879 = vunpack.c.l.b16 %v635
      %v1880 = vunpack.c.h.b16 %v635
      %v1881 = vunpack.c.l.b16 %v636
      %v1882 = vunpack.c.h.b16 %v636
      %v1883 = vunpack.c.l.b16 %v637
      %v1884 = vunpack.c.h.b16 %v637
      %v1885 = vunpack.c.l.b16 %v638
      %v1886 = vunpack.c.h.b16 %v638
      %v1887 = vunpack.c.l.b16 %v639
      %v1888 = vunpack.c.h.b16 %v639
      %v1889 = vunpack.c.l.b16 %v640
      %v1890 = vunpack.c.h.b16 %v640
      %v1891 = vunpack.c.l.b16 %v641
      %v1892 = vunpack.c.h.b16 %v641
      %v1893 = vunpack.c.l.b16 %v642
      %v1894 = vunpack.c.h.b16 %v642
      %v1895 = vunpack.c.l.b16 %v643
      %v1896 = vunpack.c.h.b16 %v643
      %v1897 = vunpack.c.l.b16 %v644
      %v1898 = vunpack.c.h.b16 %v644
      %v1899 = vunpack.c.l.b16 %v645
      %v1900 = vunpack.c.h.b16 %v645
      %v1901 = vunpack.c.l.b16 %v646
      %v1902 = vunpack.c.h.b16 %v646
      %v1903 = vunpack.c.l.b16 %v647
      %v1904 = vunpack.c.h.b16 %v647
      %v1905 = vunpack.c.l.b16 %v648
      %v1906 = vunpack.c.h.b16 %v648
      %v1907 = vunpack.c.l.b16 %v649
      %v1908 = vunpack.c.h.b16 %v649
      %v1909 = vunpack.c.l.b16 %v650
      %v1910 = vunpack.c.h.b16 %v650
      %v1911 = vunpack.c.l.b16 %v651
      %v1912 = vunpack.c.h.b16 %v651
      %v1913 = vunpack.c.l.b16 %v652
      %v1914 = vunpack.c.h.b16 %v652
      %v1915 = vunpack.c.l.b16 %v653
      %v1916 = vunpack.c.h.b16 %v653
      %v1917 = vunpack.c.l.b16 %v654
      %v1918 = vunpack.c.h.b16 %v654
      %v1919 = vunpack.c.l.b16 %v655
      %v1920 = vunpack.c.h.b16 %v655
      %v1921 = vunpack.c.l.b16 %v656
      %v1922 = vunpack.c.h.b16 %v656
      %v1923 = vunpack.c.l.b16 %v657
      %v1924 = vunpack.c.h.b16 %v657
      %v1925 = vunpack.c.l.b16 %v658
      %v1926 = vunpack.c.h.b16 %v658
      %v1927 = vunpack.c.l.b16 %v659
      %v1928 = vunpack.c.h.b16 %v659
      %v1929 = vunpack.c.l.b16 %v660
      %v1930 = vunpack.c.h.b16 %v660
      %v1931 = vunpack.c.l.b16 %v661
      %v1932 = vunpack.c.h.b16 %v661
      %v1933 = vunpack.c.l.b16 %v662
      %v1934 = vunpack.c.h.b16 %v662
      %v1935 = vunpack.c.l.b16 %v663
      %v1936 = vunpack.c.h.b16 %v663
      %v1937 = vunpack.c.l.b16 %v664
      %v1938 = vunpack.c.h.b16 %v664
      %v1939 = vunpack.c.l.b16 %v665
      %v1940 = vunpack.c.h.b16 %v665
      %v1941 = vunpack.c.l.b16 %v666
      %v1942 = vunpack.c.h.b16 %v666
      %v1943 = vunpack.c.l.b16 %v667
      %v1944 = vunpack.c.h.b16 %v667
      %v1945 = vunpack.c.l.b16 %v668
      %v1946 = vunpack.c.h.b16 %v668
      %v1947 = vunpack.c.l.b16 %v669
      %v1948 = vunpack.c.h.b16 %v669
      %v1949 = vunpack.c.l.b16 %v670
      %v1950 = vunpack.c.h.b16 %v670
      %v1951 = vunpack.c.l.b16 %v671
      %v1952 = vunpack.c.h.b16 %v671
      %v1953 = vunpack.c.l.b16 %v672
      %v1954 = vunpack.c.h.b16 %v672
      %v1955 = vunpack.c.l.b16 %v673
      %v1956 = vunpack.c.h.b16 %v673
      %v1957 = vunpack.c.l.b16 %v674
      %v1958 = vunpack.c.h.b16 %v674
      %v1959 = vunpack.c.l.b16 %v675
      %v1960 = vunpack.c.h.b16 %v675
      %v1961 = vunpack.c.l.b16 %v676
      %v1962 = vunpack.c.h.b16 %v676
      %v1963 = vunpack.c.l.b16 %v677
      %v1964 = vunpack.c.h.b16 %v677
      %v1965 = vunpack.c.l.b16 %v678
      %v1966 = vunpack.c.h.b16 %v678
      %v1967 = vunpack.c.l.b16 %v679
      %v1968 = vunpack.c.h.b16 %v679
      %v1969 = vunpack.c.l.b16 %v680
      %v1970 = vunpack.c.h.b16 %v680
      %v1971 = vunpack.c.l.b16 %v681
      %v1972 = vunpack.c.h.b16 %v681
      %v1973 = vunpack.c.l.b16 %v682
      %v1974 = vunpack.c.h.b16 %v682
      %v1975 = vunpack.c.l.b16 %v683
      %v1976 = vunpack.c.h.b16 %v683
      %v1977 = vunpack.c.l.b16 %v684
      %v1978 = vunpack.c.h.b16 %v684
      %v1979 = vunpack.c.l.b16 %v685
      %v1980 = vunpack.c.h.b16 %v685
      %v1981 = vunpack.c.l.b16 %v686
      %v1982 = vunpack.c.h.b16 %v686
      %v1983 = vunpack.c.l.b16 %v687
      %v1984 = vunpack.c.h.b16 %v687
      %v1985 = vunpack.c.l.b16 %v688
      %v1986 = vunpack.c.h.b16 %v688
      %v1987 = vunpack.c.l.b16 %v689
      %v1988 = vunpack.c.h.b16 %v689
      %v1989 = vunpack.c.l.b16 %v690
      %v1990 = vunpack.c.h.b16 %v690
      %v1991 = vunpack.c.l.b16 %v691
      %v1992 = vunpack.c.h.b16 %v691
      %v1993 = vunpack.c.l.b16 %v692
      %v1994 = vunpack.c.h.b16 %v692
      %v1995 = vunpack.c.l.b16 %v693
      %v1996 = vunpack.c.h.b16 %v693
      %v1997 = vunpack.c.l.b16 %v694
      %v1998 = vunpack.c.h.b16 %v694
      %v1999 = vunpack.c.l.b16 %v695
      %v2000 = vunpack.c.h.b16 %v695
      %v2001 = vunpack.c.l.b16 %v696
      %v2002 = vunpack.c.h.b16 %v696
      %v2003 = vunpack.c.l.b16 %v697
      %v2004 = vunpack.c.h.b16 %v697
      %v2005 = vunpack.c.l.b16 %v698
      %v2006 = vunpack.c.h.b16 %v698
      %v2007 = vunpack.c.l.b16 %v699
      %v2008 = vunpack.c.h.b16 %v699
      %v2009 = vunpack.c.l.b16 %v700
      %v2010 = vunpack.c.h.b16 %v700
      %v2011 = vunpack.c.l.b16 %v701
      %v2012 = vunpack.c.h.b16 %v701
      %v2013 = vunpack.c.l.b16 %v702
      %v2014 = vunpack.c.h.b16 %v702
      %v2015 = vunpack.c.l.b16 %v703
      %v2016 = vunpack.c.h.b16 %v703
      %v2017 = vunpack.c.l.b16 %v704
      %v2018 = vunpack.c.h.b16 %v704
      %v2019 = vunpack.c.l.b16 %v705
      %v2020 = vunpack.c.h.b16 %v705
      %v2021 = vunpack.c.l.b16 %v706
      %v2022 = vunpack.c.h.b16 %v706
      %v2023 = vunpack.c.l.b16 %v707
      %v2024 = vunpack.c.h.b16 %v707
      %v2025 = vunpack.c.l.b16 %v708
      %v2026 = vunpack.c.h.b16 %v708
      %v2027 = vunpack.c.l.b16 %v709
      %v2028 = vunpack.c.h.b16 %v709
      %v2029 = vunpack.c.l.b16 %v710
      %v2030 = vunpack.c.h.b16 %v710
      %v2031 = vunpack.c.l.b16 %v711
      %v2032 = vunpack.c.h.b16 %v711
      %v2033 = vunpack.c.l.b16 %v712
      %v2034 = vunpack.c.h.b16 %v712
      %v2035 = vunpack.c.l.b16 %v713
      %v2036 = vunpack.c.h.b16 %v713
      %v2037 = vunpack.c.l.b16 %v714
      %v2038 = vunpack.c.h.b16 %v714
      %v2039 = vunpack.c.l.b16 %v715
      %v2040 = vunpack.c.h.b16 %v715
      %v2041 = vunpack.c.l.b16 %v716
      %v2042 = vunpack.c.h.b16 %v716
      %v2043 = vunpack.c.l.b16 %v717
      %v2044 = vunpack.c.h.b16 %v717
      %v2045 = vunpack.c.l.b16 %v718
      %v2046 = vunpack.c.h.b16 %v718
      %v2047 = vunpack.c.l.b16 %v719
      %v2048 = vunpack.c.h.b16 %v719
      %v2049 = vunpack.c.l.b16 %v720
      %v2050 = vunpack.c.h.b16 %v720
      %v2051 = vunpack.c.l.b16 %v721
      %v2052 = vunpack.c.h.b16 %v721
      %v2053 = vunpack.c.l.b16 %v722
      %v2054 = vunpack.c.h.b16 %v722
      %v2055 = vunpack.c.l.b16 %v723
      %v2056 = vunpack.c.h.b16 %v723
      %v2057 = vunpack.c.l.b16 %v724
      %v2058 = vunpack.c.h.b16 %v724
      %v2059 = vunpack.c.l.b16 %v725
      %v2060 = vunpack.c.h.b16 %v725
      %v2061 = vunpack.c.l.b16 %v726
      %v2062 = vunpack.c.h.b16 %v726
      %v2063 = vunpack.c.l.b16 %v727
      %v2064 = vunpack.c.h.b16 %v727
      %v2065 = vunpack.c.l.b16 %v728
      %v2066 = vunpack.c.h.b16 %v728
      %v2067 = vunpack.c.l.b16 %v729
      %v2068 = vunpack.c.h.b16 %v729
      %v2069 = vunpack.c.l.b16 %v730
      %v2070 = vunpack.c.h.b16 %v730
      %v2071 = vunpack.c.l.b16 %v731
      %v2072 = vunpack.c.h.b16 %v731
      %v2073 = vunpack.c.l.b16 %v732
      %v2074 = vunpack.c.h.b16 %v732
      %v2075 = vunpack.c.l.b16 %v733
      %v2076 = vunpack.c.h.b16 %v733
      %v2077 = vunpack.c.l.b16 %v734
      %v2078 = vunpack.c.h.b16 %v734
      %v2079 = vunpack.c.l.b16 %v735
      %v2080 = vunpack.c.h.b16 %v735
      %v2081 = vunpack.c.l.b16 %v736
      %v2082 = vunpack.c.h.b16 %v736
      %v2083 = vunpack.c.l.b16 %v737
      %v2084 = vunpack.c.h.b16 %v737
      %v2085 = vunpack.c.l.b16 %v738
      %v2086 = vunpack.c.h.b16 %v738
      %v2087 = vunpack.c.l.b16 %v739
      %v2088 = vunpack.c.h.b16 %v739
      %v2089 = vunpack.c.l.b16 %v740
      %v2090 = vunpack.c.h.b16 %v740
      %v2091 = vunpack.c.l.b16 %v741
      %v2092 = vunpack.c.h.b16 %v741
      %v2093 = vunpack.c.l.b16 %v742
      %v2094 = vunpack.c.h.b16 %v742
      %v2095 = vunpack.c.l.b16 %v743
      %v2096 = vunpack.c.h.b16 %v743
      %v2097 = vunpack.c.l.b16 %v744
      %v2098 = vunpack.c.h.b16 %v744
      %v2099 = vunpack.c.l.b16 %v745
      %v2100 = vunpack.c.h.b16 %v745
      %v2101 = vunpack.c.l.b16 %v746
      %v2102 = vunpack.c.h.b16 %v746
      %v2103 = vunpack.c.l.b16 %v747
      %v2104 = vunpack.c.h.b16 %v747
      %v2105 = vunpack.c.l.b16 %v748
      %v2106 = vunpack.c.h.b16 %v748
      %v2107 = vunpack.c.l.b16 %v749
      %v2108 = vunpack.c.h.b16 %v749
      %v2109 = vunpack.c.l.b16 %v750
      %v2110 = vunpack.c.h.b16 %v750
      %v2111 = vunpack.c.l.b16 %v751
      %v2112 = vunpack.c.h.b16 %v751
      %v2113 = vunpack.c.l.b16 %v752
      %v2114 = vunpack.c.h.b16 %v752
      %v2115 = vunpack.c.l.b16 %v753
      %v2116 = vunpack.c.h.b16 %v753
      %v2117 = vunpack.c.l.b16 %v754
      %v2118 = vunpack.c.h.b16 %v754
      %v2119 = vunpack.c.l.b16 %v755
      %v2120 = vunpack.c.h.b16 %v755
      %v2121 = vunpack.c.l.b16 %v756
      %v2122 = vunpack.c.h.b16 %v756
      %v2123 = vunpack.c.l.b16 %v757
      %v2124 = vunpack.c.h.b16 %v757
      %v2125 = vunpack.c.l.b16 %v758
      %v2126 = vunpack.c.h.b16 %v758
      %v2127 = vunpack.c.l.b16 %v759
      %v2128 = vunpack.c.h.b16 %v759
      %v2129 = vunpack.c.l.b16 %v760
      %v2130 = vunpack.c.h.b16 %v760
      %v2131 = vunpack.c.l.b16 %v761
      %v2132 = vunpack.c.h.b16 %v761
      %v2133 = vunpack.c.l.b16 %v762
      %v2134 = vunpack.c.h.b16 %v762
      %v2135 = vunpack.c.l.b16 %v763
      %v2136 = vunpack.c.h.b16 %v763
      %v2137 = vunpack.c.l.b16 %v764
      %v2138 = vunpack.c.h.b16 %v764
      %v2139 = vunpack.c.l.b16 %v765
      %v2140 = vunpack.c.h.b16 %v765
      %v2141 = vunpack.c.l.b16 %v766
      %v2142 = vunpack.c.h.b16 %v766
      %v2143 = vunpack.c.l.b16 %v767
      %v2144 = vunpack.c.h.b16 %v767
      %v2145 = vunpack.c.l.b16 %v768
      %v2146 = vunpack.c.h.b16 %v768
      %v2147 = vunpack.c.l.b16 %v769
      %v2148 = vunpack.c.h.b16 %v769
      %v2149 = vunpack.c.l.b16 %v770
      %v2150 = vunpack.c.h.b16 %v770
      %v2151 = vunpack.c.l.b16 %v771
      %v2152 = vunpack.c.h.b16 %v771
      %v2153 = vunpack.c.l.b16 %v772
      %v2154 = vunpack.c.h.b16 %v772
      %v2155 = vunpack.c.l.b16 %v773
      %v2156 = vunpack.c.h.b16 %v773
      %v2157 = vunpack.c.l.b16 %v774
      %v2158 = vunpack.c.h.b16 %v774
      %v2159 = vunpack.c.l.b16 %v775
      %v2160 = vunpack.c.h.b16 %v775
      %v2161 = vunpack.c.l.b16 %v776
      %v2162 = vunpack.c.h.b16 %v776
      %v2163 = vunpack.c.l.b16 %v777
      %v2164 = vunpack.c.h.b16 %v777
      %v2165 = vunpack.c.l.b16 %v778
      %v2166 = vunpack.c.h.b16 %v778
      %v2167 = vunpack.c.l.b16 %v779
      %v2168 = vunpack.c.h.b16 %v779
      %v2169 = vunpack.c.l.b16 %v780
      %v2170 = vunpack.c.h.b16 %v780
      %v2171 = vunpack.c.l.b16 %v781
      %v2172 = vunpack.c.h.b16 %v781
      %v2173 = vunpack.c.l.b16 %v782
      %v2174 = vunpack.c.h.b16 %v782
      %v2175 = vunpack.c.l.b16 %v783
      %v2176 = vunpack.c.h.b16 %v783
      %v2177 = vunpack.c.l.b16 %v784
      %v2178 = vunpack.c.h.b16 %v784
      %v2179 = vunpack.c.l.b16 %v785
      %v2180 = vunpack.c.h.b16 %v785
      %v2181 = vunpack.c.l.b16 %v786
      %v2182 = vunpack.c.h.b16 %v786
      %v2183 = vunpack.c.l.b16 %v787
      %v2184 = vunpack.c.h.b16 %v787
      %v2185 = vunpack.c.l.b16 %v788
      %v2186 = vunpack.c.h.b16 %v788
      %v2187 = vunpack.c.l.b16 %v789
      %v2188 = vunpack.c.h.b16 %v789
      %v2189 = vunpack.c.l.b16 %v790
      %v2190 = vunpack.c.h.b16 %v790
      %v2191 = vunpack.c.l.b16 %v791
      %v2192 = vunpack.c.h.b16 %v791
      %v2193 = vunpack.c.l.b16 %v792
      %v2194 = vunpack.c.h.b16 %v792
      %v2195 = vunpack.c.l.b16 %v793
      %v2196 = vunpack.c.h.b16 %v793
      %v2197 = vunpack.c.l.b16 %v794
      %v2198 = vunpack.c.h.b16 %v794
      %v2199 = vunpack.c.l.b16 %v795
      %v2200 = vunpack.c.h.b16 %v795
      %v2201 = vunpack.c.l.b16 %v796
      %v2202 = vunpack.c.h.b16 %v796
      %v2203 = vunpack.c.l.b16 %v797
      %v2204 = vunpack.c.h.b16 %v797
      %v2205 = vunpack.c.l.b16 %v798
      %v2206 = vunpack.c.h.b16 %v798
      %v2207 = vunpack.c.l.b16 %v799
      %v2208 = vunpack.c.h.b16 %v799
      %v2209 = vunpack.c.l.b16 %v800
      %v2210 = vunpack.c.h.b16 %v800
      %v2211 = vunpack.c.l.b16 %v801
      %v2212 = vunpack.c.h.b16 %v801
      %v2213 = vunpack.c.l.b16 %v802
      %v2214 = vunpack.c.h.b16 %v802
      %v2215 = vunpack.c.l.b16 %v803
      %v2216 = vunpack.c.h.b16 %v803
      %v2217 = vunpack.c.l.b16 %v804
      %v2218 = vunpack.c.h.b16 %v804
      %v2219 = vunpack.c.l.b16 %v805
      %v2220 = vunpack.c.h.b16 %v805
      %v2221 = vunpack.c.l.b16 %v806
      %v2222 = vunpack.c.h.b16 %v806
      %v2223 = vunpack.c.l.b16 %v807
      %v2224 = vunpack.c.h.b16 %v807
      %v2225 = vunpack.c.l.b16 %v808
      %v2226 = vunpack.c.h.b16 %v808
      %v2227 = vunpack.c.l.b16 %v809
      %v2228 = vunpack.c.h.b16 %v809
      %v2229 = vunpack.c.l.b16 %v810
      %v2230 = vunpack.c.h.b16 %v810
      %v2231 = vunpack.c.l.b16 %v811
      %v2232 = vunpack.c.h.b16 %v811
      %v2233 = vunpack.c.l.b16 %v812
      %v2234 = vunpack.c.h.b16 %v812
      %v2235 = vunpack.c.l.b16 %v813
      %v2236 = vunpack.c.h.b16 %v813
      %v2237 = vunpack.c.l.b16 %v814
      %v2238 = vunpack.c.h.b16 %v814
      %v2239 = vunpack.c.l.b16 %v815
      %v2240 = vunpack.c.h.b16 %v815
      %v2241 = vunpack.c.l.b16 %v816
      %v2242 = vunpack.c.h.b16 %v816
      %v2243 = vunpack.c.l.b16 %v817
      %v2244 = vunpack.c.h.b16 %v817
      %v2245 = vunpack.c.l.b16 %v818
      %v2246 = vunpack.c.h.b16 %v818
      %v2247 = vunpack.c.l.b16 %v819
      %v2248 = vunpack.c.h.b16 %v819
      %v2249 = vunpack.c.l.b16 %v820
      %v2250 = vunpack.c.h.b16 %v820
      %v2251 = vunpack.c.l.b16 %v821
      %v2252 = vunpack.c.h.b16 %v821
      %v2253 = vunpack.c.l.b16 %v822
      %v2254 = vunpack.c.h.b16 %v822
      %v2255 = vunpack.c.l.b16 %v823
      %v2256 = vunpack.c.h.b16 %v823
      %v2257 = vunpack.c.l.b16 %v824
      %v2258 = vunpack.c.h.b16 %v824
      %v2259 = vunpack.c.l.b16 %v825
      %v2260 = vunpack.c.h.b16 %v825
      %v2261 = vunpack.c.l.b16 %v826
      %v2262 = vunpack.c.h.b16 %v826
      %v2263 = vunpack.c.l.b16 %v827
      %v2264 = vunpack.c.h.b16 %v827
      %v2265 = vunpack.c.l.b16 %v828
      %v2266 = vunpack.c.h.b16 %v828
      %v2267 = vunpack.c.l.b16 %v829
      %v2268 = vunpack.c.h.b16 %v829
      %v2269 = vunpack.c.l.b16 %v830
      %v2270 = vunpack.c.h.b16 %v830
      %v2271 = vunpack.c.l.b16 %v831
      %v2272 = vunpack.c.h.b16 %v831
      %v2273 = vunpack.c.l.b16 %v832
      %v2274 = vunpack.c.h.b16 %v832
      %v2275 = vunpack.c.l.b16 %v833
      %v2276 = vunpack.c.h.b16 %v833
      %v2277 = vunpack.c.l.b16 %v834
      %v2278 = vunpack.c.h.b16 %v834
      %v2279 = vunpack.c.l.b16 %v835
      %v2280 = vunpack.c.h.b16 %v835
      %v2281 = vunpack.c.l.b16 %v836
      %v2282 = vunpack.c.h.b16 %v836
      %v2283 = vunpack.c.l.b16 %v837
      %v2284 = vunpack.c.h.b16 %v837
      %v2285 = vunpack.c.l.b16 %v838
      %v2286 = vunpack.c.h.b16 %v838
      %v2287 = vunpack.c.l.b16 %v839
      %v2288 = vunpack.c.h.b16 %v839
      %v2289 = vunpack.c.l.b16 %v840
      %v2290 = vunpack.c.h.b16 %v840
      %v2291 = vunpack.c.l.b16 %v841
      %v2292 = vunpack.c.h.b16 %v841
      %v2293 = vunpack.c.l.b16 %v842
      %v2294 = vunpack.c.h.b16 %v842
      %v2295 = vunpack.c.l.b16 %v843
      %v2296 = vunpack.c.h.b16 %v843
      %v2297 = vunpack.c.l.b16 %v844
      %v2298 = vunpack.c.h.b16 %v844
      %v2299 = vunpack.c.l.b16 %v845
      %v2300 = vunpack.c.h.b16 %v845
      %v2301 = vunpack.c.l.b16 %v846
      %v2302 = vunpack.c.h.b16 %v846
      %v2303 = vunpack.c.l.b16 %v847
      %v2304 = vunpack.c.h.b16 %v847
      %v2305 = vunpack.c.l.b16 %v848
      %v2306 = vunpack.c.h.b16 %v848
      %v2307 = vunpack.c.l.b16 %v849
      %v2308 = vunpack.c.h.b16 %v849
      %v2309 = vunpack.c.l.b16 %v850
      %v2310 = vunpack.c.h.b16 %v850
      %v2311 = vunpack.c.l.b16 %v851
      %v2312 = vunpack.c.h.b16 %v851
      %v2313 = vunpack.c.l.b16 %v852
      %v2314 = vunpack.c.h.b16 %v852
      %v2315 = vunpack.c.l.b16 %v853
      %v2316 = vunpack.c.h.b16 %v853
      %v2317 = vunpack.c.l.b16 %v854
      %v2318 = vunpack.c.h.b16 %v854
      %v2319 = vunpack.c.l.b16 %v855
      %v2320 = vunpack.c.h.b16 %v855
      %v2321 = vunpack.c.l.b16 %v856
      %v2322 = vunpack.c.h.b16 %v856
      %v2323 = vunpack.c.l.b16 %v857
      %v2324 = vunpack.c.h.b16 %v857
      %v2325 = vunpack.c.l.b16 %v858
      %v2326 = vunpack.c.h.b16 %v858
      %v2327 = vunpack.c.l.b16 %v859
      %v2328 = vunpack.c.h.b16 %v859
      %v2329 = vunpack.c.l.b16 %v860
      %v2330 = vunpack.c.h.b16 %v860
      %v2331 = vunpack.c.l.b16 %v861
      %v2332 = vunpack.c.h.b16 %v861
      %v2333 = vunpack.c.l.b16 %v862
      %v2334 = vunpack.c.h.b16 %v862
      %v2335 = vunpack.c.l.b16 %v863
      %v2336 = vunpack.c.h.b16 %v863
      %v2337 = vunpack.c.l.b16 %v864
      %v2338 = vunpack.c.h.b16 %v864
      %v2339 = vunpack.c.l.b16 %v865
      %v2340 = vunpack.c.h.b16 %v865
      %v2341 = vunpack.c.l.b16 %v866
      %v2342 = vunpack.c.h.b16 %v866
      %v2343 = vunpack.c.l.b16 %v867
      %v2344 = vunpack.c.h.b16 %v867
      %v2345 = vunpack.c.l.b16 %v868
      %v2346 = vunpack.c.h.b16 %v868
      %v2347 = vunpack.c.l.b16 %v869
      %v2348 = vunpack.c.h.b16 %v869
      %v2349 = vunpack.c.l.b16 %v870
      %v2350 = vunpack.c.h.b16 %v870
      %v2351 = vunpack.c.l.b16 %v871
      %v2352 = vunpack.c.h.b16 %v871
      %v2353 = vunpack.c.l.b16 %v872
      %v2354 = vunpack.c.h.b16 %v872
      %v2355 = vunpack.c.l.b16 %v873
      %v2356 = vunpack.c.h.b16 %v873
      %v2357 = vunpack.c.l.b16 %v874
      %v2358 = vunpack.c.h.b16 %v874
      %v2359 = vunpack.c.l.b16 %v875
      %v2360 = vunpack.c.h.b16 %v875
      %v2361 = vunpack.c.l.b16 %v876
      %v2362 = vunpack.c.h.b16 %v876
      %v2363 = vunpack.c.l.b16 %v877
      %v2364 = vunpack.c.h.b16 %v877
      %v2365 = vunpack.c.l.b16 %v878
      %v2366 = vunpack.c.h.b16 %v878
      %v2367 = vunpack.c.l.b16 %v879
      %v2368 = vunpack.c.h.b16 %v879
      %v2369 = vunpack.c.l.b16 %v880
      %v2370 = vunpack.c.h.b16 %v880
      %v2371 = vunpack.c.l.b16 %v881
      %v2372 = vunpack.c.h.b16 %v881
      %v2373 = vunpack.c.l.b16 %v882
      %v2374 = vunpack.c.h.b16 %v882
      %v2375 = vunpack.c.l.b16 %v883
      %v2376 = vunpack.c.h.b16 %v883
      %v2377 = vunpack.c.l.b16 %v884
      %v2378 = vunpack.c.h.b16 %v884
      %v2379 = vunpack.c.l.b16 %v885
      %v2380 = vunpack.c.h.b16 %v885
      %v2381 = vunpack.c.l.b16 %v886
      %v2382 = vunpack.c.h.b16 %v886
      %v2383 = vunpack.c.l.b16 %v887
      %v2384 = vunpack.c.h.b16 %v887
      %v2385 = vunpack.c.l.b16 %v888
      %v2386 = vunpack.c.h.b16 %v888
      %v2387 = vunpack.c.l.b16 %v889
      %v2388 = vunpack.c.h.b16 %v889
      %v2389 = vunpack.c.l.b16 %v890
      %v2390 = vunpack.c.h.b16 %v890
      %v2391 = vunpack.c.l.b16 %v891
      %v2392 = vunpack.c.h.b16 %v891
      %v2393 = vunpack.c.l.b16 %v892
      %v2394 = vunpack.c.h.b16 %v892
      %v2395 = vunpack.c.l.b16 %v893
      %v2396 = vunpack.c.h.b16 %v893
      %v2397 = vunpack.c.l.b16 %v894
      %v2398 = vunpack.c.h.b16 %v894
      %v2399 = vunpack.c.l.b16 %v895
      %v2400 = vunpack.c.h.b16 %v895
      %v2401 = vunpack.c.l.b16 %v896
      %v2402 = vunpack.c.h.b16 %v896
      %v2403 = vunpack.c.l.b16 %v897
      %v2404 = vunpack.c.h.b16 %v897
      %v2405 = vunpack.c.l.b16 %v898
      %v2406 = vunpack.c.h.b16 %v898
      %v2407 = vunpack.c.l.b16 %v899
      %v2408 = vunpack.c.h.b16 %v899
      %v2409 = vunpack.c.l.b16 %v900
      %v2410 = vunpack.c.h.b16 %v900
      %v2411 = vunpack.c.l.b16 %v901
      %v2412 = vunpack.c.h.b16 %v901
      %v2413 = vunpack.c.l.b16 %v902
      %v2414 = vunpack.c.h.b16 %v902
      %v2415 = vunpack.c.l.b16 %v903
      %v2416 = vunpack.c.h.b16 %v903
      %v2417 = vunpack.c.l.b16 %v904
      %v2418 = vunpack.c.h.b16 %v904
      %v2419 = vunpack.c.l.b16 %v905
      %v2420 = vunpack.c.h.b16 %v905
      %v2421 = vunpack.c.l.b16 %v906
      %v2422 = vunpack.c.h.b16 %v906
      %v2423 = vunpack.c.l.b16 %v907
      %v2424 = vunpack.c.h.b16 %v907
      %v2425 = vunpack.c.l.b16 %v908
      %v2426 = vunpack.c.h.b16 %v908
      %v2427 = vunpack.c.l.b16 %v909
      %v2428 = vunpack.c.h.b16 %v909
      %v2429 = vunpack.c.l.b16 %v910
      %v2430 = vunpack.c.h.b16 %v910
      %v2431 = vunpack.c.l.b16 %v911
      %v2432 = vunpack.c.h.b16 %v911
      %v2433 = vunpack.c.l.b16 %v912
      %v2434 = vunpack.c.h.b16 %v912
      %v2435 = vunpack.c.l.b16 %v913
      %v2436 = vunpack.c.h.b16 %v913
      %v2437 = vunpack.c.l.b16 %v914
      %v2438 = vunpack.c.h.b16 %v914
      %v2439 = vunpack.c.l.b16 %v915
      %v2440 = vunpack.c.h.b16 %v915
      %v2441 = vunpack.c.l.b16 %v916
      %v2442 = vunpack.c.h.b16 %v916
      %v2443 = vunpack.c.l.b16 %v917
      %v2444 = vunpack.c.h.b16 %v917
      %v2445 = vunpack.c.l.b16 %v918
      %v2446 = vunpack.c.h.b16 %v918
      %v2447 = vunpack.c.l.b16 %v919
      %v2448 = vunpack.c.h.b16 %v919
      %v2449 = vunpack.c.l.b16 %v920
      %v2450 = vunpack.c.h.b16 %v920
      %v2451 = vunpack.c.l.b16 %v921
      %v2452 = vunpack.c.h.b16 %v921
      %v2453 = vunpack.c.l.b16 %v922
      %v2454 = vunpack.c.h.b16 %v922
      %v2455 = vunpack.c.l.b16 %v923
      %v2456 = vunpack.c.h.b16 %v923
      %v2457 = vunpack.c.l.b16 %v924
      %v2458 = vunpack.c.h.b16 %v924
      %v2459 = vunpack.c.l.b16 %v925
      %v2460 = vunpack.c.h.b16 %v925
      %v2461 = vunpack.c.l.b16 %v926
      %v2462 = vunpack.c.h.b16 %v926
      %v2463 = vunpack.c.l.b16 %v927
      %v2464 = vunpack.c.h.b16 %v927
      %v2465 = vunpack.c.l.b16 %v928
      %v2466 = vunpack.c.h.b16 %v928
      %v2467 = vunpack.c.l.b16 %v929
      %v2468 = vunpack.c.h.b16 %v929
      %v2469 = vunpack.c.l.b16 %v930
      %v2470 = vunpack.c.h.b16 %v930
      %v2471 = vunpack.c.l.b16 %v931
      %v2472 = vunpack.c.h.b16 %v931
      %v2473 = vunpack.c.l.b16 %v932
      %v2474 = vunpack.c.h.b16 %v932
      %v2475 = vunpack.c.l.b16 %v933
      %v2476 = vunpack.c.h.b16 %v933
      %v2477 = vunpack.c.l.b16 %v934
      %v2478 = vunpack.c.h.b16 %v934
      %v2479 = vunpack.c.l.b16 %v935
      %v2480 = vunpack.c.h.b16 %v935
      %v2481 = vunpack.c.l.b16 %v936
      %v2482 = vunpack.c.h.b16 %v936
      %v2483 = vunpack.c.l.b16 %v937
      %v2484 = vunpack.c.h.b16 %v937
      %v2485 = vunpack.c.l.b16 %v938
      %v2486 = vunpack.c.h.b16 %v938
      %v2487 = vunpack.c.l.b16 %v939
      %v2488 = vunpack.c.h.b16 %v939
      %v2489 = vunpack.c.l.b16 %v940
      %v2490 = vunpack.c.h.b16 %v940
      %v2491 = vunpack.c.l.b16 %v941
      %v2492 = vunpack.c.h.b16 %v941
      %v2493 = vunpack.c.l.b16 %v942
      %v2494 = vunpack.c.h.b16 %v942
      %v2495 = vunpack.c.l.b16 %v943
      %v2496 = vunpack.c.h.b16 %v943
      %v2497 = vunpack.c.l.b16 %v944
      %v2498 = vunpack.c.h.b16 %v944
      %v2499 = vunpack.c.l.b16 %v945
      %v2500 = vunpack.c.h.b16 %v945
      %v2501 = vunpack.c.l.b16 %v946
      %v2502 = vunpack.c.h.b16 %v946
      %v2503 = vunpack.c.l.b16 %v947
      %v2504 = vunpack.c.h.b16 %v947
      %v2505 = vunpack.c.l.b16 %v948
      %v2506 = vunpack.c.h.b16 %v948
      %v2507 = vunpack.c.l.b16 %v949
      %v2508 = vunpack.c.h.b16 %v949
      %v2509 = vunpack.c.l.b16 %v950
      %v2510 = vunpack.c.h.b16 %v950
      %v2511 = vunpack.c.l.b16 %v951
      %v2512 = vunpack.c.h.b16 %v951
      %v2513 = vunpack.c.l.b16 %v952
      %v2514 = vunpack.c.h.b16 %v952
      %v2515 = vunpack.c.l.b16 %v953
      %v2516 = vunpack.c.h.b16 %v953
      %v2517 = vunpack.c.l.b16 %v954
      %v2518 = vunpack.c.h.b16 %v954
      %v2519 = vunpack.c.l.b16 %v955
      %v2520 = vunpack.c.h.b16 %v955
      %v2521 = vunpack.c.l.b16 %v956
      %v2522 = vunpack.c.h.b16 %v956
      %v2523 = vunpack.c.l.b16 %v957
      %v2524 = vunpack.c.h.b16 %v957
      %v2525 = vunpack.c.l.b16 %v958
      %v2526 = vunpack.c.h.b16 %v958
      %v2527 = vunpack.c.l.b16 %v959
      %v2528 = vunpack.c.h.b16 %v959
      %v2529 = vunpack.c.l.b16 %v960
      %v2530 = vunpack.c.h.b16 %v960
      %v2531 = vunpack.c.l.b16 %v961
      %v2532 = vunpack.c.h.b16 %v961
      %v2533 = vunpack.c.l.b16 %v962
      %v2534 = vunpack.c.h.b16 %v962
      %v2535 = vunpack.c.l.b16 %v963
      %v2536 = vunpack.c.h.b16 %v963
      %v2537 = vunpack.c.l.b16 %v964
      %v2538 = vunpack.c.h.b16 %v964
      %v2539 = vunpack.c.l.b16 %v965
      %v2540 = vunpack.c.h.b16 %v965
      %v2541 = vunpack.c.l.b16 %v966
      %v2542 = vunpack.c.h.b16 %v966
      %v2543 = vunpack.c.l.b16 %v967
      %v2544 = vunpack.c.h.b16 %v967
      %v2545 = vunpack.c.l.b16 %v968
      %v2546 = vunpack.c.h.b16 %v968
      %v2547 = vunpack.c.l.b16 %v969
      %v2548 = vunpack.c.h.b16 %v969
      %v2549 = vunpack.c.l.b16 %v970
      %v2550 = vunpack.c.h.b16 %v970
      %v2551 = vunpack.c.l.b16 %v971
      %v2552 = vunpack.c.h.b16 %v971
      %v2553 = vunpack.c.l.b16 %v972
      %v2554 = vunpack.c.h.b16 %v972
      %v2555 = vunpack.c.l.b16 %v973
      %v2556 = vunpack.c.h.b16 %v973
      %v2557 = vunpack.c.l.b16 %v974
      %v2558 = vunpack.c.h.b16 %v974
      %v2559 = vunpack.c.l.b16 %v975
      %v2560 = vunpack.c.h.b16 %v975
      %v2561 = vunpack.c.l.b16 %v976
      %v2562 = vunpack.c.h.b16 %v976
      %v2563 = vunpack.c.l.b16 %v977
      %v2564 = vunpack.c.h.b16 %v977
      %v2565 = vunpack.c.l.b16 %v978
      %v2566 = vunpack.c.h.b16 %v978
      %v2567 = vunpack.c.l.b16 %v979
      %v2568 = vunpack.c.h.b16 %v979
      %v2569 = vunpack.c.l.b16 %v980
      %v2570 = vunpack.c.h.b16 %v980
      %v2571 = vunpack.c.l.b16 %v981
      %v2572 = vunpack.c.h.b16 %v981
      %v2573 = vunpack.c.l.b16 %v982
      %v2574 = vunpack.c.h.b16 %v982
      %v2575 = vunpack.c.l.b16 %v983
      %v2576 = vunpack.c.h.b16 %v983
      %v2577 = vunpack.c.l.b16 %v984
      %v2578 = vunpack.c.h.b16 %v984
      %v2579 = vunpack.c.l.b16 %v985
      %v2580 = vunpack.c.h.b16 %v985
      %v2581 = vunpack.c.l.b16 %v986
      %v2582 = vunpack.c.h.b16 %v986
      %v2583 = vunpack.c.l.b16 %v987
      %v2584 = vunpack.c.h.b16 %v987
      %v2585 = vunpack.c.l.b16 %v988
      %v2586 = vunpack.c.h.b16 %v988
      %v2587 = vunpack.c.l.b16 %v989
      %v2588 = vunpack.c.h.b16 %v989
      %v2589 = vunpack.c.l.b16 %v990
      %v2590 = vunpack.c.h.b16 %v990
      %v2591 = vunpack.c.l.b16 %v991
      %v2592 = vunpack.c.h.b16 %v991
      %v2593 = vunpack.c.l.b16 %v992
      %v2594 = vunpack.c.h.b16 %v992
      %v2595 = vunpack.c.l.b16 %v993
      %v2596 = vunpack.c.h.b16 %v993
      %v2597 = vunpack.c.l.b16 %v994
      %v2598 = vunpack.c.h.b16 %v994
      %v2599 = vunpack.c.l.b16 %v995
      %v2600 = vunpack.c.h.b16 %v995
      %v2601 = vunpack.c.l.b16 %v996
      %v2602 = vunpack.c.h.b16 %v996
      %v2603 = vunpack.c.l.b16 %v997
      %v2604 = vunpack.c.h.b16 %v997
      %v2605 = vunpack.c.l.b16 %v998
      %v2606 = vunpack.c.h.b16 %v998
      %v2607 = vunpack.c.l.b16 %v999
      %v2608 = vunpack.c.h.b16 %v999
      %v2609 = vunpack.c.l.b16 %v1000
      %v2610 = vunpack.c.h.b16 %v1000
      %v2611 = vunpack.c.l.b16 %v1001
      %v2612 = vunpack.c.h.b16 %v1001
      %v2613 = vunpack.c.l.b16 %v1002
      %v2614 = vunpack.c.h.b16 %v1002
      %v2615 = vunpack.c.l.b16 %v1003
      %v2616 = vunpack.c.h.b16 %v1003
      %v2617 = vunpack.c.l.b16 %v1004
      %v2618 = vunpack.c.h.b16 %v1004
      %v2619 = vunpack.c.l.b16 %v1005
      %v2620 = vunpack.c.h.b16 %v1005
      %v2621 = vunpack.c.l.b16 %v1006
      %v2622 = vunpack.c.h.b16 %v1006
      %v2623 = vunpack.c.l.b16 %v1007
      %v2624 = vunpack.c.h.b16 %v1007
      %v2625 = vpack.c.b16 %v1605, %v1601
      %v2626 = vpack.c.b16 %v1606, %v1602
      %v2627 = vpack.c.b16 %v1607, %v1603
      %v2628 = vpack.c.b16 %v1608, %v1604
      %v2629 = vpack.c.b16 %v1613, %v1609
      %v2630 = vpack.c.b16 %v1614, %v1610
      %v2631 = vpack.c.b16 %v1615, %v1611
      %v2632 = vpack.c.b16 %v1616, %v1612
      %v2633 = vpack.c.b16 %v1621, %v1617
      %v2634 = vpack.c.b16 %v1622, %v1618
      %v2635 = vpack.c.b16 %v1623, %v1619
      %v2636 = vpack.c.b16 %v1624, %v1620
      %v2637 = vpack.c.b16 %v1629, %v1625
      %v2638 = vpack.c.b16 %v1630, %v1626
      %v2639 = vpack.c.b16 %v1631, %v1627
      %v2640 = vpack.c.b16 %v1632, %v1628
      %v2641 = vpack.c.b16 %v1637, %v1633
      %v2642 = vpack.c.b16 %v1638, %v1634
      %v2643 = vpack.c.b16 %v1639, %v1635
      %v2644 = vpack.c.b16 %v1640, %v1636
      %v2645 = vpack.c.b16 %v1645, %v1641
      %v2646 = vpack.c.b16 %v1646, %v1642
      %v2647 = vpack.c.b16 %v1647, %v1643
      %v2648 = vpack.c.b16 %v1648, %v1644
      %v2649 = vpack.c.b16 %v1653, %v1649
      %v2650 = vpack.c.b16 %v1654, %v1650
      %v2651 = vpack.c.b16 %v1655, %v1651
      %v2652 = vpack.c.b16 %v1656, %v1652
      %v2653 = vpack.c.b16 %v1661, %v1657
      %v2654 = vpack.c.b16 %v1662, %v1658
      %v2655 = vpack.c.b16 %v1663, %v1659
      %v2656 = vpack.c.b16 %v1664, %v1660
      %v2657 = vpack.c.b16 %v1669, %v1665
      %v2658 = vpack.c.b16 %v1670, %v1666
      %v2659 = vpack.c.b16 %v1671, %v1667
      %v2660 = vpack.c.b16 %v1672, %v1668
      %v2661 = vpack.c.b16 %v1677, %v1673
      %v2662 = vpack.c.b16 %v1678, %v1674
      %v2663 = vpack.c.b16 %v1679, %v1675
      %v2664 = vpack.c.b16 %v1680, %v1676
      %v2665 = vpack.c.b16 %v1685, %v1681
      %v2666 = vpack.c.b16 %v1686, %v1682
      %v2667 = vpack.c.b16 %v1687, %v1683
      %v2668 = vpack.c.b16 %v1688, %v1684
      %v2669 = vpack.c.b16 %v1693, %v1689
      %v2670 = vpack.c.b16 %v1694, %v1690
      %v2671 = vpack.c.b16 %v1695, %v1691
      %v2672 = vpack.c.b16 %v1696, %v1692
      %v2673 = vpack.c.b16 %v1701, %v1697
      %v2674 = vpack.c.b16 %v1702, %v1698
      %v2675 = vpack.c.b16 %v1703, %v1699
      %v2676 = vpack.c.b16 %v1704, %v1700
      %v2677 = vpack.c.b16 %v1709, %v1705
      %v2678 = vpack.c.b16 %v1710, %v1706
      %v2679 = vpack.c.b16 %v1711, %v1707
      %v2680 = vpack.c.b16 %v1712, %v1708
      %v2681 = vpack.c.b16 %v1717, %v1713
      %v2682 = vpack.c.b16 %v1718, %v1714
      %v2683 = vpack.c.b16 %v1719, %v1715
      %v2684 = vpack.c.b16 %v1720, %v1716
      %v2685 = vpack.c.b16 %v1725, %v1721
      %v2686 = vpack.c.b16 %v1726, %v1722
      %v2687 = vpack.c.b16 %v1727, %v1723
      %v2688 = vpack.c.b16 %v1728, %v1724
      %v2689 = vpack.c.b16 %v1733, %v1729
      %v2690 = vpack.c.b16 %v1734, %v1730
      %v2691 = vpack.c.b16 %v1735, %v1731
      %v2692 = vpack.c.b16 %v1736, %v1732
      %v2693 = vpack.c.b16 %v1741, %v1737
      %v2694 = vpack.c.b16 %v1742, %v1738
      %v2695 = vpack.c.b16 %v1743, %v1739
      %v2696 = vpack.c.b16 %v1744, %v1740
      %v2697 = vpack.c.b16 %v1749, %v1745
      %v2698 = vpack.c.b16 %v1750, %v1746
      %v2699 = vpack.c.b16 %v1751, %v1747
      %v2700 = vpack.c.b16 %v1752, %v1748
      %v2701 = vpack.c.b16 %v1757, %v1753
      %v2702 = vpack.c.b16 %v1758, %v1754
      %v2703 = vpack.c.b16 %v1759, %v1755
      %v2704 = vpack.c.b16 %v1760, %v1756
      %v2705 = vpack.c.b16 %v1765, %v1761
      %v2706 = vpack.c.b16 %v1766, %v1762
      %v2707 = vpack.c.b16 %v1767, %v1763
      %v2708 = vpack.c.b16 %v1768, %v1764
      %v2709 = vpack.c.b16 %v1773, %v1769
      %v2710 = vpack.c.b16 %v1774, %v1770
      %v2711 = vpack.c.b16 %v1775, %v1771
      %v2712 = vpack.c.b16 %v1776, %v1772
      %v2713 = vpack.c.b16 %v1781, %v1777
      %v2714 = vpack.c.b16 %v1782, %v1778
      %v2715 = vpack.c.b16 %v1783, %v1779
      %v2716 = vpack.c.b16 %v1784, %v1780
      %v2717 = vpack.c.b16 %v1789, %v1785
      %v2718 = vpack.c.b16 %v1790, %v1786
      %v2719 = vpack.c.b16 %v1791, %v1787
      %v2720 = vpack.c.b16 %v1792, %v1788
      %v2721 = vpack.c.b16 %v1797, %v1793
      %v2722 = vpack.c.b16 %v1798, %v1794
      %v2723 = vpack.c.b16 %v1799, %v1795
      %v2724 = vpack.c.b16 %v1800, %v1796
      %v2725 = vpack.c.b16 %v1805, %v1801
      %v2726 = vpack.c.b16 %v1806, %v1802
      %v2727 = vpack.c.b16 %v1807, %v1803
      %v2728 = vpack.c.b16 %v1808, %v1804
      %v2729 = vpack.c.b16 %v1813, %v1809
      %v2730 = vpack.c.b16 %v1814, %v1810
      %v2731 = vpack.c.b16 %v1815, %v1811
      %v2732 = vpack.c.b16 %v1816, %v1812
      %v2733 = vpack.c.b16 %v1821, %v1817
      %v2734 = vpack.c.b16 %v1822, %v1818
      %v2735 = vpack.c.b16 %v1823, %v1819
      %v2736 = vpack.c.b16 %v1824, %v1820
      %v2737 = vpack.c.b16 %v1829, %v1825
      %v2738 = vpack.c.b16 %v1830, %v1826
      %v2739 = vpack.c.b16 %v1831, %v1827
      %v2740 = vpack.c.b16 %v1832, %v1828
      %v2741 = vpack.c.b16 %v1837, %v1833
      %v2742 = vpack.c.b16 %v1838, %v1834
      %v2743 = vpack.c.b16 %v1839, %v1835
      %v2744 = vpack.c.b16 %v1840, %v1836
      %v2745 = vpack.c.b16 %v1845, %v1841
      %v2746 = vpack.c.b16 %v1846, %v1842
      %v2747 = vpack.c.b16 %v1847, %v1843
      %v2748 = vpack.c.b16 %v1848, %v1844
      %v2749 = vpack.c.b16 %v1853, %v1849
      %v2750 = vpack.c.b16 %v1854, %v1850
      %v2751 = vpack.c.b16 %v1855, %v1851
      %v2752 = vpack.c.b16 %v1856, %v1852
      %v2753 = vpack.c.b16 %v1861, %v1857
      %v2754 = vpack.c.b16 %v1862, %v1858
      %v2755 = vpack.c.b16 %v1863, %v1859
      %v2756 = vpack.c.b16 %v1864, %v1860
      %v2757 = vpack.c.b16 %v1869, %v1865
      %v2758 = vpack.c.b16 %v1870, %v1866
      %v2759 = vpack.c.b16 %v1871, %v1867
      %v2760 = vpack.c.b16 %v1872, %v1868
      %v2761 = vpack.c.b16 %v1877, %v1873
      %v2762 = vpack.c.b16 %v1878, %v1874
      %v2763 = vpack.c.b16 %v1879, %v1875
      %v2764 = vpack.c.b16 %v1880, %v1876
      %v2765 = vpack.c.b16 %v1885, %v1881
      %v2766 = vpack.c.b16 %v1886, %v1882
      %v2767 = vpack.c.b16 %v1887, %v1883
      %v2768 = vpack.c.b16 %v1888, %v1884
      %v2769 = vpack.c.b16 %v1893, %v1889
      %v2770 = vpack.c.b16 %v1894, %v1890
      %v2771 = vpack.c.b16 %v1895, %v1891
      %v2772 = vpack.c.b16 %v1896, %v1892
      %v2773 = vpack.c.b16 %v1901, %v1897
      %v2774 = vpack.c.b16 %v1902, %v1898
      %v2775 = vpack.c.b16 %v1903, %v1899
      %v2776 = vpack.c.b16 %v1904, %v1900
      %v2777 = vpack.c.b16 %v1909, %v1905
      %v2778 = vpack.c.b16 %v1910, %v1906
      %v2779 = vpack.c.b16 %v1911, %v1907
      %v2780 = vpack.c.b16 %v1912, %v1908
      %v2781 = vpack.c.b16 %v1917, %v1913
      %v2782 = vpack.c.b16 %v1918, %v1914
      %v2783 = vpack.c.b16 %v1919, %v1915
      %v2784 = vpack.c.b16 %v1920, %v1916
      %v2785 = vpack.c.b16 %v1925, %v1921
      %v2786 = vpack.c.b16 %v1926, %v1922
      %v2787 = vpack.c.b16 %v1927, %v1923
      %v2788 = vpack.c.b16 %v1928, %v1924
      %v2789 = vpack.c.b16 %v1933, %v1929
      %v2790 = vpack.c.b16 %v1934, %v1930
      %v2791 = vpack.c.b16 %v1935, %v1931
      %v2792 = vpack.c.b16 %v1936, %v1932
      %v2793 = vpack.c.b16 %v1941, %v1937
      %v2794 = vpack.c.b16 %v1942, %v1938
      %v2795 = vpack.c.b16 %v1943, %v1939
      %v2796 = vpack.c.b16 %v1944, %v1940
      %v2797 = vpack.c.b16 %v1949, %v1945
      %v2798 = vpack.c.b16 %v1950, %v1946
      %v2799 = vpack.c.b16 %v1951, %v1947
      %v2800 = vpack.c.b16 %v1952, %v1948
      %v2801 = vpack.c.b16 %v1957, %v1953
      %v2802 = vpack.c.b16 %v1958, %v1954
      %v2803 = vpack.c.b16 %v1959, %v1955
      %v2804 = vpack.c.b16 %v1960, %v1956
      %v2805 = vpack.c.b16 %v1965, %v1961
      %v2806 = vpack.c.b16 %v1966, %v1962
      %v2807 = vpack.c.b16 %v1967, %v1963
      %v2808 = vpack.c.b16 %v1968, %v1964
      %v2809 = vpack.c.b16 %v1973, %v1969
      %v2810 = vpack.c.b16 %v1974, %v1970
      %v2811 = vpack.c.b16 %v1975, %v1971
      %v2812 = vpack.c.b16 %v1976, %v1972
      %v2813 = vpack.c.b16 %v1981, %v1977
      %v2814 = vpack.c.b16 %v1982, %v1978
      %v2815 = vpack.c.b16 %v1983, %v1979
      %v2816 = vpack.c.b16 %v1984, %v1980
      %v2817 = vpack.c.b16 %v1989, %v1985
      %v2818 = vpack.c.b16 %v1990, %v1986
      %v2819 = vpack.c.b16 %v1991, %v1987
      %v2820 = vpack.c.b16 %v1992, %v1988
      %v2821 = vpack.c.b16 %v1997, %v1993
      %v2822 = vpack.c.b16 %v1998, %v1994
      %v2823 = vpack.c.b16 %v1999, %v1995
      %v2824 = vpack.c.b16 %v2000, %v1996
      %v2825 = vpack.c.b16 %v2005, %v2001
      %v2826 = vpack.c.b16 %v2006, %v2002
      %v2827 = vpack.c.b16 %v2007, %v2003
      %v2828 = vpack.c.b16 %v2008, %v2004
      %v2829 = vpack.c.b16 %v2013, %v2009
      %v2830 = vpack.c.b16 %v2014, %v2010
      %v2831 = vpack.c.b16 %v2015, %v2011
      %v2832 = vpack.c.b16 %v2016, %v2012
      %v2833 = vpack.c.b16 %v2021, %v2017
      %v2834 = vpack.c.b16 %v2022, %v2018
      %v2835 = vpack.c.b16 %v2023, %v2019
      %v2836 = vpack.c.b16 %v2024, %v2020
      %v2837 = vpack.c.b16 %v2029, %v2025
      %v2838 = vpack.c.b16 %v2030, %v2026
      %v2839 = vpack.c.b16 %v2031, %v2027
      %v2840 = vpack.c.b16 %v2032, %v2028
      %v2841 = vpack.c.b16 %v2037, %v2033
      %v2842 = vpack.c.b16 %v2038, %v2034
      %v2843 = vpack.c.b16 %v2039, %v2035
      %v2844 = vpack.c.b16 %v2040, %v2036
      %v2845 = vpack.c.b16 %v2045, %v2041
      %v2846 = vpack.c.b16 %v2046, %v2042
      %v2847 = vpack.c.b16 %v2047, %v2043
      %v2848 = vpack.c.b16 %v2048, %v2044
      %v2849 = vpack.c.b16 %v2053, %v2049
      %v2850 = vpack.c.b16 %v2054, %v2050
      %v2851 = vpack.c.b16 %v2055, %v2051
      %v2852 = vpack.c.b16 %v2056, %v2052
      %v2853 = vpack.c.b16 %v2061, %v2057
      %v2854 = vpack.c.b16 %v2062, %v2058
      %v2855 = vpack.c.b16 %v2063, %v2059
      %v2856 = vpack.c.b16 %v2064, %v2060
      %v2857 = vpack.c.b16 %v2069, %v2065
      %v2858 = vpack.c.b16 %v2070, %v2066
      %v2859 = vpack.c.b16 %v2071, %v2067
      %v2860 = vpack.c.b16 %v2072, %v2068
      %v2861 = vpack.c.b16 %v2077, %v2073
      %v2862 = vpack.c.b16 %v2078, %v2074
      %v2863 = vpack.c.b16 %v2079, %v2075
      %v2864 = vpack.c.b16 %v2080, %v2076
      %v2865 = vpack.c.b16 %v2085, %v2081
      %v2866 = vpack.c.b16 %v2086, %v2082
      %v2867 = vpack.c.b16 %v2087, %v2083
      %v2868 = vpack.c.b16 %v2088, %v2084
      %v2869 = vpack.c.b16 %v2093, %v2089
      %v2870 = vpack.c.b16 %v2094, %v2090
      %v2871 = vpack.c.b16 %v2095, %v2091
      %v2872 = vpack.c.b16 %v2096, %v2092
      %v2873 = vpack.c.b16 %v2101, %v2097
      %v2874 = vpack.c.b16 %v2102, %v2098
      %v2875 = vpack.c.b16 %v2103, %v2099
      %v2876 = vpack.c.b16 %v2104, %v2100
      %v2877 = vpack.c.b16 %v2109, %v2105
      %v2878 = vpack.c.b16 %v2110, %v2106
      %v2879 = vpack.c.b16 %v2111, %v2107
      %v2880 = vpack.c.b16 %v2112, %v2108
      %v2881 = vpack.c.b16 %v2117, %v2113
      %v2882 = vpack.c.b16 %v2118, %v2114
      %v2883 = vpack.c.b16 %v2119, %v2115
      %v2884 = vpack.c.b16 %v2120, %v2116
      %v2885 = vpack.c.b16 %v2125, %v2121
      %v2886 = vpack.c.b16 %v2126, %v2122
      %v2887 = vpack.c.b16 %v2127, %v2123
      %v2888 = vpack.c.b16 %v2128, %v2124
      %v2889 = vpack.c.b16 %v2133, %v2129
      %v2890 = vpack.c.b16 %v2134, %v2130
      %v2891 = vpack.c.b16 %v2135, %v2131
      %v2892 = vpack.c.b16 %v2136, %v2132
      %v2893 = vpack.c.b16 %v2141, %v2137
      %v2894 = vpack.c.b16 %v2142, %v2138
      %v2895 = vpack.c.b16 %v2143, %v2139
      %v2896 = vpack.c.b16 %v2144, %v2140
      %v2897 = vpack.c.b16 %v2149, %v2145
      %v2898 = vpack.c.b16 %v2150, %v2146
      %v2899 = vpack.c.b16 %v2151, %v2147
      %v2900 = vpack.c.b16 %v2152, %v2148
      %v2901 = vpack.c.b16 %v2157, %v2153
      %v2902 = vpack.c.b16 %v2158, %v2154
      %v2903 = vpack.c.b16 %v2159, %v2155
      %v2904 = vpack.c.b16 %v2160, %v2156
      %v2905 = vpack.c.b16 %v2165, %v2161
      %v2906 = vpack.c.b16 %v2166, %v2162
      %v2907 = vpack.c.b16 %v2167, %v2163
      %v2908 = vpack.c.b16 %v2168, %v2164
      %v2909 = vpack.c.b16 %v2173, %v2169
      %v2910 = vpack.c.b16 %v2174, %v2170
      %v2911 = vpack.c.b16 %v2175, %v2171
      %v2912 = vpack.c.b16 %v2176, %v2172
      %v2913 = vpack.c.b16 %v2181, %v2177
      %v2914 = vpack.c.b16 %v2182, %v2178
      %v2915 = vpack.c.b16 %v2183, %v2179
      %v2916 = vpack.c.b16 %v2184, %v2180
      %v2917 = vpack.c.b16 %v2189, %v2185
      %v2918 = vpack.c.b16 %v2190, %v2186
      %v2919 = vpack.c.b16 %v2191, %v2187
      %v2920 = vpack.c.b16 %v2192, %v2188
      %v2921 = vpack.c.b16 %v2197, %v2193
      %v2922 = vpack.c.b16 %v2198, %v2194
      %v2923 = vpack.c.b16 %v2199, %v2195
      %v2924 = vpack.c.b16 %v2200, %v2196
      %v2925 = vpack.c.b16 %v2205, %v2201
      %v2926 = vpack.c.b16 %v2206, %v2202
      %v2927 = vpack.c.b16 %v2207, %v2203
      %v2928 = vpack.c.b16 %v2208, %v2204
      %v2929 = vpack.c.b16 %v2213, %v2209
      %v2930 = vpack.c.b16 %v2214, %v2210
      %v2931 = vpack.c.b16 %v2215, %v2211
      %v2932 = vpack.c.b16 %v2216, %v2212
      %v2933 = vpack.c.b16 %v2221, %v2217
      %v2934 = vpack.c.b16 %v2222, %v2218
      %v2935 = vpack.c.b16 %v2223, %v2219
      %v2936 = vpack.c.b16 %v2224, %v2220
      %v2937 = vpack.c.b16 %v2229, %v2225
      %v2938 = vpack.c.b16 %v2230, %v2226
      %v2939 = vpack.c.b16 %v2231, %v2227
      %v2940 = vpack.c.b16 %v2232, %v2228
      %v2941 = vpack.c.b16 %v2237, %v2233
      %v2942 = vpack.c.b16 %v2238, %v2234
      %v2943 = vpack.c.b16 %v2239, %v2235
      %v2944 = vpack.c.b16 %v2240, %v2236
      %v2945 = vpack.c.b16 %v2245, %v2241
      %v2946 = vpack.c.b16 %v2246, %v2242
      %v2947 = vpack.c.b16 %v2247, %v2243
      %v2948 = vpack.c.b16 %v2248, %v2244
      %v2949 = vpack.c.b16 %v2253, %v2249
      %v2950 = vpack.c.b16 %v2254, %v2250
      %v2951 = vpack.c.b16 %v2255, %v2251
      %v2952 = vpack.c.b16 %v2256, %v2252
      %v2953 = vpack.c.b16 %v2261, %v2257
      %v2954 = vpack.c.b16 %v2262, %v2258
      %v2955 = vpack.c.b16 %v2263, %v2259
      %v2956 = vpack.c.b16 %v2264, %v2260
      %v2957 = vpack.c.b16 %v2269, %v2265
      %v2958 = vpack.c.b16 %v2270, %v2266
      %v2959 = vpack.c.b16 %v2271, %v2267
      %v2960 = vpack.c.b16 %v2272, %v2268
      %v2961 = vpack.c.b16 %v2277, %v2273
      %v2962 = vpack.c.b16 %v2278, %v2274
      %v2963 = vpack.c.b16 %v2279, %v2275
      %v2964 = vpack.c.b16 %v2280, %v2276
      %v2965 = vpack.c.b16 %v2285, %v2281
      %v2966 = vpack.c.b16 %v2286, %v2282
      %v2967 = vpack.c.b16 %v2287, %v2283
      %v2968 = vpack.c.b16 %v2288, %v2284
      %v2969 = vpack.c.b16 %v2293, %v2289
      %v2970 = vpack.c.b16 %v2294, %v2290
      %v2971 = vpack.c.b16 %v2295, %v2291
      %v2972 = vpack.c.b16 %v2296, %v2292
      %v2973 = vpack.c.b16 %v2301, %v2297
      %v2974 = vpack.c.b16 %v2302, %v2298
      %v2975 = vpack.c.b16 %v2303, %v2299
      %v2976 = vpack.c.b16 %v2304, %v2300
      %v2977 = vpack.c.b16 %v2309, %v2305
      %v2978 = vpack.c.b16 %v2310, %v2306
      %v2979 = vpack.c.b16 %v2311, %v2307
      %v2980 = vpack.c.b16 %v2312, %v2308
      %v2981 = vpack.c.b16 %v2317, %v2313
      %v2982 = vpack.c.b16 %v2318, %v2314
      %v2983 = vpack.c.b16 %v2319, %v2315
      %v2984 = vpack.c.b16 %v2320, %v2316
      %v2985 = vpack.c.b16 %v2325, %v2321
      %v2986 = vpack.c.b16 %v2326, %v2322
      %v2987 = vpack.c.b16 %v2327, %v2323
      %v2988 = vpack.c.b16 %v2328, %v2324
      %v2989 = vpack.c.b16 %v2333, %v2329
      %v2990 = vpack.c.b16 %v2334, %v2330
      %v2991 = vpack.c.b16 %v2335, %v2331
      %v2992 = vpack.c.b16 %v2336, %v2332
      %v2993 = vpack.c.b16 %v2341, %v2337
      %v2994 = vpack.c.b16 %v2342, %v2338
      %v2995 = vpack.c.b16 %v2343, %v2339
      %v2996 = vpack.c.b16 %v2344, %v2340
      %v2997 = vpack.c.b16 %v2349, %v2345
      %v2998 = vpack.c.b16 %v2350, %v2346
      %v2999 = vpack.c.b16 %v2351, %v2347
      %v3000 = vpack.c.b16 %v2352, %v2348
      %v3001 = vpack.c.b16 %v2357, %v2353
      %v3002 = vpack.c.b16 %v2358, %v2354
      %v3003 = vpack.c.b16 %v2359, %v2355
      %v3004 = vpack.c.b16 %v2360, %v2356
      %v3005 = vpack.c.b16 %v2365, %v2361
      %v3006 = vpack.c.b16 %v2366, %v2362
      %v3007 = vpack.c.b16 %v2367, %v2363
      %v3008 = vpack.c.b16 %v2368, %v2364
      %v3009 = vpack.c.b16 %v2373, %v2369
      %v3010 = vpack.c.b16 %v2374, %v2370
      %v3011 = vpack.c.b16 %v2375, %v2371
      %v3012 = vpack.c.b16 %v2376, %v2372
      %v3013 = vpack.c.b16 %v2381, %v2377
      %v3014 = vpack.c.b16 %v2382, %v2378
      %v3015 = vpack.c.b16 %v2383, %v2379
      %v3016 = vpack.c.b16 %v2384, %v2380
      %v3017 = vpack.c.b16 %v2389, %v2385
      %v3018 = vpack.c.b16 %v2390, %v2386
      %v3019 = vpack.c.b16 %v2391, %v2387
      %v3020 = vpack.c.b16 %v2392, %v2388
      %v3021 = vpack.c.b16 %v2397, %v2393
      %v3022 = vpack.c.b16 %v2398, %v2394
      %v3023 = vpack.c.b16 %v2399, %v2395
      %v3024 = vpack.c.b16 %v2400, %v2396
      %v3025 = vpack.c.b16 %v2405, %v2401
      %v3026 = vpack.c.b16 %v2406, %v2402
      %v3027 = vpack.c.b16 %v2407, %v2403
      %v3028 = vpack.c.b16 %v2408, %v2404
      %v3029 = vpack.c.b16 %v2413, %v2409
      %v3030 = vpack.c.b16 %v2414, %v2410
      %v3031 = vpack.c.b16 %v2415, %v2411
      %v3032 = vpack.c.b16 %v2416, %v2412
      %v3033 = vpack.c.b16 %v2421, %v2417
      %v3034 = vpack.c.b16 %v2422, %v2418
      %v3035 = vpack.c.b16 %v2423, %v2419
      %v3036 = vpack.c.b16 %v2424, %v2420
      %v3037 = vpack.c.b16 %v2429, %v2425
      %v3038 = vpack.c.b16 %v2430, %v2426
      %v3039 = vpack.c.b16 %v2431, %v2427
      %v3040 = vpack.c.b16 %v2432, %v2428
      %v3041 = vpack.c.b16 %v2437, %v2433
      %v3042 = vpack.c.b16 %v2438, %v2434
      %v3043 = vpack.c.b16 %v2439, %v2435
      %v3044 = vpack.c.b16 %v2440, %v2436
      %v3045 = vpack.c.b16 %v2445, %v2441
      %v3046 = vpack.c.b16 %v2446, %v2442
      %v3047 = vpack.c.b16 %v2447, %v2443
      %v3048 = vpack.c.b16 %v2448, %v2444
      %v3049 = vpack.c.b16 %v2453, %v2449
      %v3050 = vpack.c.b16 %v2454, %v2450
      %v3051 = vpack.c.b16 %v2455, %v2451
      %v3052 = vpack.c.b16 %v2456, %v2452
      %v3053 = vpack.c.b16 %v2461, %v2457
      %v3054 = vpack.c.b16 %v2462, %v2458
      %v3055 = vpack.c.b16 %v2463, %v2459
      %v3056 = vpack.c.b16 %v2464, %v2460
      %v3057 = vpack.c.b16 %v2469, %v2465
      %v3058 = vpack.c.b16 %v2470, %v2466
      %v3059 = vpack.c.b16 %v2471, %v2467
      %v3060 = vpack.c.b16 %v2472, %v2468
      %v3061 = vpack.c.b16 %v2477, %v2473
      %v3062 = vpack.c.b16 %v2478, %v2474
      %v3063 = vpack.c.b16 %v2479, %v2475
      %v3064 = vpack.c.b16 %v2480, %v2476
      %v3065 = vpack.c.b16 %v2485, %v2481
      %v3066 = vpack.c.b16 %v2486, %v2482
      %v3067 = vpack.c.b16 %v2487, %v2483
      %v3068 = vpack.c.b16 %v2488, %v2484
      %v3069 = vpack.c.b16 %v2493, %v2489
      %v3070 = vpack.c.b16 %v2494, %v2490
      %v3071 = vpack.c.b16 %v2495, %v2491
      %v3072 = vpack.c.b16 %v2496, %v2492
      %v3073 = vpack.c.b16 %v2501, %v2497
      %v3074 = vpack.c.b16 %v2502, %v2498
      %v3075 = vpack.c.b16 %v2503, %v2499
      %v3076 = vpack.c.b16 %v2504, %v2500
      %v3077 = vpack.c.b16 %v2509, %v2505
      %v3078 = vpack.c.b16 %v2510, %v2506
      %v3079 = vpack.c.b16 %v2511, %v2507
      %v3080 = vpack.c.b16 %v2512, %v2508
      %v3081 = vpack.c.b16 %v2517, %v2513
      %v3082 = vpack.c.b16 %v2518, %v2514
      %v3083 = vpack.c.b16 %v2519, %v2515
      %v3084 = vpack.c.b16 %v2520, %v2516
      %v3085 = vpack.c.b16 %v2525, %v2521
      %v3086 = vpack.c.b16 %v2526, %v2522
      %v3087 = vpack.c.b16 %v2527, %v2523
      %v3088 = vpack.c.b16 %v2528, %v2524
      %v3089 = vpack.c.b16 %v2533, %v2529
      %v3090 = vpack.c.b16 %v2534, %v2530
      %v3091 = vpack.c.b16 %v2535, %v2531
      %v3092 = vpack.c.b16 %v2536, %v2532
      %v3093 = vpack.c.b16 %v2541, %v2537
      %v3094 = vpack.c.b16 %v2542, %v2538
      %v3095 = vpack.c.b16 %v2543, %v2539
      %v3096 = vpack.c.b16 %v2544, %v2540
      %v3097 = vpack.c.b16 %v2549, %v2545
      %v3098 = vpack.c.b16 %v2550, %v2546
      %v3099 = vpack.c.b16 %v2551, %v2547
      %v3100 = vpack.c.b16 %v2552, %v2548
      %v3101 = vpack.c.b16 %v2557, %v2553
      %v3102 = vpack.c.b16 %v2558, %v2554
      %v3103 = vpack.c.b16 %v2559, %v2555
      %v3104 = vpack.c.b16 %v2560, %v2556
      %v3105 = vpack.c.b16 %v2565, %v2561
      %v3106 = vpack.c.b16 %v2566, %v2562
      %v3107 = vpack.c.b16 %v2567, %v2563
      %v3108 = vpack.c.b16 %v2568, %v2564
      %v3109 = vpack.c.b16 %v2573, %v2569
      %v3110 = vpack.c.b16 %v2574, %v2570
      %v3111 = vpack.c.b16 %v2575, %v2571
      %v3112 = vpack.c.b16 %v2576, %v2572
      %v3113 = vpack.c.b16 %v2581, %v2577
      %v3114 = vpack.c.b16 %v2582, %v2578
      %v3115 = vpack.c.b16 %v2583, %v2579
      %v3116 = vpack.c.b16 %v2584, %v2580
      %v3117 = vpack.c.b16 %v2589, %v2585
      %v3118 = vpack.c.b16 %v2590, %v2586
      %v3119 = vpack.c.b16 %v2591, %v2587
      %v3120 = vpack.c.b16 %v2592, %v2588
      %v3121 = vpack.c.b16 %v2597, %v2593
      %v3122 = vpack.c.b16 %v2598, %v2594
      %v3123 = vpack.c.b16 %v2599, %v2595
      %v3124 = vpack.c.b16 %v2600, %v2596
      %v3125 = vpack.c.b16 %v2605, %v2601
      %v3126 = vpack.c.b16 %v2606, %v2602
      %v3127 = vpack.c.b16 %v2607, %v2603
      %v3128 = vpack.c.b16 %v2608, %v2604
      %v3129 = vpack.c.b16 %v2613, %v2609
      %v3130 = vpack.c.b16 %v2614, %v2610
      %v3131 = vpack.c.b16 %v2615, %v2611
      %v3132 = vpack.c.b16 %v2616, %v2612
      %v3133 = vpack.c.b16 %v2621, %v2617
      %v3134 = vpack.c.b16 %v2622, %v2618
      %v3135 = vpack.c.b16 %v2623, %v2619
      %v3136 = vpack.c.b16 %v2624, %v2620
      %3649 = vmatprep.subr.bf16.mxu0 %v2626
      %3650 = vmatpush1.bf16.msra.mxu0 %v2625
      %3651 = vmatprep.subr.bf16.mxu0 %v2630
      %3652 = vmatpush1.bf16.msra.mxu0 %v2629
      %3653 = vmatprep.subr.bf16.mxu0 %v2634
      %3654 = vmatpush1.bf16.msra.mxu0 %v2633
      %3655 = vmatprep.subr.bf16.mxu0 %v2638
      %3656 = vmatpush1.bf16.msra.mxu0 %v2637
      %3657 = vmatprep.subr.bf16.mxu0 %v2642
      %3658 = vmatpush1.bf16.msra.mxu0 %v2641
      %3659 = vmatprep.subr.bf16.mxu0 %v2646
      %3660 = vmatpush1.bf16.msra.mxu0 %v2645
      %3661 = vmatprep.subr.bf16.mxu0 %v2650
      %3662 = vmatpush1.bf16.msra.mxu0 %v2649
      %3663 = vmatprep.subr.bf16.mxu0 %v2654
      %3664 = vmatpush1.bf16.msra.mxu0 %v2653
      %3665 = vmatprep.subr.bf16.mxu0 %v2658
      %3666 = vmatpush1.bf16.msra.mxu0 %v2657
      %3667 = vmatprep.subr.bf16.mxu0 %v2662
      %3668 = vmatpush1.bf16.msra.mxu0 %v2661
      %3669 = vmatprep.subr.bf16.mxu0 %v2666
      %3670 = vmatpush1.bf16.msra.mxu0 %v2665
      %3671 = vmatprep.subr.bf16.mxu0 %v2670
      %3672 = vmatpush1.bf16.msra.mxu0 %v2669
      %3673 = vmatprep.subr.bf16.mxu0 %v2674
      %3674 = vmatpush1.bf16.msra.mxu0 %v2673
      %3675 = vmatprep.subr.bf16.mxu0 %v2678
      %3676 = vmatpush1.bf16.msra.mxu0 %v2677
      %3677 = vmatprep.subr.bf16.mxu0 %v2682
      %3678 = vmatpush1.bf16.msra.mxu0 %v2681
      %3679 = vmatprep.subr.bf16.mxu0 %v2686
      %3680 = vmatpush1.bf16.msra.mxu0 %v2685
      %3681 = vmatprep.mubr.bf16.mxu0 %v1058
      %3682 = vmatmul.mubr.bf16.gmra.mrb[0].mxu0 %v1057
      %v3683 = vpop.f32.mrb[0].mxu0
      %v3684 = vadd.f32 0.0, %v3683
      %v3685 = vpop.f32.mrb[0].mxu0
      %v3686 = vadd.f32 0.0, %v3685
      %v3687 = vpop.f32.mrb[0].mxu0
      %v3688 = vadd.f32 0.0, %v3687
      %v3689 = vpop.f32.mrb[0].mxu0
      %v3690 = vadd.f32 0.0, %v3689
      %3691 = vdwg.mxu0
      %3692 = vmatprep.subr.bf16.mxu0 %v2690
      %3693 = vmatpush1.bf16.msra.mxu0 %v2689
      %3694 = vmatprep.subr.bf16.mxu0 %v2694
      %3695 = vmatpush1.bf16.msra.mxu0 %v2693
      %3696 = vmatprep.subr.bf16.mxu0 %v2698
      %3697 = vmatpush1.bf16.msra.mxu0 %v2697
      %3698 = vmatprep.subr.bf16.mxu0 %v2702
      %3699 = vmatpush1.bf16.msra.mxu0 %v2701
      %3700 = vmatprep.subr.bf16.mxu0 %v2706
      %3701 = vmatpush1.bf16.msra.mxu0 %v2705
      %3702 = vmatprep.subr.bf16.mxu0 %v2710
      %3703 = vmatpush1.bf16.msra.mxu0 %v2709
      %3704 = vmatprep.subr.bf16.mxu0 %v2714
      %3705 = vmatpush1.bf16.msra.mxu0 %v2713
      %3706 = vmatprep.subr.bf16.mxu0 %v2718
      %3707 = vmatpush1.bf16.msra.mxu0 %v2717
      %3708 = vmatprep.subr.bf16.mxu0 %v2722
      %3709 = vmatpush1.bf16.msra.mxu0 %v2721
      %3710 = vmatprep.subr.bf16.mxu0 %v2726
      %3711 = vmatpush1.bf16.msra.mxu0 %v2725
      %3712 = vmatprep.subr.bf16.mxu0 %v2730
      %3713 = vmatpush1.bf16.msra.mxu0 %v2729
      %3714 = vmatprep.subr.bf16.mxu0 %v2734
      %3715 = vmatpush1.bf16.msra.mxu0 %v2733
      %3716 = vmatprep.subr.bf16.mxu0 %v2738
      %3717 = vmatpush1.bf16.msra.mxu0 %v2737
      %3718 = vmatprep.subr.bf16.mxu0 %v2742
      %3719 = vmatpush1.bf16.msra.mxu0 %v2741
      %3720 = vmatprep.subr.bf16.mxu0 %v2746
      %3721 = vmatpush1.bf16.msra.mxu0 %v2745
      %3722 = vmatprep.subr.bf16.mxu0 %v2750
      %3723 = vmatpush1.bf16.msra.mxu0 %v2749
      %3724 = vmatprep.mubr.bf16.mxu0 %v1060
      %3725 = vmatmul.mubr.bf16.gmra.mrb[0].mxu0 %v1059
      %v3726 = vpop.f32.mrb[0].mxu0
      %v3727 = vadd.f32 %v3684, %v3726
      %v3728 = vpop.f32.mrb[0].mxu0
      %v3729 = vadd.f32 %v3686, %v3728
      %v3730 = vpop.f32.mrb[0].mxu0
      %v3731 = vadd.f32 %v3688, %v3730
      %v3732 = vpop.f32.mrb[0].mxu0
      %v3733 = vadd.f32 %v3690, %v3732
      %3734 = vdwg.mxu0
      %3735 = vmatprep.subr.bf16.mxu0 %v2754
      %3736 = vmatpush1.bf16.msra.mxu0 %v2753
      %3737 = vmatprep.subr.bf16.mxu0 %v2758
      %3738 = vmatpush1.bf16.msra.mxu0 %v2757
      %3739 = vmatprep.subr.bf16.mxu0 %v2762
      %3740 = vmatpush1.bf16.msra.mxu0 %v2761
      %3741 = vmatprep.subr.bf16.mxu0 %v2766
      %3742 = vmatpush1.bf16.msra.mxu0 %v2765
      %3743 = vmatprep.subr.bf16.mxu0 %v2770
      %3744 = vmatpush1.bf16.msra.mxu0 %v2769
      %3745 = vmatprep.subr.bf16.mxu0 %v2774
      %3746 = vmatpush1.bf16.msra.mxu0 %v2773
      %3747 = vmatprep.subr.bf16.mxu0 %v2778
      %3748 = vmatpush1.bf16.msra.mxu0 %v2777
      %3749 = vmatprep.subr.bf16.mxu0 %v2782
      %3750 = vmatpush1.bf16.msra.mxu0 %v2781
      %3751 = vmatprep.subr.bf16.mxu0 %v2786
      %3752 = vmatpush1.bf16.msra.mxu0 %v2785
      %3753 = vmatprep.subr.bf16.mxu0 %v2790
      %3754 = vmatpush1.bf16.msra.mxu0 %v2789
      %3755 = vmatprep.subr.bf16.mxu0 %v2794
      %3756 = vmatpush1.bf16.msra.mxu0 %v2793
      %3757 = vmatprep.subr.bf16.mxu0 %v2798
      %3758 = vmatpush1.bf16.msra.mxu0 %v2797
      %3759 = vmatprep.subr.bf16.mxu0 %v2802
      %3760 = vmatpush1.bf16.msra.mxu0 %v2801
      %3761 = vmatprep.subr.bf16.mxu0 %v2806
      %3762 = vmatpush1.bf16.msra.mxu0 %v2805
      %3763 = vmatprep.subr.bf16.mxu0 %v2810
      %3764 = vmatpush1.bf16.msra.mxu0 %v2809
      %3765 = vmatprep.subr.bf16.mxu0 %v2814
      %3766 = vmatpush1.bf16.msra.mxu0 %v2813
      %3767 = vmatprep.mubr.bf16.mxu0 %v1062
      %3768 = vmatmul.mubr.bf16.gmra.mrb[0].mxu0 %v1061
      %v3769 = vpop.f32.mrb[0].mxu0
      %v3770 = vadd.f32 %v3727, %v3769
      %v3771 = vpop.f32.mrb[0].mxu0
      %v3772 = vadd.f32 %v3729, %v3771
      %v3773 = vpop.f32.mrb[0].mxu0
      %v3774 = vadd.f32 %v3731, %v3773
      %v3775 = vpop.f32.mrb[0].mxu0
      %v3776 = vadd.f32 %v3733, %v3775
      %3777 = vdwg.mxu0
      %3778 = vmatprep.subr.bf16.mxu0 %v2818
      %3779 = vmatpush1.bf16.msra.mxu0 %v2817
      %3780 = vmatprep.subr.bf16.mxu0 %v2822
      %3781 = vmatpush1.bf16.msra.mxu0 %v2821
      %3782 = vmatprep.subr.bf16.mxu0 %v2826
      %3783 = vmatpush1.bf16.msra.mxu0 %v2825
      %3784 = vmatprep.subr.bf16.mxu0 %v2830
      %3785 = vmatpush1.bf16.msra.mxu0 %v2829
      %3786 = vmatprep.subr.bf16.mxu0 %v2834
      %3787 = vmatpush1.bf16.msra.mxu0 %v2833
      %3788 = vmatprep.subr.bf16.mxu0 %v2838
      %3789 = vmatpush1.bf16.msra.mxu0 %v2837
      %3790 = vmatprep.subr.bf16.mxu0 %v2842
      %3791 = vmatpush1.bf16.msra.mxu0 %v2841
      %3792 = vmatprep.subr.bf16.mxu0 %v2846
      %3793 = vmatpush1.bf16.msra.mxu0 %v2845
      %3794 = vmatprep.subr.bf16.mxu0 %v2850
      %3795 = vmatpush1.bf16.msra.mxu0 %v2849
      %3796 = vmatprep.subr.bf16.mxu0 %v2854
      %3797 = vmatpush1.bf16.msra.mxu0 %v2853
      %3798 = vmatprep.subr.bf16.mxu0 %v2858
      %3799 = vmatpush1.bf16.msra.mxu0 %v2857
      %3800 = vmatprep.subr.bf16.mxu0 %v2862
      %3801 = vmatpush1.bf16.msra.mxu0 %v2861
      %3802 = vmatprep.subr.bf16.mxu0 %v2866
      %3803 = vmatpush1.bf16.msra.mxu0 %v2865
      %3804 = vmatprep.subr.bf16.mxu0 %v2870
      %3805 = vmatpush1.bf16.msra.mxu0 %v2869
      %3806 = vmatprep.subr.bf16.mxu0 %v2874
      %3807 = vmatpush1.bf16.msra.mxu0 %v2873
      %3808 = vmatprep.subr.bf16.mxu0 %v2878
      %3809 = vmatpush1.bf16.msra.mxu0 %v2877
      %3810 = vmatprep.mubr.bf16.mxu0 %v1064
      %3811 = vmatmul.mubr.bf16.gmra.mrb[0].mxu0 %v1063
      %v3812 = vpop.f32.mrb[0].mxu0
      %v3813 = vadd.f32 %v3770, %v3812
      %v3814 = vpop.f32.mrb[0].mxu0
      %v3815 = vadd.f32 %v3772, %v3814
      %v3816 = vpop.f32.mrb[0].mxu0
      %v3817 = vadd.f32 %v3774, %v3816
      %v3818 = vpop.f32.mrb[0].mxu0
      %v3819 = vadd.f32 %v3776, %v3818
      %3820 = vdwg.mxu0
      %3821 = vmatprep.subr.bf16.mxu0 %v2882
      %3822 = vmatpush1.bf16.msra.mxu0 %v2881
      %3823 = vmatprep.subr.bf16.mxu0 %v2886
      %3824 = vmatpush1.bf16.msra.mxu0 %v2885
      %3825 = vmatprep.subr.bf16.mxu0 %v2890
      %3826 = vmatpush1.bf16.msra.mxu0 %v2889
      %3827 = vmatprep.subr.bf16.mxu0 %v2894
      %3828 = vmatpush1.bf16.msra.mxu0 %v2893
      %3829 = vmatprep.subr.bf16.mxu0 %v2898
      %3830 = vmatpush1.bf16.msra.mxu0 %v2897
      %3831 = vmatprep.subr.bf16.mxu0 %v2902
      %3832 = vmatpush1.bf16.msra.mxu0 %v2901
      %3833 = vmatprep.subr.bf16.mxu0 %v2906
      %3834 = vmatpush1.bf16.msra.mxu0 %v2905
      %3835 = vmatprep.subr.bf16.mxu0 %v2910
      %3836 = vmatpush1.bf16.msra.mxu0 %v2909
      %3837 = vmatprep.subr.bf16.mxu0 %v2914
      %3838 = vmatpush1.bf16.msra.mxu0 %v2913
      %3839 = vmatprep.subr.bf16.mxu0 %v2918
      %3840 = vmatpush1.bf16.msra.mxu0 %v2917
      %3841 = vmatprep.subr.bf16.mxu0 %v2922
      %3842 = vmatpush1.bf16.msra.mxu0 %v2921
      %3843 = vmatprep.subr.bf16.mxu0 %v2926
      %3844 = vmatpush1.bf16.msra.mxu0 %v2925
      %3845 = vmatprep.subr.bf16.mxu0 %v2930
      %3846 = vmatpush1.bf16.msra.mxu0 %v2929
      %3847 = vmatprep.subr.bf16.mxu0 %v2934
      %3848 = vmatpush1.bf16.msra.mxu0 %v2933
      %3849 = vmatprep.subr.bf16.mxu0 %v2938
      %3850 = vmatpush1.bf16.msra.mxu0 %v2937
      %3851 = vmatprep.subr.bf16.mxu0 %v2942
      %3852 = vmatpush1.bf16.msra.mxu0 %v2941
      %3853 = vmatprep.mubr.bf16.mxu0 %v1066
      %3854 = vmatmul.mubr.bf16.gmra.mrb[0].mxu0 %v1065
      %v3855 = vpop.f32.mrb[0].mxu0
      %v3856 = vadd.f32 %v3813, %v3855
      %v3857 = vpop.f32.mrb[0].mxu0
      %v3858 = vadd.f32 %v3815, %v3857
      %v3859 = vpop.f32.mrb[0].mxu0
      %v3860 = vadd.f32 %v3817, %v3859
      %v3861 = vpop.f32.mrb[0].mxu0
      %v3862 = vadd.f32 %v3819, %v3861
      %3863 = vdwg.mxu0
      %3864 = vmatprep.subr.bf16.mxu0 %v2946
      %3865 = vmatpush1.bf16.msra.mxu0 %v2945
      %3866 = vmatprep.subr.bf16.mxu0 %v2950
      %3867 = vmatpush1.bf16.msra.mxu0 %v2949
      %3868 = vmatprep.subr.bf16.mxu0 %v2954
      %3869 = vmatpush1.bf16.msra.mxu0 %v2953
      %3870 = vmatprep.subr.bf16.mxu0 %v2958
      %3871 = vmatpush1.bf16.msra.mxu0 %v2957
      %3872 = vmatprep.subr.bf16.mxu0 %v2962
      %3873 = vmatpush1.bf16.msra.mxu0 %v2961
      %3874 = vmatprep.subr.bf16.mxu0 %v2966
      %3875 = vmatpush1.bf16.msra.mxu0 %v2965
      %3876 = vmatprep.subr.bf16.mxu0 %v2970
      %3877 = vmatpush1.bf16.msra.mxu0 %v2969
      %3878 = vmatprep.subr.bf16.mxu0 %v2974
      %3879 = vmatpush1.bf16.msra.mxu0 %v2973
      %3880 = vmatprep.subr.bf16.mxu0 %v2978
      %3881 = vmatpush1.bf16.msra.mxu0 %v2977
      %3882 = vmatprep.subr.bf16.mxu0 %v2982
      %3883 = vmatpush1.bf16.msra.mxu0 %v2981
      %3884 = vmatprep.subr.bf16.mxu0 %v2986
      %3885 = vmatpush1.bf16.msra.mxu0 %v2985
      %3886 = vmatprep.subr.bf16.mxu0 %v2990
      %3887 = vmatpush1.bf16.msra.mxu0 %v2989
      %3888 = vmatprep.subr.bf16.mxu0 %v2994
      %3889 = vmatpush1.bf16.msra.mxu0 %v2993
      %3890 = vmatprep.subr.bf16.mxu0 %v2998
      %3891 = vmatpush1.bf16.msra.mxu0 %v2997
      %3892 = vmatprep.subr.bf16.mxu0 %v3002
      %3893 = vmatpush1.bf16.msra.mxu0 %v3001
      %3894 = vmatprep.subr.bf16.mxu0 %v3006
      %3895 = vmatpush1.bf16.msra.mxu0 %v3005
      %3896 = vmatprep.mubr.bf16.mxu0 %v1068
      %3897 = vmatmul.mubr.bf16.gmra.mrb[0].mxu0 %v1067
      %v3898 = vpop.f32.mrb[0].mxu0
      %v3899 = vadd.f32 %v3856, %v3898
      %v3900 = vpop.f32.mrb[0].mxu0
      %v3901 = vadd.f32 %v3858, %v3900
      %v3902 = vpop.f32.mrb[0].mxu0
      %v3903 = vadd.f32 %v3860, %v3902
      %v3904 = vpop.f32.mrb[0].mxu0
      %v3905 = vadd.f32 %v3862, %v3904
      %3906 = vdwg.mxu0
      %3907 = vmatprep.subr.bf16.mxu0 %v3010
      %3908 = vmatpush1.bf16.msra.mxu0 %v3009
      %3909 = vmatprep.subr.bf16.mxu0 %v3014
      %3910 = vmatpush1.bf16.msra.mxu0 %v3013
      %3911 = vmatprep.subr.bf16.mxu0 %v3018
      %3912 = vmatpush1.bf16.msra.mxu0 %v3017
      %3913 = vmatprep.subr.bf16.mxu0 %v3022
      %3914 = vmatpush1.bf16.msra.mxu0 %v3021
      %3915 = vmatprep.subr.bf16.mxu0 %v3026
      %3916 = vmatpush1.bf16.msra.mxu0 %v3025
      %3917 = vmatprep.subr.bf16.mxu0 %v3030
      %3918 = vmatpush1.bf16.msra.mxu0 %v3029
      %3919 = vmatprep.subr.bf16.mxu0 %v3034
      %3920 = vmatpush1.bf16.msra.mxu0 %v3033
      %3921 = vmatprep.subr.bf16.mxu0 %v3038
      %3922 = vmatpush1.bf16.msra.mxu0 %v3037
      %3923 = vmatprep.subr.bf16.mxu0 %v3042
      %3924 = vmatpush1.bf16.msra.mxu0 %v3041
      %3925 = vmatprep.subr.bf16.mxu0 %v3046
      %3926 = vmatpush1.bf16.msra.mxu0 %v3045
      %3927 = vmatprep.subr.bf16.mxu0 %v3050
      %3928 = vmatpush1.bf16.msra.mxu0 %v3049
      %3929 = vmatprep.subr.bf16.mxu0 %v3054
      %3930 = vmatpush1.bf16.msra.mxu0 %v3053
      %3931 = vmatprep.subr.bf16.mxu0 %v3058
      %3932 = vmatpush1.bf16.msra.mxu0 %v3057
      %3933 = vmatprep.subr.bf16.mxu0 %v3062
      %3934 = vmatpush1.bf16.msra.mxu0 %v3061
      %3935 = vmatprep.subr.bf16.mxu0 %v3066
      %3936 = vmatpush1.bf16.msra.mxu0 %v3065
      %3937 = vmatprep.subr.bf16.mxu0 %v3070
      %3938 = vmatpush1.bf16.msra.mxu0 %v3069
      %3939 = vmatprep.mubr.bf16.mxu0 %v1070
      %3940 = vmatmul.mubr.bf16.gmra.mrb[0].mxu0 %v1069
      %v3941 = vpop.f32.mrb[0].mxu0
      %v3942 = vadd.f32 %v3899, %v3941
      %v3943 = vpop.f32.mrb[0].mxu0
      %v3944 = vadd.f32 %v3901, %v3943
      %v3945 = vpop.f32.mrb[0].mxu0
      %v3946 = vadd.f32 %v3903, %v3945
      %v3947 = vpop.f32.mrb[0].mxu0
      %v3948 = vadd.f32 %v3905, %v3947
      %3949 = vdwg.mxu0
      %3950 = vmatprep.subr.bf16.mxu0 %v3074
      %3951 = vmatpush1.bf16.msra.mxu0 %v3073
      %3952 = vmatprep.subr.bf16.mxu0 %v3078
      %3953 = vmatpush1.bf16.msra.mxu0 %v3077
      %3954 = vmatprep.subr.bf16.mxu0 %v3082
      %3955 = vmatpush1.bf16.msra.mxu0 %v3081
      %3956 = vmatprep.subr.bf16.mxu0 %v3086
      %3957 = vmatpush1.bf16.msra.mxu0 %v3085
      %3958 = vmatprep.subr.bf16.mxu0 %v3090
      %3959 = vmatpush1.bf16.msra.mxu0 %v3089
      %3960 = vmatprep.subr.bf16.mxu0 %v3094
      %3961 = vmatpush1.bf16.msra.mxu0 %v3093
      %3962 = vmatprep.subr.bf16.mxu0 %v3098
      %3963 = vmatpush1.bf16.msra.mxu0 %v3097
      %3964 = vmatprep.subr.bf16.mxu0 %v3102
      %3965 = vmatpush1.bf16.msra.mxu0 %v3101
      %3966 = vmatprep.subr.bf16.mxu0 %v3106
      %3967 = vmatpush1.bf16.msra.mxu0 %v3105
      %3968 = vmatprep.subr.bf16.mxu0 %v3110
      %3969 = vmatpush1.bf16.msra.mxu0 %v3109
      %3970 = vmatprep.subr.bf16.mxu0 %v3114
      %3971 = vmatpush1.bf16.msra.mxu0 %v3113
      %3972 = vmatprep.subr.bf16.mxu0 %v3118
      %3973 = vmatpush1.bf16.msra.mxu0 %v3117
      %3974 = vmatprep.subr.bf16.mxu0 %v3122
      %3975 = vmatpush1.bf16.msra.mxu0 %v3121
      %3976 = vmatprep.subr.bf16.mxu0 %v3126
      %3977 = vmatpush1.bf16.msra.mxu0 %v3125
      %3978 = vmatprep.subr.bf16.mxu0 %v3130
      %3979 = vmatpush1.bf16.msra.mxu0 %v3129
      %3980 = vmatprep.subr.bf16.mxu0 %v3134
      %3981 = vmatpush1.bf16.msra.mxu0 %v3133
      %3982 = vmatprep.mubr.bf16.mxu0 %v1072
      %3983 = vmatmul.mubr.bf16.gmra.mrb[0].mxu0 %v1071
      %v3984 = vpop.f32.mrb[0].mxu0
      %v3985 = vadd.f32 %v3942, %v3984
      %v3986 = vpop.f32.mrb[0].mxu0
      %v3987 = vadd.f32 %v3944, %v3986
      %v3988 = vpop.f32.mrb[0].mxu0
      %v3989 = vadd.f32 %v3946, %v3988
      %v3990 = vpop.f32.mrb[0].mxu0
      %v3991 = vadd.f32 %v3948, %v3990
      %3992 = vdwg.mxu0
      %3993 = vmatprep.subr.bf16.mxu0 %v2628
      %3994 = vmatpush1.bf16.msra.mxu0 %v2627
      %3995 = vmatprep.subr.bf16.mxu0 %v2632
      %3996 = vmatpush1.bf16.msra.mxu0 %v2631
      %3997 = vmatprep.subr.bf16.mxu0 %v2636
      %3998 = vmatpush1.bf16.msra.mxu0 %v2635
      %3999 = vmatprep.subr.bf16.mxu0 %v2640
      %4000 = vmatpush1.bf16.msra.mxu0 %v2639
      %4001 = vmatprep.subr.bf16.mxu0 %v2644
      %4002 = vmatpush1.bf16.msra.mxu0 %v2643
      %4003 = vmatprep.subr.bf16.mxu0 %v2648
      %4004 = vmatpush1.bf16.msra.mxu0 %v2647
      %4005 = vmatprep.subr.bf16.mxu0 %v2652
      %4006 = vmatpush1.bf16.msra.mxu0 %v2651
      %4007 = vmatprep.subr.bf16.mxu0 %v2656
      %4008 = vmatpush1.bf16.msra.mxu0 %v2655
      %4009 = vmatprep.subr.bf16.mxu0 %v2660
      %4010 = vmatpush1.bf16.msra.mxu0 %v2659
      %4011 = vmatprep.subr.bf16.mxu0 %v2664
      %4012 = vmatpush1.bf16.msra.mxu0 %v2663
      %4013 = vmatprep.subr.bf16.mxu0 %v2668
      %4014 = vmatpush1.bf16.msra.mxu0 %v2667
      %4015 = vmatprep.subr.bf16.mxu0 %v2672
      %4016 = vmatpush1.bf16.msra.mxu0 %v2671
      %4017 = vmatprep.subr.bf16.mxu0 %v2676
      %4018 = vmatpush1.bf16.msra.mxu0 %v2675
      %4019 = vmatprep.subr.bf16.mxu0 %v2680
      %4020 = vmatpush1.bf16.msra.mxu0 %v2679
      %4021 = vmatprep.subr.bf16.mxu0 %v2684
      %4022 = vmatpush1.bf16.msra.mxu0 %v2683
      %4023 = vmatprep.subr.bf16.mxu0 %v2688
      %4024 = vmatpush1.bf16.msra.mxu0 %v2687
      %4025 = vmatprep.mubr.bf16.mxu0 %v1058
      %4026 = vmatmul.mubr.bf16.gmra.mrb[0].mxu0 %v1057
      %v4027 = vpop.f32.mrb[0].mxu0
      %v4028 = vadd.f32 0.0, %v4027
      %v4029 = vpop.f32.mrb[0].mxu0
      %v4030 = vadd.f32 0.0, %v4029
      %v4031 = vpop.f32.mrb[0].mxu0
      %v4032 = vadd.f32 0.0, %v4031
      %v4033 = vpop.f32.mrb[0].mxu0
      %v4034 = vadd.f32 0.0, %v4033
      %4035 = vdwg.mxu0
      %4036 = vmatprep.subr.bf16.mxu0 %v2692
      %4037 = vmatpush1.bf16.msra.mxu0 %v2691
      %4038 = vmatprep.subr.bf16.mxu0 %v2696
      %4039 = vmatpush1.bf16.msra.mxu0 %v2695
      %4040 = vmatprep.subr.bf16.mxu0 %v2700
      %4041 = vmatpush1.bf16.msra.mxu0 %v2699
      %4042 = vmatprep.subr.bf16.mxu0 %v2704
      %4043 = vmatpush1.bf16.msra.mxu0 %v2703
      %4044 = vmatprep.subr.bf16.mxu0 %v2708
      %4045 = vmatpush1.bf16.msra.mxu0 %v2707
      %4046 = vmatprep.subr.bf16.mxu0 %v2712
      %4047 = vmatpush1.bf16.msra.mxu0 %v2711
      %4048 = vmatprep.subr.bf16.mxu0 %v2716
      %4049 = vmatpush1.bf16.msra.mxu0 %v2715
      %4050 = vmatprep.subr.bf16.mxu0 %v2720
      %4051 = vmatpush1.bf16.msra.mxu0 %v2719
      %4052 = vmatprep.subr.bf16.mxu0 %v2724
      %4053 = vmatpush1.bf16.msra.mxu0 %v2723
      %4054 = vmatprep.subr.bf16.mxu0 %v2728
      %4055 = vmatpush1.bf16.msra.mxu0 %v2727
      %4056 = vmatprep.subr.bf16.mxu0 %v2732
      %4057 = vmatpush1.bf16.msra.mxu0 %v2731
      %4058 = vmatprep.subr.bf16.mxu0 %v2736
      %4059 = vmatpush1.bf16.msra.mxu0 %v2735
      %4060 = vmatprep.subr.bf16.mxu0 %v2740
      %4061 = vmatpush1.bf16.msra.mxu0 %v2739
      %4062 = vmatprep.subr.bf16.mxu0 %v2744
      %4063 = vmatpush1.bf16.msra.mxu0 %v2743
      %4064 = vmatprep.subr.bf16.mxu0 %v2748
      %4065 = vmatpush1.bf16.msra.mxu0 %v2747
      %4066 = vmatprep.subr.bf16.mxu0 %v2752
      %4067 = vmatpush1.bf16.msra.mxu0 %v2751
      %4068 = vmatprep.mubr.bf16.mxu0 %v1060
      %4069 = vmatmul.mubr.bf16.gmra.mrb[0].mxu0 %v1059
      %v4070 = vpop.f32.mrb[0].mxu0
      %v4071 = vadd.f32 %v4028, %v4070
      %v4072 = vpop.f32.mrb[0].mxu0
      %v4073 = vadd.f32 %v4030, %v4072
      %v4074 = vpop.f32.mrb[0].mxu0
      %v4075 = vadd.f32 %v4032, %v4074
      %v4076 = vpop.f32.mrb[0].mxu0
      %v4077 = vadd.f32 %v4034, %v4076
      %4078 = vdwg.mxu0
      %4079 = vmatprep.subr.bf16.mxu0 %v2756
      %4080 = vmatpush1.bf16.msra.mxu0 %v2755
      %4081 = vmatprep.subr.bf16.mxu0 %v2760
      %4082 = vmatpush1.bf16.msra.mxu0 %v2759
      %4083 = vmatprep.subr.bf16.mxu0 %v2764
      %4084 = vmatpush1.bf16.msra.mxu0 %v2763
      %4085 = vmatprep.subr.bf16.mxu0 %v2768
      %4086 = vmatpush1.bf16.msra.mxu0 %v2767
      %4087 = vmatprep.subr.bf16.mxu0 %v2772
      %4088 = vmatpush1.bf16.msra.mxu0 %v2771
      %4089 = vmatprep.subr.bf16.mxu0 %v2776
      %4090 = vmatpush1.bf16.msra.mxu0 %v2775
      %4091 = vmatprep.subr.bf16.mxu0 %v2780
      %4092 = vmatpush1.bf16.msra.mxu0 %v2779
      %4093 = vmatprep.subr.bf16.mxu0 %v2784
      %4094 = vmatpush1.bf16.msra.mxu0 %v2783
      %4095 = vmatprep.subr.bf16.mxu0 %v2788
      %4096 = vmatpush1.bf16.msra.mxu0 %v2787
      %4097 = vmatprep.subr.bf16.mxu0 %v2792
      %4098 = vmatpush1.bf16.msra.mxu0 %v2791
      %4099 = vmatprep.subr.bf16.mxu0 %v2796
      %4100 = vmatpush1.bf16.msra.mxu0 %v2795
      %4101 = vmatprep.subr.bf16.mxu0 %v2800
      %4102 = vmatpush1.bf16.msra.mxu0 %v2799
      %4103 = vmatprep.subr.bf16.mxu0 %v2804
      %4104 = vmatpush1.bf16.msra.mxu0 %v2803
      %4105 = vmatprep.subr.bf16.mxu0 %v2808
      %4106 = vmatpush1.bf16.msra.mxu0 %v2807
      %4107 = vmatprep.subr.bf16.mxu0 %v2812
      %4108 = vmatpush1.bf16.msra.mxu0 %v2811
      %4109 = vmatprep.subr.bf16.mxu0 %v2816
      %4110 = vmatpush1.bf16.msra.mxu0 %v2815
      %4111 = vmatprep.mubr.bf16.mxu0 %v1062
      %4112 = vmatmul.mubr.bf16.gmra.mrb[0].mxu0 %v1061
      %v4113 = vpop.f32.mrb[0].mxu0
      %v4114 = vadd.f32 %v4071, %v4113
      %v4115 = vpop.f32.mrb[0].mxu0
      %v4116 = vadd.f32 %v4073, %v4115
      %v4117 = vpop.f32.mrb[0].mxu0
      %v4118 = vadd.f32 %v4075, %v4117
      %v4119 = vpop.f32.mrb[0].mxu0
      %v4120 = vadd.f32 %v4077, %v4119
      %4121 = vdwg.mxu0
      %4122 = vmatprep.subr.bf16.mxu0 %v2820
      %4123 = vmatpush1.bf16.msra.mxu0 %v2819
      %4124 = vmatprep.subr.bf16.mxu0 %v2824
      %4125 = vmatpush1.bf16.msra.mxu0 %v2823
      %4126 = vmatprep.subr.bf16.mxu0 %v2828
      %4127 = vmatpush1.bf16.msra.mxu0 %v2827
      %4128 = vmatprep.subr.bf16.mxu0 %v2832
      %4129 = vmatpush1.bf16.msra.mxu0 %v2831
      %4130 = vmatprep.subr.bf16.mxu0 %v2836
      %4131 = vmatpush1.bf16.msra.mxu0 %v2835
      %4132 = vmatprep.subr.bf16.mxu0 %v2840
      %4133 = vmatpush1.bf16.msra.mxu0 %v2839
      %4134 = vmatprep.subr.bf16.mxu0 %v2844
      %4135 = vmatpush1.bf16.msra.mxu0 %v2843
      %4136 = vmatprep.subr.bf16.mxu0 %v2848
      %4137 = vmatpush1.bf16.msra.mxu0 %v2847
      %4138 = vmatprep.subr.bf16.mxu0 %v2852
      %4139 = vmatpush1.bf16.msra.mxu0 %v2851
      %4140 = vmatprep.subr.bf16.mxu0 %v2856
      %4141 = vmatpush1.bf16.msra.mxu0 %v2855
      %4142 = vmatprep.subr.bf16.mxu0 %v2860
      %4143 = vmatpush1.bf16.msra.mxu0 %v2859
      %4144 = vmatprep.subr.bf16.mxu0 %v2864
      %4145 = vmatpush1.bf16.msra.mxu0 %v2863
      %4146 = vmatprep.subr.bf16.mxu0 %v2868
      %4147 = vmatpush1.bf16.msra.mxu0 %v2867
      %4148 = vmatprep.subr.bf16.mxu0 %v2872
      %4149 = vmatpush1.bf16.msra.mxu0 %v2871
      %4150 = vmatprep.subr.bf16.mxu0 %v2876
      %4151 = vmatpush1.bf16.msra.mxu0 %v2875
      %4152 = vmatprep.subr.bf16.mxu0 %v2880
      %4153 = vmatpush1.bf16.msra.mxu0 %v2879
      %4154 = vmatprep.mubr.bf16.mxu0 %v1064
      %4155 = vmatmul.mubr.bf16.gmra.mrb[0].mxu0 %v1063
      %v4156 = vpop.f32.mrb[0].mxu0
      %v4157 = vadd.f32 %v4114, %v4156
      %v4158 = vpop.f32.mrb[0].mxu0
      %v4159 = vadd.f32 %v4116, %v4158
      %v4160 = vpop.f32.mrb[0].mxu0
      %v4161 = vadd.f32 %v4118, %v4160
      %v4162 = vpop.f32.mrb[0].mxu0
      %v4163 = vadd.f32 %v4120, %v4162
      %4164 = vdwg.mxu0
      %4165 = vmatprep.subr.bf16.mxu0 %v2884
      %4166 = vmatpush1.bf16.msra.mxu0 %v2883
      %4167 = vmatprep.subr.bf16.mxu0 %v2888
      %4168 = vmatpush1.bf16.msra.mxu0 %v2887
      %4169 = vmatprep.subr.bf16.mxu0 %v2892
      %4170 = vmatpush1.bf16.msra.mxu0 %v2891
      %4171 = vmatprep.subr.bf16.mxu0 %v2896
      %4172 = vmatpush1.bf16.msra.mxu0 %v2895
      %4173 = vmatprep.subr.bf16.mxu0 %v2900
      %4174 = vmatpush1.bf16.msra.mxu0 %v2899
      %4175 = vmatprep.subr.bf16.mxu0 %v2904
      %4176 = vmatpush1.bf16.msra.mxu0 %v2903
      %4177 = vmatprep.subr.bf16.mxu0 %v2908
      %4178 = vmatpush1.bf16.msra.mxu0 %v2907
      %4179 = vmatprep.subr.bf16.mxu0 %v2912
      %4180 = vmatpush1.bf16.msra.mxu0 %v2911
      %4181 = vmatprep.subr.bf16.mxu0 %v2916
      %4182 = vmatpush1.bf16.msra.mxu0 %v2915
      %4183 = vmatprep.subr.bf16.mxu0 %v2920
      %4184 = vmatpush1.bf16.msra.mxu0 %v2919
      %4185 = vmatprep.subr.bf16.mxu0 %v2924
      %4186 = vmatpush1.bf16.msra.mxu0 %v2923
      %4187 = vmatprep.subr.bf16.mxu0 %v2928
      %4188 = vmatpush1.bf16.msra.mxu0 %v2927
      %4189 = vmatprep.subr.bf16.mxu0 %v2932
      %4190 = vmatpush1.bf16.msra.mxu0 %v2931
      %4191 = vmatprep.subr.bf16.mxu0 %v2936
      %4192 = vmatpush1.bf16.msra.mxu0 %v2935
      %4193 = vmatprep.subr.bf16.mxu0 %v2940
      %4194 = vmatpush1.bf16.msra.mxu0 %v2939
      %4195 = vmatprep.subr.bf16.mxu0 %v2944
      %4196 = vmatpush1.bf16.msra.mxu0 %v2943
      %4197 = vmatprep.mubr.bf16.mxu0 %v1066
      %4198 = vmatmul.mubr.bf16.gmra.mrb[0].mxu0 %v1065
      %v4199 = vpop.f32.mrb[0].mxu0
      %v4200 = vadd.f32 %v4157, %v4199
      %v4201 = vpop.f32.mrb[0].mxu0
      %v4202 = vadd.f32 %v4159, %v4201
      %v4203 = vpop.f32.mrb[0].mxu0
      %v4204 = vadd.f32 %v4161, %v4203
      %v4205 = vpop.f32.mrb[0].mxu0
      %v4206 = vadd.f32 %v4163, %v4205
      %4207 = vdwg.mxu0
      %4208 = vmatprep.subr.bf16.mxu0 %v2948
      %4209 = vmatpush1.bf16.msra.mxu0 %v2947
      %4210 = vmatprep.subr.bf16.mxu0 %v2952
      %4211 = vmatpush1.bf16.msra.mxu0 %v2951
      %4212 = vmatprep.subr.bf16.mxu0 %v2956
      %4213 = vmatpush1.bf16.msra.mxu0 %v2955
      %4214 = vmatprep.subr.bf16.mxu0 %v2960
      %4215 = vmatpush1.bf16.msra.mxu0 %v2959
      %4216 = vmatprep.subr.bf16.mxu0 %v2964
      %4217 = vmatpush1.bf16.msra.mxu0 %v2963
      %4218 = vmatprep.subr.bf16.mxu0 %v2968
      %4219 = vmatpush1.bf16.msra.mxu0 %v2967
      %4220 = vmatprep.subr.bf16.mxu0 %v2972
      %4221 = vmatpush1.bf16.msra.mxu0 %v2971
      %4222 = vmatprep.subr.bf16.mxu0 %v2976
      %4223 = vmatpush1.bf16.msra.mxu0 %v2975
      %4224 = vmatprep.subr.bf16.mxu0 %v2980
      %4225 = vmatpush1.bf16.msra.mxu0 %v2979
      %4226 = vmatprep.subr.bf16.mxu0 %v2984
      %4227 = vmatpush1.bf16.msra.mxu0 %v2983
      %4228 = vmatprep.subr.bf16.mxu0 %v2988
      %4229 = vmatpush1.bf16.msra.mxu0 %v2987
      %4230 = vmatprep.subr.bf16.mxu0 %v2992
      %4231 = vmatpush1.bf16.msra.mxu0 %v2991
      %4232 = vmatprep.subr.bf16.mxu0 %v2996
      %4233 = vmatpush1.bf16.msra.mxu0 %v2995
      %4234 = vmatprep.subr.bf16.mxu0 %v3000
      %4235 = vmatpush1.bf16.msra.mxu0 %v2999
      %4236 = vmatprep.subr.bf16.mxu0 %v3004
      %4237 = vmatpush1.bf16.msra.mxu0 %v3003
      %4238 = vmatprep.subr.bf16.mxu0 %v3008
      %4239 = vmatpush1.bf16.msra.mxu0 %v3007
      %4240 = vmatprep.mubr.bf16.mxu0 %v1068
      %4241 = vmatmul.mubr.bf16.gmra.mrb[0].mxu0 %v1067
      %v4242 = vpop.f32.mrb[0].mxu0
      %v4243 = vadd.f32 %v4200, %v4242
      %v4244 = vpop.f32.mrb[0].mxu0
      %v4245 = vadd.f32 %v4202, %v4244
      %v4246 = vpop.f32.mrb[0].mxu0
      %v4247 = vadd.f32 %v4204, %v4246
      %v4248 = vpop.f32.mrb[0].mxu0
      %v4249 = vadd.f32 %v4206, %v4248
      %4250 = vdwg.mxu0
      %4251 = vmatprep.subr.bf16.mxu0 %v3012
      %4252 = vmatpush1.bf16.msra.mxu0 %v3011
      %4253 = vmatprep.subr.bf16.mxu0 %v3016
      %4254 = vmatpush1.bf16.msra.mxu0 %v3015
      %4255 = vmatprep.subr.bf16.mxu0 %v3020
      %4256 = vmatpush1.bf16.msra.mxu0 %v3019
      %4257 = vmatprep.subr.bf16.mxu0 %v3024
      %4258 = vmatpush1.bf16.msra.mxu0 %v3023
      %4259 = vmatprep.subr.bf16.mxu0 %v3028
      %4260 = vmatpush1.bf16.msra.mxu0 %v3027
      %4261 = vmatprep.subr.bf16.mxu0 %v3032
      %4262 = vmatpush1.bf16.msra.mxu0 %v3031
      %4263 = vmatprep.subr.bf16.mxu0 %v3036
      %4264 = vmatpush1.bf16.msra.mxu0 %v3035
      %4265 = vmatprep.subr.bf16.mxu0 %v3040
      %4266 = vmatpush1.bf16.msra.mxu0 %v3039
      %4267 = vmatprep.subr.bf16.mxu0 %v3044
      %4268 = vmatpush1.bf16.msra.mxu0 %v3043
      %4269 = vmatprep.subr.bf16.mxu0 %v3048
      %4270 = vmatpush1.bf16.msra.mxu0 %v3047
      %4271 = vmatprep.subr.bf16.mxu0 %v3052
      %4272 = vmatpush1.bf16.msra.mxu0 %v3051
      %4273 = vmatprep.subr.bf16.mxu0 %v3056
      %4274 = vmatpush1.bf16.msra.mxu0 %v3055
      %4275 = vmatprep.subr.bf16.mxu0 %v3060
      %4276 = vmatpush1.bf16.msra.mxu0 %v3059
      %4277 = vmatprep.subr.bf16.mxu0 %v3064
      %4278 = vmatpush1.bf16.msra.mxu0 %v3063
      %4279 = vmatprep.subr.bf16.mxu0 %v3068
      %4280 = vmatpush1.bf16.msra.mxu0 %v3067
      %4281 = vmatprep.subr.bf16.mxu0 %v3072
      %4282 = vmatpush1.bf16.msra.mxu0 %v3071
      %4283 = vmatprep.mubr.bf16.mxu0 %v1070
      %4284 = vmatmul.mubr.bf16.gmra.mrb[0].mxu0 %v1069
      %v4285 = vpop.f32.mrb[0].mxu0
      %v4286 = vadd.f32 %v4243, %v4285
      %v4287 = vpop.f32.mrb[0].mxu0
      %v4288 = vadd.f32 %v4245, %v4287
      %v4289 = vpop.f32.mrb[0].mxu0
      %v4290 = vadd.f32 %v4247, %v4289
      %v4291 = vpop.f32.mrb[0].mxu0
      %v4292 = vadd.f32 %v4249, %v4291
      %4293 = vdwg.mxu0
      %4294 = vmatprep.subr.bf16.mxu0 %v3076
      %4295 = vmatpush1.bf16.msra.mxu0 %v3075
      %4296 = vmatprep.subr.bf16.mxu0 %v3080
      %4297 = vmatpush1.bf16.msra.mxu0 %v3079
      %4298 = vmatprep.subr.bf16.mxu0 %v3084
      %4299 = vmatpush1.bf16.msra.mxu0 %v3083
      %4300 = vmatprep.subr.bf16.mxu0 %v3088
      %4301 = vmatpush1.bf16.msra.mxu0 %v3087
      %4302 = vmatprep.subr.bf16.mxu0 %v3092
      %4303 = vmatpush1.bf16.msra.mxu0 %v3091
      %4304 = vmatprep.subr.bf16.mxu0 %v3096
      %4305 = vmatpush1.bf16.msra.mxu0 %v3095
      %4306 = vmatprep.subr.bf16.mxu0 %v3100
      %4307 = vmatpush1.bf16.msra.mxu0 %v3099
      %4308 = vmatprep.subr.bf16.mxu0 %v3104
      %4309 = vmatpush1.bf16.msra.mxu0 %v3103
      %4310 = vmatprep.subr.bf16.mxu0 %v3108
      %4311 = vmatpush1.bf16.msra.mxu0 %v3107
      %4312 = vmatprep.subr.bf16.mxu0 %v3112
      %4313 = vmatpush1.bf16.msra.mxu0 %v3111
      %4314 = vmatprep.subr.bf16.mxu0 %v3116
      %4315 = vmatpush1.bf16.msra.mxu0 %v3115
      %4316 = vmatprep.subr.bf16.mxu0 %v3120
      %4317 = vmatpush1.bf16.msra.mxu0 %v3119
      %4318 = vmatprep.subr.bf16.mxu0 %v3124
      %4319 = vmatpush1.bf16.msra.mxu0 %v3123
      %4320 = vmatprep.subr.bf16.mxu0 %v3128
      %4321 = vmatpush1.bf16.msra.mxu0 %v3127
      %4322 = vmatprep.subr.bf16.mxu0 %v3132
      %4323 = vmatpush1.bf16.msra.mxu0 %v3131
      %4324 = vmatprep.subr.bf16.mxu0 %v3136
      %4325 = vmatpush1.bf16.msra.mxu0 %v3135
      %4326 = vmatprep.mubr.bf16.mxu0 %v1072
      %4327 = vmatmul.mubr.bf16.gmra.mrb[0].mxu0 %v1071
      %v4328 = vpop.f32.mrb[0].mxu0
      %v4329 = vadd.f32 %v4286, %v4328
      %v4330 = vpop.f32.mrb[0].mxu0
      %v4331 = vadd.f32 %v4288, %v4330
      %v4332 = vpop.f32.mrb[0].mxu0
      %v4333 = vadd.f32 %v4290, %v4332
      %v4334 = vpop.f32.mrb[0].mxu0
      %v4335 = vadd.f32 %v4292, %v4334
      %4336 = vdwg.mxu0
      %vm4337 = vcmask 130048
      %v4339 = vsel %vm4337, %v478, 0
      %v4342 = vsel %vm4337, %v479, 0
      %4344 = vmatprep.subr.mxu0 0.0
      %4345 = vmatpush1.msra.mxu0 %v3987
      %4346 = vmatprep.subr.mxu0 0.0
      %4347 = vmatpush1.msra.mxu0 %v3991
      %4348 = vmatprep.subr.mxu0 0.0
      %4349 = vmatpush1.msra.mxu0 0.0
      %4350 = vmatprep.subr.mxu0 0.0
      %4351 = vmatpush1.msra.mxu0 0.0
      %4352 = vmatprep.subr.mxu0 0.0
      %4353 = vmatpush1.msra.mxu0 0.0
      %4354 = vmatprep.subr.mxu0 0.0
      %4355 = vmatpush1.msra.mxu0 0.0
      %4356 = vmatprep.subr.mxu0 0.0
      %4357 = vmatpush1.msra.mxu0 0.0
      %4358 = vmatprep.subr.mxu0 0.0
      %4359 = vmatpush1.msra.mxu0 0.0
      %4360 = vmatprep.subr.mxu0 0.0
      %4361 = vmatpush1.msra.mxu0 0.0
      %4362 = vmatprep.subr.mxu0 0.0
      %4363 = vmatpush1.msra.mxu0 0.0
      %4364 = vmatprep.subr.mxu0 0.0
      %4365 = vmatpush1.msra.mxu0 0.0
      %4366 = vmatprep.subr.mxu0 0.0
      %4367 = vmatpush1.msra.mxu0 0.0
      %4368 = vmatprep.subr.mxu0 0.0
      %4369 = vmatpush1.msra.mxu0 0.0
      %4370 = vmatprep.subr.mxu0 0.0
      %4371 = vmatpush1.msra.mxu0 0.0
      %4372 = vmatprep.subr.mxu0 0.0
      %4373 = vmatpush1.msra.mxu0 0.0
      %4374 = vmatprep.subr.mxu0 0.0
      %4375 = vmatpush1.msra.mxu0 0.0
      %4376 = vmatprep.subr.mxu0 0.0
      %4377 = vmatpush1.msra.mxu0 0.0
      %4378 = vmatprep.subr.mxu0 0.0
      %4379 = vmatpush1.msra.mxu0 0.0
      %4380 = vmatprep.subr.mxu0 0.0
      %4381 = vmatpush1.msra.mxu0 0.0
      %4382 = vmatprep.subr.mxu0 0.0
      %4383 = vmatpush1.msra.mxu0 0.0
      %4384 = vmatprep.subr.mxu0 0.0
      %4385 = vmatpush1.msra.mxu0 0.0
      %4386 = vmatprep.subr.mxu0 0.0
      %4387 = vmatpush1.msra.mxu0 0.0
      %4388 = vmatprep.subr.mxu0 0.0
      %4389 = vmatpush1.msra.mxu0 0.0
      %4390 = vmatprep.subr.mxu0 0.0
      %4391 = vmatpush1.msra.mxu0 0.0
      %4392 = vmatprep.subr.mxu0 0.0
      %4393 = vmatpush1.msra.mxu0 0.0
      %4394 = vmatprep.subr.mxu0 0.0
      %4395 = vmatpush1.msra.mxu0 0.0
      %4396 = vmatprep.subr.mxu0 0.0
      %4397 = vmatpush1.msra.mxu0 0.0
      %4398 = vmatprep.subr.mxu0 0.0
      %4399 = vmatpush1.msra.mxu0 0.0
      %4400 = vmatprep.subr.mxu0 0.0
      %4401 = vmatpush1.msra.mxu0 0.0
      %4402 = vmatprep.subr.mxu0 0.0
      %4403 = vmatpush1.msra.mxu0 0.0
      %4404 = vmatprep.subr.mxu0 0.0
      %4405 = vmatpush1.msra.mxu0 0.0
      %4406 = vmatprep.subr.mxu0 0.0
      %4407 = vmatpush1.msra.mxu0 0.0
      %4408 = vmatprep.mubr.f32.mxu0 0.0
      %4409 = vmatmul.mubr.f32.gmra.mrb[0].mxu0 %v4339
      %v4410 = vpop.f32.mrb[0].mxu0
      %v4411 = vadd.f32 0.0, %v4410
      %v4412 = vpop.f32.mrb[0].mxu0
      %4413 = vmatprep.mubr.f32.mxu0 0.0
      %4414 = vmatmul.mubr.f32.gmra.mrb[0].mxu0 %v4342
      %v4415 = vpop.f32.mrb[0].mxu0
      %v4416 = vadd.f32 0.0, %v4415
      %v4417 = vpop.f32.mrb[0].mxu0
      %4418 = vdwg.mxu0
      %v4420 = vsel %vm4337, %v476, 0
      %v4423 = vsel %vm4337, %v477, 0
      %4425 = vmatprep.subr.mxu0 0.0
      %4426 = vmatpush1.msra.mxu0 %v3985
      %4427 = vmatprep.subr.mxu0 0.0
      %4428 = vmatpush1.msra.mxu0 %v3989
      %4429 = vmatprep.subr.mxu0 0.0
      %4430 = vmatpush1.msra.mxu0 0.0
      %4431 = vmatprep.subr.mxu0 0.0
      %4432 = vmatpush1.msra.mxu0 0.0
      %4433 = vmatprep.subr.mxu0 0.0
      %4434 = vmatpush1.msra.mxu0 0.0
      %4435 = vmatprep.subr.mxu0 0.0
      %4436 = vmatpush1.msra.mxu0 0.0
      %4437 = vmatprep.subr.mxu0 0.0
      %4438 = vmatpush1.msra.mxu0 0.0
      %4439 = vmatprep.subr.mxu0 0.0
      %4440 = vmatpush1.msra.mxu0 0.0
      %4441 = vmatprep.subr.mxu0 0.0
      %4442 = vmatpush1.msra.mxu0 0.0
      %4443 = vmatprep.subr.mxu0 0.0
      %4444 = vmatpush1.msra.mxu0 0.0
      %4445 = vmatprep.subr.mxu0 0.0
      %4446 = vmatpush1.msra.mxu0 0.0
      %4447 = vmatprep.subr.mxu0 0.0
      %4448 = vmatpush1.msra.mxu0 0.0
      %4449 = vmatprep.subr.mxu0 0.0
      %4450 = vmatpush1.msra.mxu0 0.0
      %4451 = vmatprep.subr.mxu0 0.0
      %4452 = vmatpush1.msra.mxu0 0.0
      %4453 = vmatprep.subr.mxu0 0.0
      %4454 = vmatpush1.msra.mxu0 0.0
      %4455 = vmatprep.subr.mxu0 0.0
      %4456 = vmatpush1.msra.mxu0 0.0
      %4457 = vmatprep.subr.mxu0 0.0
      %4458 = vmatpush1.msra.mxu0 0.0
      %4459 = vmatprep.subr.mxu0 0.0
      %4460 = vmatpush1.msra.mxu0 0.0
      %4461 = vmatprep.subr.mxu0 0.0
      %4462 = vmatpush1.msra.mxu0 0.0
      %4463 = vmatprep.subr.mxu0 0.0
      %4464 = vmatpush1.msra.mxu0 0.0
      %4465 = vmatprep.subr.mxu0 0.0
      %4466 = vmatpush1.msra.mxu0 0.0
      %4467 = vmatprep.subr.mxu0 0.0
      %4468 = vmatpush1.msra.mxu0 0.0
      %4469 = vmatprep.subr.mxu0 0.0
      %4470 = vmatpush1.msra.mxu0 0.0
      %4471 = vmatprep.subr.mxu0 0.0
      %4472 = vmatpush1.msra.mxu0 0.0
      %4473 = vmatprep.subr.mxu0 0.0
      %4474 = vmatpush1.msra.mxu0 0.0
      %4475 = vmatprep.subr.mxu0 0.0
      %4476 = vmatpush1.msra.mxu0 0.0
      %4477 = vmatprep.subr.mxu0 0.0
      %4478 = vmatpush1.msra.mxu0 0.0
      %4479 = vmatprep.subr.mxu0 0.0
      %4480 = vmatpush1.msra.mxu0 0.0
      %4481 = vmatprep.subr.mxu0 0.0
      %4482 = vmatpush1.msra.mxu0 0.0
      %4483 = vmatprep.subr.mxu0 0.0
      %4484 = vmatpush1.msra.mxu0 0.0
      %4485 = vmatprep.subr.mxu0 0.0
      %4486 = vmatpush1.msra.mxu0 0.0
      %4487 = vmatprep.subr.mxu0 0.0
      %4488 = vmatpush1.msra.mxu0 0.0
      %4489 = vmatprep.mubr.f32.mxu0 0.0
      %4490 = vmatmul.mubr.f32.gmra.mrb[0].mxu0 %v4420
      %v4491 = vpop.f32.mrb[0].mxu0
      %v4492 = vadd.f32 %v4411, %v4491
      %v4493 = vpop.f32.mrb[0].mxu0
      %4494 = vmatprep.mubr.f32.mxu0 0.0
      %4495 = vmatmul.mubr.f32.gmra.mrb[0].mxu0 %v4423
      %v4496 = vpop.f32.mrb[0].mxu0
      %v4497 = vadd.f32 %v4416, %v4496
      %v4498 = vpop.f32.mrb[0].mxu0
      %4499 = vdwg.mxu0
      %v4500 = vadd.f32 %v4492, %v4329
      %v4501 = vadd.f32 %v4497, %v4333
      %v4503 = vlaneseq
      %v4504 = vshrl.u32 %v4503, 7
      %v4505 = vsub.s32 0, %v4504
      %v4506 = vrot.slane %v1008, %v4505
      %v4508 = vadd.f32 %v4500, %v4506
      %v4509 = vadd.f32 %v4501, %v4506
      %v4510 = vmax.f32 %v4508, 0.0
      %v4511 = vmax.f32 %v4509, 0.0
      %v4512 = vpack.c.bf16 %v4511, %v4510
      %v4513 = vld [vmem:[%s458] sm:$0xff]
      %v4514 = vld [vmem:[%s458 + $0x8] sm:$0xff]
      %v4515 = vld [vmem:[%s458 + $0x10] sm:$0xff]
      %v4516 = vld [vmem:[%s458 + $0x18] sm:$0xff]
      %v4517 = vld [vmem:[%s458 + $0x20] sm:$0xff]
      %v4518 = vld [vmem:[%s458 + $0x28] sm:$0xff]
      %v4519 = vld [vmem:[%s458 + $0x30] sm:$0xff]
      %v4520 = vld [vmem:[%s458 + $0x38] sm:$0xff]
      %v4521 = vld [vmem:[%s458 + $0x40] sm:$0xff]
      %v4522 = vld [vmem:[%s458 + $0x48] sm:$0xff]
      %v4523 = vld [vmem:[%s458 + $0x50] sm:$0xff]
      %v4524 = vld [vmem:[%s458 + $0x58] sm:$0xff]
      %v4525 = vld [vmem:[%s458 + $0x60] sm:$0xff]
      %v4526 = vld [vmem:[%s458 + $0x68] sm:$0xff]
      %v4527 = vld [vmem:[%s458 + $0x70] sm:$0xff]
      %v4528 = vld [vmem:[%s458 + $0x78] sm:$0xff]
      %v4529 = vld [vmem:[%s458 + $0x80] sm:$0xff]
      %v4530 = vld [vmem:[%s458 + $0x88] sm:$0xff]
      %v4531 = vld [vmem:[%s458 + $0x90] sm:$0xff]
      %v4532 = vld [vmem:[%s458 + $0x98] sm:$0xff]
      %v4533 = vld [vmem:[%s458 + $0xa0] sm:$0xff]
      %v4534 = vld [vmem:[%s458 + $0xa8] sm:$0xff]
      %v4535 = vld [vmem:[%s458 + $0xb0] sm:$0xff]
      %v4536 = vld [vmem:[%s458 + $0xb8] sm:$0xff]
      %v4537 = vld [vmem:[%s458 + $0xc0] sm:$0xff]
      %v4538 = vld [vmem:[%s458 + $0xc8] sm:$0xff]
      %v4539 = vld [vmem:[%s458 + $0xd0] sm:$0xff]
      %v4540 = vld [vmem:[%s458 + $0xd8] sm:$0xff]
      %v4541 = vld [vmem:[%s458 + $0xe0] sm:$0xff]
      %v4542 = vld [vmem:[%s458 + $0xe8] sm:$0xff]
      %v4543 = vld [vmem:[%s458 + $0xf0] sm:$0xff]
      %v4544 = vld [vmem:[%s458 + $0xf8] sm:$0xff]
      %v4545 = vld [vmem:[%s461] sm:$0x1]
      %v4578 = vunpack.c.l.b16 %v4513
      %v4579 = vunpack.c.h.b16 %v4513
      %v4580 = vunpack.c.l.b16 %v4514
      %v4581 = vunpack.c.h.b16 %v4514
      %v4582 = vunpack.c.l.b16 %v4515
      %v4583 = vunpack.c.h.b16 %v4515
      %v4584 = vunpack.c.l.b16 %v4516
      %v4585 = vunpack.c.h.b16 %v4516
      %v4586 = vunpack.c.l.b16 %v4517
      %v4587 = vunpack.c.h.b16 %v4517
      %v4588 = vunpack.c.l.b16 %v4518
      %v4589 = vunpack.c.h.b16 %v4518
      %v4590 = vunpack.c.l.b16 %v4519
      %v4591 = vunpack.c.h.b16 %v4519
      %v4592 = vunpack.c.l.b16 %v4520
      %v4593 = vunpack.c.h.b16 %v4520
      %v4594 = vunpack.c.l.b16 %v4521
      %v4595 = vunpack.c.h.b16 %v4521
      %v4596 = vunpack.c.l.b16 %v4522
      %v4597 = vunpack.c.h.b16 %v4522
      %v4598 = vunpack.c.l.b16 %v4523
      %v4599 = vunpack.c.h.b16 %v4523
      %v4600 = vunpack.c.l.b16 %v4524
      %v4601 = vunpack.c.h.b16 %v4524
      %v4602 = vunpack.c.l.b16 %v4525
      %v4603 = vunpack.c.h.b16 %v4525
      %v4604 = vunpack.c.l.b16 %v4526
      %v4605 = vunpack.c.h.b16 %v4526
      %v4606 = vunpack.c.l.b16 %v4527
      %v4607 = vunpack.c.h.b16 %v4527
      %v4608 = vunpack.c.l.b16 %v4528
      %v4609 = vunpack.c.h.b16 %v4528
      %v4610 = vunpack.c.l.b16 %v4529
      %v4611 = vunpack.c.h.b16 %v4529
      %v4612 = vunpack.c.l.b16 %v4530
      %v4613 = vunpack.c.h.b16 %v4530
      %v4614 = vunpack.c.l.b16 %v4531
      %v4615 = vunpack.c.h.b16 %v4531
      %v4616 = vunpack.c.l.b16 %v4532
      %v4617 = vunpack.c.h.b16 %v4532
      %v4618 = vunpack.c.l.b16 %v4533
      %v4619 = vunpack.c.h.b16 %v4533
      %v4620 = vunpack.c.l.b16 %v4534
      %v4621 = vunpack.c.h.b16 %v4534
      %v4622 = vunpack.c.l.b16 %v4535
      %v4623 = vunpack.c.h.b16 %v4535
      %v4624 = vunpack.c.l.b16 %v4536
      %v4625 = vunpack.c.h.b16 %v4536
      %v4626 = vunpack.c.l.b16 %v4537
      %v4627 = vunpack.c.h.b16 %v4537
      %v4628 = vunpack.c.l.b16 %v4538
      %v4629 = vunpack.c.h.b16 %v4538
      %v4630 = vunpack.c.l.b16 %v4539
      %v4631 = vunpack.c.h.b16 %v4539
      %v4632 = vunpack.c.l.b16 %v4540
      %v4633 = vunpack.c.h.b16 %v4540
      %v4634 = vunpack.c.l.b16 %v4541
      %v4635 = vunpack.c.h.b16 %v4541
      %v4636 = vunpack.c.l.b16 %v4542
      %v4637 = vunpack.c.h.b16 %v4542
      %v4638 = vunpack.c.l.b16 %v4543
      %v4639 = vunpack.c.h.b16 %v4543
      %v4640 = vunpack.c.l.b16 %v4544
      %v4641 = vunpack.c.h.b16 %v4544
      %v4642 = vpack.c.b16 %v4582, %v4578
      %v4643 = vpack.c.b16 %v4583, %v4579
      %v4644 = vpack.c.b16 %v4584, %v4580
      %v4645 = vpack.c.b16 %v4585, %v4581
      %v4646 = vpack.c.b16 %v4590, %v4586
      %v4647 = vpack.c.b16 %v4591, %v4587
      %v4648 = vpack.c.b16 %v4592, %v4588
      %v4649 = vpack.c.b16 %v4593, %v4589
      %v4650 = vpack.c.b16 %v4598, %v4594
      %v4651 = vpack.c.b16 %v4599, %v4595
      %v4652 = vpack.c.b16 %v4600, %v4596
      %v4653 = vpack.c.b16 %v4601, %v4597
      %v4654 = vpack.c.b16 %v4606, %v4602
      %v4655 = vpack.c.b16 %v4607, %v4603
      %v4656 = vpack.c.b16 %v4608, %v4604
      %v4657 = vpack.c.b16 %v4609, %v4605
      %v4658 = vpack.c.b16 %v4614, %v4610
      %v4659 = vpack.c.b16 %v4615, %v4611
      %v4660 = vpack.c.b16 %v4616, %v4612
      %v4661 = vpack.c.b16 %v4617, %v4613
      %v4662 = vpack.c.b16 %v4622, %v4618
      %v4663 = vpack.c.b16 %v4623, %v4619
      %v4664 = vpack.c.b16 %v4624, %v4620
      %v4665 = vpack.c.b16 %v4625, %v4621
      %v4666 = vpack.c.b16 %v4630, %v4626
      %v4667 = vpack.c.b16 %v4631, %v4627
      %v4668 = vpack.c.b16 %v4632, %v4628
      %v4669 = vpack.c.b16 %v4633, %v4629
      %v4670 = vpack.c.b16 %v4638, %v4634
      %v4671 = vpack.c.b16 %v4639, %v4635
      %v4672 = vpack.c.b16 %v4640, %v4636
      %v4673 = vpack.c.b16 %v4641, %v4637
      %4706 = vmatprep.subr.bf16.mxu0 %v4643
      %4707 = vmatpush1.bf16.msra.mxu0 %v4642
      %4708 = vmatprep.subr.bf16.mxu0 %v4647
      %4709 = vmatpush1.bf16.msra.mxu0 %v4646
      %4710 = vmatprep.subr.bf16.mxu0 %v4651
      %4711 = vmatpush1.bf16.msra.mxu0 %v4650
      %4712 = vmatprep.subr.bf16.mxu0 %v4655
      %4713 = vmatpush1.bf16.msra.mxu0 %v4654
      %4714 = vmatprep.subr.bf16.mxu0 %v4659
      %4715 = vmatpush1.bf16.msra.mxu0 %v4658
      %4716 = vmatprep.subr.bf16.mxu0 %v4663
      %4717 = vmatpush1.bf16.msra.mxu0 %v4662
      %4718 = vmatprep.subr.bf16.mxu0 %v4667
      %4719 = vmatpush1.bf16.msra.mxu0 %v4666
      %4720 = vmatprep.subr.bf16.mxu0 %v4671
      %4721 = vmatpush1.bf16.msra.mxu0 %v4670
      %4722 = vmatprep.subr.bf16.mxu0 0
      %4723 = vmatpush1.bf16.msra.mxu0 0
      %4724 = vmatprep.subr.bf16.mxu0 0
      %4725 = vmatpush1.bf16.msra.mxu0 0
      %4726 = vmatprep.subr.bf16.mxu0 0
      %4727 = vmatpush1.bf16.msra.mxu0 0
      %4728 = vmatprep.subr.bf16.mxu0 0
      %4729 = vmatpush1.bf16.msra.mxu0 0
      %4730 = vmatprep.subr.bf16.mxu0 0
      %4731 = vmatpush1.bf16.msra.mxu0 0
      %4732 = vmatprep.subr.bf16.mxu0 0
      %4733 = vmatpush1.bf16.msra.mxu0 0
      %4734 = vmatprep.subr.bf16.mxu0 0
      %4735 = vmatpush1.bf16.msra.mxu0 0
      %4736 = vmatprep.subr.bf16.mxu0 0
      %4737 = vmatpush1.bf16.msra.mxu0 0
      %4738 = vmatprep.mubr.bf16.mxu0 0
      %4739 = vmatmul.mubr.bf16.gmra.mrb[0].mxu0 %v4512
      %v4740 = vpop.f32.mrb[0].mxu0
      %v4741 = vadd.f32 0.0, %v4740
      %v4742 = vpop.f32.mrb[0].mxu0
      %v4743 = vadd.f32 0.0, %v4742
      %v4744 = vpop.f32.mrb[0].mxu0
      %v4745 = vadd.f32 0.0, %v4744
      %v4746 = vpop.f32.mrb[0].mxu0
      %v4747 = vadd.f32 0.0, %v4746
      %4748 = vdwg.mxu0
      %4749 = vmatprep.subr.bf16.mxu0 %v4645
      %4750 = vmatpush1.bf16.msra.mxu0 %v4644
      %4751 = vmatprep.subr.bf16.mxu0 %v4649
      %4752 = vmatpush1.bf16.msra.mxu0 %v4648
      %4753 = vmatprep.subr.bf16.mxu0 %v4653
      %4754 = vmatpush1.bf16.msra.mxu0 %v4652
      %4755 = vmatprep.subr.bf16.mxu0 %v4657
      %4756 = vmatpush1.bf16.msra.mxu0 %v4656
      %4757 = vmatprep.subr.bf16.mxu0 %v4661
      %4758 = vmatpush1.bf16.msra.mxu0 %v4660
      %4759 = vmatprep.subr.bf16.mxu0 %v4665
      %4760 = vmatpush1.bf16.msra.mxu0 %v4664
      %4761 = vmatprep.subr.bf16.mxu0 %v4669
      %4762 = vmatpush1.bf16.msra.mxu0 %v4668
      %4763 = vmatprep.subr.bf16.mxu0 %v4673
      %4764 = vmatpush1.bf16.msra.mxu0 %v4672
      %4765 = vmatprep.subr.bf16.mxu0 0
      %4766 = vmatpush1.bf16.msra.mxu0 0
      %4767 = vmatprep.subr.bf16.mxu0 0
      %4768 = vmatpush1.bf16.msra.mxu0 0
      %4769 = vmatprep.subr.bf16.mxu0 0
      %4770 = vmatpush1.bf16.msra.mxu0 0
      %4771 = vmatprep.subr.bf16.mxu0 0
      %4772 = vmatpush1.bf16.msra.mxu0 0
      %4773 = vmatprep.subr.bf16.mxu0 0
      %4774 = vmatpush1.bf16.msra.mxu0 0
      %4775 = vmatprep.subr.bf16.mxu0 0
      %4776 = vmatpush1.bf16.msra.mxu0 0
      %4777 = vmatprep.subr.bf16.mxu0 0
      %4778 = vmatpush1.bf16.msra.mxu0 0
      %4779 = vmatprep.subr.bf16.mxu0 0
      %4780 = vmatpush1.bf16.msra.mxu0 0
      %4781 = vmatprep.mubr.bf16.mxu0 0
      %4782 = vmatmul.mubr.bf16.gmra.mrb[0].mxu0 %v4512
      %v4783 = vpop.f32.mrb[0].mxu0
      %v4784 = vadd.f32 0.0, %v4783
      %v4785 = vpop.f32.mrb[0].mxu0
      %v4786 = vadd.f32 0.0, %v4785
      %v4787 = vpop.f32.mrb[0].mxu0
      %v4788 = vadd.f32 0.0, %v4787
      %v4789 = vpop.f32.mrb[0].mxu0
      %v4790 = vadd.f32 0.0, %v4789
      %4791 = vdwg.mxu0
      %4792 = vmatprep.subr.mxu0 0.0
      %4793 = vmatpush1.msra.mxu0 %v4743
      %4794 = vmatprep.subr.mxu0 0.0
      %4795 = vmatpush1.msra.mxu0 %v4747
      %4796 = vmatprep.subr.mxu0 0.0
      %4797 = vmatpush1.msra.mxu0 0.0
      %4798 = vmatprep.subr.mxu0 0.0
      %4799 = vmatpush1.msra.mxu0 0.0
      %4800 = vmatprep.subr.mxu0 0.0
      %4801 = vmatpush1.msra.mxu0 0.0
      %4802 = vmatprep.subr.mxu0 0.0
      %4803 = vmatpush1.msra.mxu0 0.0
      %4804 = vmatprep.subr.mxu0 0.0
      %4805 = vmatpush1.msra.mxu0 0.0
      %4806 = vmatprep.subr.mxu0 0.0
      %4807 = vmatpush1.msra.mxu0 0.0
      %4808 = vmatprep.subr.mxu0 0.0
      %4809 = vmatpush1.msra.mxu0 0.0
      %4810 = vmatprep.subr.mxu0 0.0
      %4811 = vmatpush1.msra.mxu0 0.0
      %4812 = vmatprep.subr.mxu0 0.0
      %4813 = vmatpush1.msra.mxu0 0.0
      %4814 = vmatprep.subr.mxu0 0.0
      %4815 = vmatpush1.msra.mxu0 0.0
      %4816 = vmatprep.subr.mxu0 0.0
      %4817 = vmatpush1.msra.mxu0 0.0
      %4818 = vmatprep.subr.mxu0 0.0
      %4819 = vmatpush1.msra.mxu0 0.0
      %4820 = vmatprep.subr.mxu0 0.0
      %4821 = vmatpush1.msra.mxu0 0.0
      %4822 = vmatprep.subr.mxu0 0.0
      %4823 = vmatpush1.msra.mxu0 0.0
      %4824 = vmatprep.subr.mxu0 0.0
      %4825 = vmatpush1.msra.mxu0 0.0
      %4826 = vmatprep.subr.mxu0 0.0
      %4827 = vmatpush1.msra.mxu0 0.0
      %4828 = vmatprep.subr.mxu0 0.0
      %4829 = vmatpush1.msra.mxu0 0.0
      %4830 = vmatprep.subr.mxu0 0.0
      %4831 = vmatpush1.msra.mxu0 0.0
      %4832 = vmatprep.subr.mxu0 0.0
      %4833 = vmatpush1.msra.mxu0 0.0
      %4834 = vmatprep.subr.mxu0 0.0
      %4835 = vmatpush1.msra.mxu0 0.0
      %4836 = vmatprep.subr.mxu0 0.0
      %4837 = vmatpush1.msra.mxu0 0.0
      %4838 = vmatprep.subr.mxu0 0.0
      %4839 = vmatpush1.msra.mxu0 0.0
      %4840 = vmatprep.subr.mxu0 0.0
      %4841 = vmatpush1.msra.mxu0 0.0
      %4842 = vmatprep.subr.mxu0 0.0
      %4843 = vmatpush1.msra.mxu0 0.0
      %4844 = vmatprep.subr.mxu0 0.0
      %4845 = vmatpush1.msra.mxu0 0.0
      %4846 = vmatprep.subr.mxu0 0.0
      %4847 = vmatpush1.msra.mxu0 0.0
      %4848 = vmatprep.subr.mxu0 0.0
      %4849 = vmatpush1.msra.mxu0 0.0
      %4850 = vmatprep.subr.mxu0 0.0
      %4851 = vmatpush1.msra.mxu0 0.0
      %4852 = vmatprep.subr.mxu0 0.0
      %4853 = vmatpush1.msra.mxu0 0.0
      %4854 = vmatprep.subr.mxu0 0.0
      %4855 = vmatpush1.msra.mxu0 0.0
      %4856 = vmatprep.mubr.f32.mxu0 0.0
      %4857 = vmatmul.mubr.f32.gmra.mrb[0].mxu0 %v4339
      %v4858 = vpop.f32.mrb[0].mxu0
      %v4859 = vadd.f32 0.0, %v4858
      %v4860 = vpop.f32.mrb[0].mxu0
      %4861 = vmatprep.mubr.f32.mxu0 0.0
      %4862 = vmatmul.mubr.f32.gmra.mrb[0].mxu0 %v4342
      %v4863 = vpop.f32.mrb[0].mxu0
      %v4864 = vadd.f32 0.0, %v4863
      %v4865 = vpop.f32.mrb[0].mxu0
      %4866 = vdwg.mxu0
      %4867 = vmatprep.subr.mxu0 0.0
      %4868 = vmatpush1.msra.mxu0 %v4741
      %4869 = vmatprep.subr.mxu0 0.0
      %4870 = vmatpush1.msra.mxu0 %v4745
      %4871 = vmatprep.subr.mxu0 0.0
      %4872 = vmatpush1.msra.mxu0 0.0
      %4873 = vmatprep.subr.mxu0 0.0
      %4874 = vmatpush1.msra.mxu0 0.0
      %4875 = vmatprep.subr.mxu0 0.0
      %4876 = vmatpush1.msra.mxu0 0.0
      %4877 = vmatprep.subr.mxu0 0.0
      %4878 = vmatpush1.msra.mxu0 0.0
      %4879 = vmatprep.subr.mxu0 0.0
      %4880 = vmatpush1.msra.mxu0 0.0
      %4881 = vmatprep.subr.mxu0 0.0
      %4882 = vmatpush1.msra.mxu0 0.0
      %4883 = vmatprep.subr.mxu0 0.0
      %4884 = vmatpush1.msra.mxu0 0.0
      %4885 = vmatprep.subr.mxu0 0.0
      %4886 = vmatpush1.msra.mxu0 0.0
      %4887 = vmatprep.subr.mxu0 0.0
      %4888 = vmatpush1.msra.mxu0 0.0
      %4889 = vmatprep.subr.mxu0 0.0
      %4890 = vmatpush1.msra.mxu0 0.0
      %4891 = vmatprep.subr.mxu0 0.0
      %4892 = vmatpush1.msra.mxu0 0.0
      %4893 = vmatprep.subr.mxu0 0.0
      %4894 = vmatpush1.msra.mxu0 0.0
      %4895 = vmatprep.subr.mxu0 0.0
      %4896 = vmatpush1.msra.mxu0 0.0
      %4897 = vmatprep.subr.mxu0 0.0
      %4898 = vmatpush1.msra.mxu0 0.0
      %4899 = vmatprep.subr.mxu0 0.0
      %4900 = vmatpush1.msra.mxu0 0.0
      %4901 = vmatprep.subr.mxu0 0.0
      %4902 = vmatpush1.msra.mxu0 0.0
      %4903 = vmatprep.subr.mxu0 0.0
      %4904 = vmatpush1.msra.mxu0 0.0
      %4905 = vmatprep.subr.mxu0 0.0
      %4906 = vmatpush1.msra.mxu0 0.0
      %4907 = vmatprep.subr.mxu0 0.0
      %4908 = vmatpush1.msra.mxu0 0.0
      %4909 = vmatprep.subr.mxu0 0.0
      %4910 = vmatpush1.msra.mxu0 0.0
      %4911 = vmatprep.subr.mxu0 0.0
      %4912 = vmatpush1.msra.mxu0 0.0
      %4913 = vmatprep.subr.mxu0 0.0
      %4914 = vmatpush1.msra.mxu0 0.0
      %4915 = vmatprep.subr.mxu0 0.0
      %4916 = vmatpush1.msra.mxu0 0.0
      %4917 = vmatprep.subr.mxu0 0.0
      %4918 = vmatpush1.msra.mxu0 0.0
      %4919 = vmatprep.subr.mxu0 0.0
      %4920 = vmatpush1.msra.mxu0 0.0
      %4921 = vmatprep.subr.mxu0 0.0
      %4922 = vmatpush1.msra.mxu0 0.0
      %4923 = vmatprep.subr.mxu0 0.0
      %4924 = vmatpush1.msra.mxu0 0.0
      %4925 = vmatprep.subr.mxu0 0.0
      %4926 = vmatpush1.msra.mxu0 0.0
      %4927 = vmatprep.subr.mxu0 0.0
      %4928 = vmatpush1.msra.mxu0 0.0
      %4929 = vmatprep.subr.mxu0 0.0
      %4930 = vmatpush1.msra.mxu0 0.0
      %4931 = vmatprep.mubr.f32.mxu0 0.0
      %4932 = vmatmul.mubr.f32.gmra.mrb[0].mxu0 %v4420
      %v4933 = vpop.f32.mrb[0].mxu0
      %v4934 = vadd.f32 %v4859, %v4933
      %v4935 = vpop.f32.mrb[0].mxu0
      %4936 = vmatprep.mubr.f32.mxu0 0.0
      %4937 = vmatmul.mubr.f32.gmra.mrb[0].mxu0 %v4423
      %v4938 = vpop.f32.mrb[0].mxu0
      %v4939 = vadd.f32 %v4864, %v4938
      %v4940 = vpop.f32.mrb[0].mxu0
      %4941 = vdwg.mxu0
      %v4942 = vadd.f32 %v4934, %v4784
      %v4943 = vadd.f32 %v4939, %v4788
      %v4945 = vlaneseq
      %v4946 = vshrl.u32 %v4945, 7
      %v4947 = vsub.s32 0, %v4946
      %v4948 = vrot.slane %v4545, %v4947
      %v4950 = vadd.f32 %v4942, %v4948
      %v4951 = vadd.f32 %v4943, %v4948
      %v4952 = vadd.f32 %v4331, %v4786
      %v4953 = vadd.f32 %v4335, %v4790
      %v4954 = vmax.f32 %v4950, 0.0
      %v4955 = vmax.f32 %v4951, 0.0
      %v4956 = vpack.c.bf16 %v4955, %v4954
      %v4957 = vld [vmem:[%s466] sm:$0xf]
      %v4958 = vld [vmem:[%s466 + $0x4] sm:$0xf]
      %v4959 = vld [vmem:[%s466 + $0x8] sm:$0xf]
      %v4960 = vld [vmem:[%s466 + $0xc] sm:$0xf]
      %v4961 = vld [vmem:[%s466 + $0x10] sm:$0xf]
      %v4962 = vld [vmem:[%s466 + $0x14] sm:$0xf]
      %v4963 = vld [vmem:[%s466 + $0x18] sm:$0xf]
      %v4964 = vld [vmem:[%s466 + $0x1c] sm:$0xf]
      %v4965 = vld [vmem:[%s466 + $0x20] sm:$0xf]
      %v4966 = vld [vmem:[%s466 + $0x24] sm:$0xf]
      %v4967 = vld [vmem:[%s466 + $0x28] sm:$0xf]
      %v4968 = vld [vmem:[%s466 + $0x2c] sm:$0xf]
      %v4969 = vld [vmem:[%s466 + $0x30] sm:$0xf]
      %v4970 = vld [vmem:[%s466 + $0x34] sm:$0xf]
      %v4971 = vld [vmem:[%s466 + $0x38] sm:$0xf]
      %v4972 = vld [vmem:[%s466 + $0x3c] sm:$0xf]
      %v4989 = vunpack.c.l.b16 %v4957
      %v4990 = vunpack.c.l.b16 %v4958
      %v4991 = vunpack.c.l.b16 %v4959
      %v4992 = vunpack.c.l.b16 %v4960
      %v4993 = vunpack.c.l.b16 %v4961
      %v4994 = vunpack.c.l.b16 %v4962
      %v4995 = vunpack.c.l.b16 %v4963
      %v4996 = vunpack.c.l.b16 %v4964
      %v4997 = vunpack.c.l.b16 %v4965
      %v4998 = vunpack.c.l.b16 %v4966
      %v4999 = vunpack.c.l.b16 %v4967
      %v5000 = vunpack.c.l.b16 %v4968
      %v5001 = vunpack.c.l.b16 %v4969
      %v5002 = vunpack.c.l.b16 %v4970
      %v5003 = vunpack.c.l.b16 %v4971
      %v5004 = vunpack.c.l.b16 %v4972
      %v5005 = vpack.c.b16 %v4990, %v4989
      %v5006 = vpack.c.b16 %v4992, %v4991
      %v5007 = vpack.c.b16 %v4994, %v4993
      %v5008 = vpack.c.b16 %v4996, %v4995
      %v5009 = vpack.c.b16 %v4998, %v4997
      %v5010 = vpack.c.b16 %v5000, %v4999
      %v5011 = vpack.c.b16 %v5002, %v5001
      %v5012 = vpack.c.b16 %v5004, %v5003
      %5021 = vmatprep.subr.bf16.mxu0 0
      %5022 = vmatpush1.bf16.msra.mxu0 %v5005
      %5023 = vmatprep.subr.bf16.mxu0 0
      %5024 = vmatpush1.bf16.msra.mxu0 %v5006
      %5025 = vmatprep.subr.bf16.mxu0 0
      %5026 = vmatpush1.bf16.msra.mxu0 %v5007
      %5027 = vmatprep.subr.bf16.mxu0 0
      %5028 = vmatpush1.bf16.msra.mxu0 %v5008
      %5029 = vmatprep.subr.bf16.mxu0 0
      %5030 = vmatpush1.bf16.msra.mxu0 %v5009
      %5031 = vmatprep.subr.bf16.mxu0 0
      %5032 = vmatpush1.bf16.msra.mxu0 %v5010
      %5033 = vmatprep.subr.bf16.mxu0 0
      %5034 = vmatpush1.bf16.msra.mxu0 %v5011
      %5035 = vmatprep.subr.bf16.mxu0 0
      %5036 = vmatpush1.bf16.msra.mxu0 %v5012
      %5037 = vmatprep.subr.bf16.mxu0 0
      %5038 = vmatpush1.bf16.msra.mxu0 0
      %5039 = vmatprep.subr.bf16.mxu0 0
      %5040 = vmatpush1.bf16.msra.mxu0 0
      %5041 = vmatprep.subr.bf16.mxu0 0
      %5042 = vmatpush1.bf16.msra.mxu0 0
      %5043 = vmatprep.subr.bf16.mxu0 0
      %5044 = vmatpush1.bf16.msra.mxu0 0
      %5045 = vmatprep.subr.bf16.mxu0 0
      %5046 = vmatpush1.bf16.msra.mxu0 0
      %5047 = vmatprep.subr.bf16.mxu0 0
      %5048 = vmatpush1.bf16.msra.mxu0 0
      %5049 = vmatprep.subr.bf16.mxu0 0
      %5050 = vmatpush1.bf16.msra.mxu0 0
      %5051 = vmatprep.subr.bf16.mxu0 0
      %5052 = vmatpush1.bf16.msra.mxu0 0
      %5053 = vmatprep.mubr.bf16.mxu0 0
      %5054 = vmatmul.mubr.bf16.gmra.mrb[0].mxu0 %v4956
      %v5055 = vpop.f32.mrb[0].mxu0
      %v5056 = vadd.f32 0.0, %v5055
      %v5057 = vpop.f32.mrb[0].mxu0
      %v5058 = vpop.f32.mrb[0].mxu0
      %v5059 = vadd.f32 0.0, %v5058
      %v5060 = vpop.f32.mrb[0].mxu0
      %5061 = vdwg.mxu0
      %v5062 = vadd.f32 %v4952, %v5056
      %v5063 = vadd.f32 %v4953, %v5059
      %v5064 = vld [vmem:[%s469] sm:$0x1]
      %v5066 = vlaneseq
      %v5067 = vshrl.u32 %v5066, 7
      %v5068 = vsub.s32 0, %v5067
      %v5069 = vrot.slane %v5064, %v5068
      %v5071 = vadd.f32 %v5062, %v5069
      %v5072 = vadd.f32 %v5063, %v5069
      %5073 = vst [vmem:[%s474] sm:$0xff] %v5071
      %5074 = vst [vmem:[%s474 + $0x8] sm:$0xff] %v5072
      %p5075 = scmp.lt.s32.totalorder %s20, 1
      %s5076 = scalar_select %p5075, %s20, 1
      %s5077 = smul.addr %s5076, 2
      %s5078 = smul.addr %s5077, 8
      %s5079 = scalar_lea.vmem %s9, %s5078
      // Predicated region
      $region57: #{graphconv_forward.1} parent=55 // pred_check
        %p5080 = pneg %p272
      $region58: #{graphconv_forward.1} parent=55 // pred_check_branch
        %5082 = sbr.rel (%p5080) target = $region60
      $region59: #{graphconv_forward.1} parent=55 // pred_region
        _
      $region60: #{graphconv_forward.1} parent=55 // pred_fallthru
        _
    $region56: #{graphconv_forward.1} parent=5 // pred_fallthru
      _
    %p5083 = scmp.le.s32.totalorder 2, %s15
    // Predicated region
    $region61: #{graphconv_forward.1} parent=5 // pred_check
      %p5084 = pneg %p5083
    $region62: #{graphconv_forward.1} parent=5 // pred_check_branch
      %5086 = sbr.rel (%p5084) target = $region64
    $region63: #{graphconv_forward.1} parent=5 // pred_region
      %s5087 = ssub.s32 %s15, 2
      // Predicated region
      $region65: #{graphconv_forward.1} parent=63 // pred_check
        %p5088 = pneg %p278
      $region66: #{graphconv_forward.1} parent=63 // pred_check_branch
        %5090 = sbr.rel (%p5088) target = $region68
      $region67: #{graphconv_forward.1} parent=63 // pred_region
        %p5091 = scmp.lt.s32.totalorder %s21, 1
        %s5092 = scalar_select %p5091, %s21, 1
        %s5093 = smul.addr %s5092, 2
        %s5094 = smul.addr %s5093, 8
        %s5095 = scalar_lea.vmem %s9, %s5094
      $region68: #{graphconv_forward.1} parent=63 // pred_fallthru
        _
    $region64: #{graphconv_forward.1} parent=5 // pred_fallthru
      _
  $region6: #{graphconv_forward.1} parent=0 // loop_footer
    %s19 = sadd.s32 1, %s15
  $region7: #{graphconv_forward.1} parent=0 // loop_footer_branch
    %14 = sbr.rel target = $region3
  $region8: #{graphconv_forward.1} parent=0 // loop_exit
    _

</llo_original>
